<compile_context>
chip_gen: v7x
topology: tpu7x:2x2x1
jax: 0.10.0
libtpu: 0.0.40
codegen_flags: <defaults>
</compile_context>

<pallas_src>
import jax
import jax.numpy as jnp
from jax.experimental import pallas as pl
from jax.experimental.pallas import tpu as pltpu


# ----------------------------------------------------------------------------
# In-kernel helpers (values only; everything stays in VMEM / vregs)
# ----------------------------------------------------------------------------
def _conv3x3_relu_padded(xp, wmat, bias):
    """xp: (B, h+2, w+2, cin) already zero-padded; wmat: (9*cin, cout) bf16 rows ordered
    (ky, kx, ci); bias: (1, cout) f32.  Returns ReLU(conv2d stride 1) as a flat
    (B*h*w, cout) f32 array, rows ordered (image, row, col)."""
    B, hp, wp, cin = xp.shape
    h, w = hp - 2, wp - 2
    # im2col: one lane-block per (ky, kx) tap, matching wmat's row order.
    cols = [xp[:, ky:ky + h, kx:kx + w, :].reshape(B * h * w, cin)
            for ky in range(3) for kx in range(3)]
    patches = jnp.concatenate(cols, axis=1).astype(jnp.bfloat16)   # (B*h*w, 9*cin)
    acc = jnp.dot(patches, wmat, preferred_element_type=jnp.float32)
    return jnp.maximum(acc + bias, 0.0)                            # (B*h*w, cout) f32


def _pad1_nhwc(x):
    """Zero-pad the two spatial dims of x: (B, h, w, c) -> (B, h+2, w+2, c)."""
    B, h, w, c = x.shape
    zr = jnp.zeros((B, 1, w, c), x.dtype)
    x = jnp.concatenate([zr, x, zr], axis=1)
    zc = jnp.zeros((B, h + 2, 1, c), x.dtype)
    return jnp.concatenate([zc, x, zc], axis=2)


def _maxpool2_flat(a, n_rows, w):
    """2x2 / stride-2 max pool on a flat activation a: (n_rows*w, c), rows ordered
    (image, row, col) with n_rows = B*h (h, w even, so pairing never crosses images).
    Returns (n_rows//2 * w//2, c) in the same ordering.  Only reshapes that keep the
    lane dim (c) intact, middle-dim slices and element-wise max are used -- no strided
    ref indexing, no selection matmuls."""
    c = a.shape[-1]
    w2 = w // 2
    # Pool along W: horizontally adjacent pixels are adjacent flat rows.
    t = a.reshape((n_rows * w2), 2, c)
    aw = jnp.maximum(t[:, 0, :], t[:, 1, :])                       # (n_rows*w2, c)
    # Pool along H: vertically adjacent pixels are w2 flat rows apart.
    t = aw.reshape(n_rows // 2, 2 * w2, c)
    ah = jnp.maximum(t[:, :w2, :], t[:, w2:, :])                   # (n_rows//2, w2, c)
    return ah.reshape((n_rows // 2) * w2, c)


# ----------------------------------------------------------------------------
# Kernels
# ----------------------------------------------------------------------------
def fused_cnn_kernel(x_ref, w1_ref, b1_ref, w2_ref, b2_ref, feat_ref):
    """Fused conv1+ReLU -> pool -> conv2+ReLU -> pool for a tile of B images.
       x_ref   : (B, H+2, W+2, Cin)  f32, spatially pre-padded in the wrapper
       w1_ref  : (9*Cin, C1) bf16    im2col conv1 weight
       b1_ref  : (1, C1)     f32
       w2_ref  : (9*C1, C2)  bf16    im2col conv2 weight
       b2_ref  : (1, C2)     f32
       feat_ref: (B*(H//4)*(W//4), C2) f32, rows ordered (image, row, col)
                 -> row-major HBM layout == NHWC flatten of the pooled features.
    """
    B, Hp, Wp, Cin = x_ref.shape
    H, W = Hp - 2, Wp - 2
    C1 = w1_ref.shape[1]
    H2, W2 = H // 2, W // 2

    a1 = _conv3x3_relu_padded(x_ref[...], w1_ref[...], b1_ref[...])   # (B*H*W, C1)
    p1 = _maxpool2_flat(a1, B * H, W)                                 # (B*H2*W2, C1)
    # conv2: pad in-kernel (array is 4x smaller than the input), then im2col matmul.
    p1p = _pad1_nhwc(p1.reshape(B, H2, W2, C1))                       # (B, H2+2, W2+2, C1)
    a2 = _conv3x3_relu_padded(p1p, w2_ref[...], b2_ref[...])          # (B*H2*W2, C2)
    p2 = _maxpool2_flat(a2, B * H2, W2)                               # (B*H4*W4, C2)
    feat_ref[...] = p2.astype(feat_ref.dtype)


def fc_kernel(x_ref, w_ref, b_ref, o_ref):
    """x_ref: (N, F) f32 features, w_ref: (F, num_classes) bf16, b_ref: (1, num_classes) f32."""
    x = x_ref[...].astype(jnp.bfloat16)
    o_ref[...] = (jnp.dot(x, w_ref[...], preferred_element_type=jnp.float32)
                  + b_ref[...]).astype(o_ref.dtype)


# ----------------------------------------------------------------------------
# Parameter prep (one-time layout + dtype work, hoisted out of the forward pass)
# ----------------------------------------------------------------------------
def prepare_params(params, spatial_hw):
    """PyTorch layouts -> kernel layouts (and bf16 weights, f32 biases).
       convs: OIHW -> (9*Cin, Cout) im2col matrices, rows ordered (ky, kx, ci)
       fc   : (num_classes, C2*H4*W4) in NCHW-flatten order -> (F, num_classes) in
              NHWC-flatten order, so pooled NHWC features multiply it directly."""
    w1, b1, w2, b2, wf, bf = params
    H, W = spatial_hw
    C1, Cin = w1.shape[0], w1.shape[1]
    C2 = w2.shape[0]
    NC = wf.shape[0]
    H4, W4 = H // 4, W // 4
    F = C2 * H4 * W4
    assert wf.shape[1] == F, (wf.shape, F)

    w1m = jnp.transpose(w1, (2, 3, 1, 0)).reshape(9 * Cin, C1).astype(jnp.bfloat16)
    w2m = jnp.transpose(w2, (2, 3, 1, 0)).reshape(9 * C1, C2).astype(jnp.bfloat16)
    # wf[k, c*H4*W4 + h*W4 + w]  ->  wf_t[(h*W4 + w)*C2 + c, k]
    wf_t = jnp.transpose(wf.reshape(NC, C2, H4, W4), (2, 3, 1, 0)).reshape(F, NC)
    return (w1m, b1.reshape(1, C1).astype(jnp.float32),
            w2m, b2.reshape(1, C2).astype(jnp.float32),
            wf_t.astype(jnp.bfloat16), bf.reshape(1, NC).astype(jnp.float32))


def _pick_batch_tile(n, h, w, cin, c1, c2, vmem_budget_bytes=24 * 1024 * 1024):
    """Rough per-image VMEM footprint of the fused kernel -> batch tile size.
    Capped so the grid keeps >= 2 steps (both v7x TensorCores get work)."""
    per_img = 4 * (
        (h + 2) * (w + 2) * cin                      # padded input
        + h * w * (9 * cin + c1)                     # conv1 patches + activation
        + (h // 2) * (w // 2) * (9 * c1 + c2)        # conv2 patches + activation
    ) * 4                                            # slack: relayout copies / pipelining
    bt = max(1, min(n, vmem_budget_bytes // max(per_img, 1)))
    if n >= 2:
        bt = min(bt, max(1, n // 2))
    while n % bt:
        bt -= 1
    return max(bt, 1)


# ----------------------------------------------------------------------------
# Forward pass
# ----------------------------------------------------------------------------
def cnn_forward(x_nchw, prep, *, batch_tile=None,
                vmem_limit_bytes=32 * 1024 * 1024):
    """Pallas implementation of CNN.forward (x in PyTorch NCHW layout)."""
    w1m, b1r, w2m, b2r, wf_t, bfr = prep
    N, Cin, H, W = x_nchw.shape
    assert H % 4 == 0 and W % 4 == 0, (H, W)
    C1 = w1m.shape[1]
    C2 = w2m.shape[1]
    NC = wf_t.shape[1]
    H4, W4 = H // 4, W // 4
    P4 = H4 * W4
    F = P4 * C2

    if batch_tile is None:
        batch_tile = _pick_batch_tile(N, H, W, Cin, C1, C2)
    assert N % batch_tile == 0, (N, batch_tile)

    # NCHW -> NHWC; hoist conv1's padding=1 out of the kernel (done once in HBM).
    x_nhwc = jnp.transpose(x_nchw, (0, 2, 3, 1)).astype(jnp.float32)
    x_pad = jnp.pad(x_nhwc, ((0, 0), (1, 1), (1, 1), (0, 0)))

    feats = pl.pallas_call(
        fused_cnn_kernel,
        out_shape=jax.ShapeDtypeStruct((N * P4, C2), jnp.float32),
        grid=(N // batch_tile,),
        in_specs=[
            pl.BlockSpec((batch_tile, H + 2, W + 2, Cin), lambda n: (n, 0, 0, 0)),
            pl.BlockSpec((9 * Cin, C1), lambda n: (0, 0)),
            pl.BlockSpec((1, C1), lambda n: (0, 0)),
            pl.BlockSpec((9 * C1, C2), lambda n: (0, 0)),
            pl.BlockSpec((1, C2), lambda n: (0, 0)),
        ],
        out_specs=pl.BlockSpec((batch_tile * P4, C2), lambda n: (n, 0)),
        compiler_params=pltpu.CompilerParams(
            dimension_semantics=("parallel",),       # batch tiles across TCs (v7x)
            vmem_limit_bytes=vmem_limit_bytes),
    )(x_pad, w1m, b1r, w2m, b2r)

    # (N*P4, C2) row-major == (N, P4*C2) NHWC flatten -> free bitcast reshape; the fc
    # weight columns were pre-permuted to this order, so no activation transpose.
    feats2d = feats.reshape(N, F)

    return pl.pallas_call(
        fc_kernel,
        out_shape=jax.ShapeDtypeStruct((N, NC), jnp.float32),
    )(feats2d, wf_t, bfr)


# ----------------------------------------------------------------------------
# Pure-JAX reference (for the correctness check)
# ----------------------------------------------------------------------------
def reference_forward(x_nchw, params):
    w1, b1, w2, b2, wf, bf = params

    def conv(x, w, b):
        y = jax.lax.conv_general_dilated(
            x, w, window_strides=(1, 1), padding=((1, 1), (1, 1)),
            dimension_numbers=("NCHW", "OIHW", "NCHW"),
            precision=jax.lax.Precision.HIGHEST)
        return jax.nn.relu(y + b[None, :, None, None])

    def pool(x):
        return jax.lax.reduce_window(x, -jnp.inf, jax.lax.max,
                                     (1, 1, 2, 2), (1, 1, 2, 2), "VALID")

    y = pool(conv(x_nchw, w1, b1))
    y = pool(conv(y, w2, b2))
    y = y.reshape(y.shape[0], -1)
    return jnp.dot(y, wf.T, precision=jax.lax.Precision.HIGHEST) + bf


# ----------------------------------------------------------------------------
if __name__ == "__main__":
    # Small demo shapes: batch=2, in_channels=1, 16x16 spatial, num_classes=3.
    # TODO(synk): the original module hard-codes fc1 in-features for 256x256 inputs
    # (16*64*64); here fc in-features are derived from the actual spatial size (16*4*4).
    N, Cin, Hin, Win = 2, 1, 16, 16
    num_classes = 3
    fc_in = 16 * (Hin // 4) * (Win // 4)

    key = jax.random.PRNGKey(0)
    ks = jax.random.split(key, 7)
    x = jax.random.normal(ks[0], (N, Cin, Hin, Win), jnp.float32)

    # Deterministic synthetic parameters (PyTorch layouts: OIHW convs, (out,in) linear).
    w1 = jax.random.normal(ks[1], (8, Cin, 3, 3), jnp.float32) * 0.10
    b1 = jax.random.normal(ks[2], (8,), jnp.float32) * 0.10
    w2 = jax.random.normal(ks[3], (16, 8, 3, 3), jnp.float32) * 0.05
    b2 = jax.random.normal(ks[4], (16,), jnp.float32) * 0.05
    wf = jax.random.normal(ks[5], (num_classes, fc_in), jnp.float32) * 0.02
    bf = jax.random.normal(ks[6], (num_classes,), jnp.float32) * 0.02
    params = (w1, b1, w2, b2, wf, bf)

    prep = prepare_params(params, (Hin, Win))      # one-time layout / bf16 prep
    out = jax.block_until_ready(cnn_forward(x, prep))

    ref = jax.block_until_ready(reference_forward(x, params))
    assert out.shape == (N, num_classes), out.shape
    # bf16 matmul operands with f32 accumulation vs. a Precision.HIGHEST f32 reference:
    # use a correspondingly relaxed tolerance.
    assert jnp.allclose(out, ref, atol=2e-2, rtol=2e-2), (
        f"max abs diff = {jnp.max(jnp.abs(out - ref))}")

    print("KERNEL_OK")
</pallas_src>

<mosaic_0001>
module attributes {stable_mosaic.version = 11 : i64} {
  func.func @fused_cnn_kernel(%arg0: i32, %arg1: memref<1x18x18x1xf32, #tpu.memory_space<vmem>>, %arg2: memref<9x8xbf16, #tpu.memory_space<vmem>>, %arg3: memref<1x8xf32, #tpu.memory_space<vmem>>, %arg4: memref<72x16xbf16, #tpu.memory_space<vmem>>, %arg5: memref<1x16xf32, #tpu.memory_space<vmem>>, %arg6: memref<16x16xf32, #tpu.memory_space<vmem>>) attributes {dimension_semantics = [#tpu.dimension_semantics<parallel>], iteration_bounds = array<i64: 2>, scalar_prefetch = 0 : i64, scratch_operands = 0 : i64, tpu.core_type = #tpu.core_type<tc>, window_params = [{transform_indices = @transform_0, window_bounds = array<i64: 1, 18, 18, 1>}, {pipeline_mode = #tpu.pipeline_mode<synchronous>, transform_indices = @transform_1, window_bounds = array<i64: 9, 8>}, {pipeline_mode = #tpu.pipeline_mode<synchronous>, transform_indices = @transform_2, window_bounds = array<i64: 1, 8>}, {pipeline_mode = #tpu.pipeline_mode<synchronous>, transform_indices = @transform_3, window_bounds = array<i64: 72, 16>}, {pipeline_mode = #tpu.pipeline_mode<synchronous>, transform_indices = @transform_4, window_bounds = array<i64: 1, 16>}, {transform_indices = @transform_5, window_bounds = array<i64: 16, 16>}]} {
    %c0 = arith.constant 0 : index
    %c0_0 = arith.constant 0 : index
    %c0_1 = arith.constant 0 : index
    %c0_2 = arith.constant 0 : index
    %0 = vector.load %arg1[%c0, %c0_0, %c0_1, %c0_2] : memref<1x18x18x1xf32, #tpu.memory_space<vmem>>, vector<1x18x18x1xf32>
    %c0_3 = arith.constant 0 : index
    %c0_4 = arith.constant 0 : index
    %1 = vector.load %arg2[%c0_3, %c0_4] : memref<9x8xbf16, #tpu.memory_space<vmem>>, vector<9x8xbf16>
    %c0_5 = arith.constant 0 : index
    %c0_6 = arith.constant 0 : index
    %2 = vector.load %arg3[%c0_5, %c0_6] : memref<1x8xf32, #tpu.memory_space<vmem>>, vector<1x8xf32>
    %3 = vector.extract_strided_slice %0 {offsets = [0, 0, 0, 0], sizes = [1, 16, 16, 1], strides = [1, 1, 1, 1]} : vector<1x18x18x1xf32> to vector<1x16x16x1xf32>
    %4 = vector.shape_cast %3 : vector<1x16x16x1xf32> to vector<256x1xf32>
    %5 = vector.extract_strided_slice %0 {offsets = [0, 0, 1, 0], sizes = [1, 16, 16, 1], strides = [1, 1, 1, 1]} : vector<1x18x18x1xf32> to vector<1x16x16x1xf32>
    %6 = vector.shape_cast %5 : vector<1x16x16x1xf32> to vector<256x1xf32>
    %7 = vector.extract_strided_slice %0 {offsets = [0, 0, 2, 0], sizes = [1, 16, 16, 1], strides = [1, 1, 1, 1]} : vector<1x18x18x1xf32> to vector<1x16x16x1xf32>
    %8 = vector.shape_cast %7 : vector<1x16x16x1xf32> to vector<256x1xf32>
    %9 = vector.extract_strided_slice %0 {offsets = [0, 1, 0, 0], sizes = [1, 16, 16, 1], strides = [1, 1, 1, 1]} : vector<1x18x18x1xf32> to vector<1x16x16x1xf32>
    %10 = vector.shape_cast %9 : vector<1x16x16x1xf32> to vector<256x1xf32>
    %11 = vector.extract_strided_slice %0 {offsets = [0, 1, 1, 0], sizes = [1, 16, 16, 1], strides = [1, 1, 1, 1]} : vector<1x18x18x1xf32> to vector<1x16x16x1xf32>
    %12 = vector.shape_cast %11 : vector<1x16x16x1xf32> to vector<256x1xf32>
    %13 = vector.extract_strided_slice %0 {offsets = [0, 1, 2, 0], sizes = [1, 16, 16, 1], strides = [1, 1, 1, 1]} : vector<1x18x18x1xf32> to vector<1x16x16x1xf32>
    %14 = vector.shape_cast %13 : vector<1x16x16x1xf32> to vector<256x1xf32>
    %15 = vector.extract_strided_slice %0 {offsets = [0, 2, 0, 0], sizes = [1, 16, 16, 1], strides = [1, 1, 1, 1]} : vector<1x18x18x1xf32> to vector<1x16x16x1xf32>
    %16 = vector.shape_cast %15 : vector<1x16x16x1xf32> to vector<256x1xf32>
    %17 = vector.extract_strided_slice %0 {offsets = [0, 2, 1, 0], sizes = [1, 16, 16, 1], strides = [1, 1, 1, 1]} : vector<1x18x18x1xf32> to vector<1x16x16x1xf32>
    %18 = vector.shape_cast %17 : vector<1x16x16x1xf32> to vector<256x1xf32>
    %19 = vector.extract_strided_slice %0 {offsets = [0, 2, 2, 0], sizes = [1, 16, 16, 1], strides = [1, 1, 1, 1]} : vector<1x18x18x1xf32> to vector<1x16x16x1xf32>
    %20 = vector.shape_cast %19 : vector<1x16x16x1xf32> to vector<256x1xf32>
    %21 = tpu.concatenate %4, %6, %8, %10, %12, %14, %16, %18, %20 in 1 : vector<256x1xf32>, vector<256x1xf32>, vector<256x1xf32>, vector<256x1xf32>, vector<256x1xf32>, vector<256x1xf32>, vector<256x1xf32>, vector<256x1xf32>, vector<256x1xf32> -> vector<256x9xf32>
    %22 = arith.truncf %21 : vector<256x9xf32> to vector<256x9xbf16>
    %cst = arith.constant dense<0.000000e+00> : vector<256x8xf32>
    %23 = tpu.matmul %22, %1, %cst {dimension_numbers = #tpu.dot_dimension_numbers<[1], [0], [0], [1], [0, 0, 1, 1], [], []>} : vector<256x9xbf16>, vector<9x8xbf16>, vector<256x8xf32> -> vector<256x8xf32>
    %24 = vector.broadcast %2 : vector<1x8xf32> to vector<256x8xf32>
    %25 = arith.addf %23, %24 : vector<256x8xf32>
    %cst_7 = arith.constant 0.000000e+00 : f32
    %26 = vector.broadcast %cst_7 : f32 to vector<256x8xf32>
    %27 = arith.maximumf %25, %26 : vector<256x8xf32>
    %28 = vector.shape_cast %27 : vector<256x8xf32> to vector<128x2x8xf32>
    %29 = vector.extract_strided_slice %28 {offsets = [0, 0, 0], sizes = [128, 1, 8], strides = [1, 1, 1]} : vector<128x2x8xf32> to vector<128x1x8xf32>
    %30 = vector.shape_cast %29 : vector<128x1x8xf32> to vector<128x8xf32>
    %31 = vector.extract_strided_slice %28 {offsets = [0, 1, 0], sizes = [128, 1, 8], strides = [1, 1, 1]} : vector<128x2x8xf32> to vector<128x1x8xf32>
    %32 = vector.shape_cast %31 : vector<128x1x8xf32> to vector<128x8xf32>
    %33 = arith.maximumf %30, %32 : vector<128x8xf32>
    %34 = vector.shape_cast %33 : vector<128x8xf32> to vector<8x16x8xf32>
    %35 = vector.extract_strided_slice %34 {offsets = [0, 0, 0], sizes = [8, 8, 8], strides = [1, 1, 1]} : vector<8x16x8xf32> to vector<8x8x8xf32>
    %36 = vector.extract_strided_slice %34 {offsets = [0, 8, 0], sizes = [8, 8, 8], strides = [1, 1, 1]} : vector<8x16x8xf32> to vector<8x8x8xf32>
    %37 = arith.maximumf %35, %36 : vector<8x8x8xf32>
    %38 = vector.shape_cast %37 : vector<8x8x8xf32> to vector<64x8xf32>
    %39 = vector.shape_cast %38 : vector<64x8xf32> to vector<1x8x8x8xf32>
    %cst_8 = arith.constant 0.000000e+00 : f32
    %40 = vector.broadcast %cst_8 : f32 to vector<1x1x8x8xf32>
    %41 = tpu.concatenate %40, %39, %40 in 1 : vector<1x1x8x8xf32>, vector<1x8x8x8xf32>, vector<1x1x8x8xf32> -> vector<1x10x8x8xf32>
    %cst_9 = arith.constant 0.000000e+00 : f32
    %42 = vector.broadcast %cst_9 : f32 to vector<1x10x1x8xf32>
    %43 = tpu.concatenate %42, %41, %42 in 2 : vector<1x10x1x8xf32>, vector<1x10x8x8xf32>, vector<1x10x1x8xf32> -> vector<1x10x10x8xf32>
    %c0_10 = arith.constant 0 : index
    %c0_11 = arith.constant 0 : index
    %44 = vector.load %arg4[%c0_10, %c0_11] : memref<72x16xbf16, #tpu.memory_space<vmem>>, vector<72x16xbf16>
    %c0_12 = arith.constant 0 : index
    %c0_13 = arith.constant 0 : index
    %45 = vector.load %arg5[%c0_12, %c0_13] : memref<1x16xf32, #tpu.memory_space<vmem>>, vector<1x16xf32>
    %46 = vector.extract_strided_slice %43 {offsets = [0, 0, 0, 0], sizes = [1, 8, 8, 8], strides = [1, 1, 1, 1]} : vector<1x10x10x8xf32> to vector<1x8x8x8xf32>
    %47 = vector.shape_cast %46 : vector<1x8x8x8xf32> to vector<64x8xf32>
    %48 = vector.extract_strided_slice %43 {offsets = [0, 0, 1, 0], sizes = [1, 8, 8, 8], strides = [1, 1, 1, 1]} : vector<1x10x10x8xf32> to vector<1x8x8x8xf32>
    %49 = vector.shape_cast %48 : vector<1x8x8x8xf32> to vector<64x8xf32>
    %50 = vector.extract_strided_slice %43 {offsets = [0, 0, 2, 0], sizes = [1, 8, 8, 8], strides = [1, 1, 1, 1]} : vector<1x10x10x8xf32> to vector<1x8x8x8xf32>
    %51 = vector.shape_cast %50 : vector<1x8x8x8xf32> to vector<64x8xf32>
    %52 = vector.extract_strided_slice %43 {offsets = [0, 1, 0, 0], sizes = [1, 8, 8, 8], strides = [1, 1, 1, 1]} : vector<1x10x10x8xf32> to vector<1x8x8x8xf32>
    %53 = vector.shape_cast %52 : vector<1x8x8x8xf32> to vector<64x8xf32>
    %54 = vector.extract_strided_slice %43 {offsets = [0, 1, 1, 0], sizes = [1, 8, 8, 8], strides = [1, 1, 1, 1]} : vector<1x10x10x8xf32> to vector<1x8x8x8xf32>
    %55 = vector.shape_cast %54 : vector<1x8x8x8xf32> to vector<64x8xf32>
    %56 = vector.extract_strided_slice %43 {offsets = [0, 1, 2, 0], sizes = [1, 8, 8, 8], strides = [1, 1, 1, 1]} : vector<1x10x10x8xf32> to vector<1x8x8x8xf32>
    %57 = vector.shape_cast %56 : vector<1x8x8x8xf32> to vector<64x8xf32>
    %58 = vector.extract_strided_slice %43 {offsets = [0, 2, 0, 0], sizes = [1, 8, 8, 8], strides = [1, 1, 1, 1]} : vector<1x10x10x8xf32> to vector<1x8x8x8xf32>
    %59 = vector.shape_cast %58 : vector<1x8x8x8xf32> to vector<64x8xf32>
    %60 = vector.extract_strided_slice %43 {offsets = [0, 2, 1, 0], sizes = [1, 8, 8, 8], strides = [1, 1, 1, 1]} : vector<1x10x10x8xf32> to vector<1x8x8x8xf32>
    %61 = vector.shape_cast %60 : vector<1x8x8x8xf32> to vector<64x8xf32>
    %62 = vector.extract_strided_slice %43 {offsets = [0, 2, 2, 0], sizes = [1, 8, 8, 8], strides = [1, 1, 1, 1]} : vector<1x10x10x8xf32> to vector<1x8x8x8xf32>
    %63 = vector.shape_cast %62 : vector<1x8x8x8xf32> to vector<64x8xf32>
    %64 = tpu.concatenate %47, %49, %51, %53, %55, %57, %59, %61, %63 in 1 : vector<64x8xf32>, vector<64x8xf32>, vector<64x8xf32>, vector<64x8xf32>, vector<64x8xf32>, vector<64x8xf32>, vector<64x8xf32>, vector<64x8xf32>, vector<64x8xf32> -> vector<64x72xf32>
    %65 = arith.truncf %64 : vector<64x72xf32> to vector<64x72xbf16>
    %cst_14 = arith.constant dense<0.000000e+00> : vector<64x16xf32>
    %66 = tpu.matmul %65, %44, %cst_14 {dimension_numbers = #tpu.dot_dimension_numbers<[1], [0], [0], [1], [0, 0, 1, 1], [], []>} : vector<64x72xbf16>, vector<72x16xbf16>, vector<64x16xf32> -> vector<64x16xf32>
    %67 = vector.broadcast %45 : vector<1x16xf32> to vector<64x16xf32>
    %68 = arith.addf %66, %67 : vector<64x16xf32>
    %cst_15 = arith.constant 0.000000e+00 : f32
    %69 = vector.broadcast %cst_15 : f32 to vector<64x16xf32>
    %70 = arith.maximumf %68, %69 : vector<64x16xf32>
    %71 = vector.shape_cast %70 : vector<64x16xf32> to vector<32x2x16xf32>
    %72 = vector.extract_strided_slice %71 {offsets = [0, 0, 0], sizes = [32, 1, 16], strides = [1, 1, 1]} : vector<32x2x16xf32> to vector<32x1x16xf32>
    %73 = vector.shape_cast %72 : vector<32x1x16xf32> to vector<32x16xf32>
    %74 = vector.extract_strided_slice %71 {offsets = [0, 1, 0], sizes = [32, 1, 16], strides = [1, 1, 1]} : vector<32x2x16xf32> to vector<32x1x16xf32>
    %75 = vector.shape_cast %74 : vector<32x1x16xf32> to vector<32x16xf32>
    %76 = arith.maximumf %73, %75 : vector<32x16xf32>
    %77 = vector.shape_cast %76 : vector<32x16xf32> to vector<4x8x16xf32>
    %78 = vector.extract_strided_slice %77 {offsets = [0, 0, 0], sizes = [4, 4, 16], strides = [1, 1, 1]} : vector<4x8x16xf32> to vector<4x4x16xf32>
    %79 = vector.extract_strided_slice %77 {offsets = [0, 4, 0], sizes = [4, 4, 16], strides = [1, 1, 1]} : vector<4x8x16xf32> to vector<4x4x16xf32>
    %80 = arith.maximumf %78, %79 : vector<4x4x16xf32>
    %81 = vector.shape_cast %80 : vector<4x4x16xf32> to vector<16x16xf32>
    %c0_16 = arith.constant 0 : index
    %c0_17 = arith.constant 0 : index
    %82 = vector.load %arg6[%c0_16, %c0_17] : memref<16x16xf32, #tpu.memory_space<vmem>>, vector<16x16xf32>
    tpu.vector_store %arg6[%c0_16, %c0_17], %81 {strides = array<i32>} : memref<16x16xf32, #tpu.memory_space<vmem>>, vector<16x16xf32>,
    return
  }
  func.func @transform_0(%arg0: i32) -> (i32, i32, i32, i32) {
    %c0_i32 = arith.constant 0 : i32
    %c0_i32_0 = arith.constant 0 : i32
    %c0_i32_1 = arith.constant 0 : i32
    %c0_i32_2 = arith.constant 0 : i32
    return %arg0, %c0_i32, %c0_i32_0, %c0_i32_1 : i32, i32, i32, i32
  }
  func.func @transform_1(%arg0: i32) -> (i32, i32) {
    %c0_i32 = arith.constant 0 : i32
    %c0_i32_0 = arith.constant 0 : i32
    %c0_i32_1 = arith.constant 0 : i32
    return %c0_i32, %c0_i32_0 : i32, i32
  }
  func.func @transform_2(%arg0: i32) -> (i32, i32) {
    %c0_i32 = arith.constant 0 : i32
    %c0_i32_0 = arith.constant 0 : i32
    %c0_i32_1 = arith.constant 0 : i32
    return %c0_i32, %c0_i32_0 : i32, i32
  }
  func.func @transform_3(%arg0: i32) -> (i32, i32) {
    %c0_i32 = arith.constant 0 : i32
    %c0_i32_0 = arith.constant 0 : i32
    %c0_i32_1 = arith.constant 0 : i32
    return %c0_i32, %c0_i32_0 : i32, i32
  }
  func.func @transform_4(%arg0: i32) -> (i32, i32) {
    %c0_i32 = arith.constant 0 : i32
    %c0_i32_0 = arith.constant 0 : i32
    %c0_i32_1 = arith.constant 0 : i32
    return %c0_i32, %c0_i32_0 : i32, i32
  }
  func.func @transform_5(%arg0: i32) -> (i32, i32) {
    %c0_i32 = arith.constant 0 : i32
    %c0_i32_0 = arith.constant 0 : i32
    return %arg0, %c0_i32 : i32, i32
  }
}

</mosaic_0001>

<llo_original>
// kernel: tpu_custom_call.1
$region0: #{tpu_custom_call.1}
  #allocation0 [shape = 'u32[]', space=smem, size = 0x4, offset = 0x4, fixed_abs, tag = 'smem constant byte address 0x4 - core index']
  #allocation1 [shape = 'u32[144,128]{1,0:T(1,128)}', space=vmem, size = 0x12000, scoped, tag = 'internal scratch']
  %s0 = inlined_call_operand.vmem [shape: f32[2,18,18,1], index: 0, kind: input, shape index: {}]
  %s1 = inlined_call_operand.vmem [shape: bf16[9,8], index: 1, kind: input, shape index: {}]
  %s2 = inlined_call_operand.vmem [shape: f32[1,8], index: 2, kind: input, shape index: {}]
  %s3 = inlined_call_operand.vmem [shape: bf16[72,16], index: 3, kind: input, shape index: {}]
  %s4 = inlined_call_operand.vmem [shape: f32[1,16], index: 4, kind: input, shape index: {}]
  %s5 = inlined_call_operand.vmem [shape: f32[32,16], index: 5, kind: output, shape index: {}]
  %s6 = sld [smem:[#allocation0]]
  $region53: #{tpu_custom_call.1} parent=0
    _
  %s8 = ssub.s32 1, %s6
  %s9 = scalar_select 0, %s8, %s6
  loop: start=0, step=1, limit=4
  $region2: #{tpu_custom_call.1} parent=0 // loop_pre_header
    _
  $region3: #{tpu_custom_call.1} parent=0 // loop_header
    %s11 = sphi 0, %s15
    %p12 = scmp.ge.s32.totalorder %s11, 4
    %s21 = sphi 0, %s23
    %s24 = sphi 0, %s21
    %s25 = sphi 0, %s24
    %s41 = sphi 0, %s25
    %s45 = sphi 0, %s45
    %s47 = sphi 0, %s45
    %s48 = sphi 0, %s47
    %s62 = sphi 0, %s48
    %s66 = sphi 0, %s66
    %s68 = sphi 0, %s66
    %s69 = sphi 0, %s68
    %s83 = sphi 0, %s69
    %s87 = sphi 0, %s87
    %s89 = sphi 0, %s87
    %s90 = sphi 0, %s89
    %s104 = sphi 0, %s90
    %s108 = sphi 0, %s108
    %s110 = sphi 0, %s108
    %s111 = sphi 0, %s110
    %s125 = sphi 0, %s111
    %s131 = sphi 0, %s133
    %s134 = sphi 0, %s131
    %s135 = sphi 0, %s134
    %s151 = sphi 0, %s135
  $region4: #{tpu_custom_call.1} parent=0 // loop_header_branch
    %14 = sbr.rel (%p12) target = $region8
  $region5: #{tpu_custom_call.1} parent=0 // loop_body
    %s16 = ssub.s32 %s11, 1
    %s17 = ssub.s32 %s11, 2
    %s18 = sadd.s32 %s11, 1
    %s19 = ssub.s32 %s11, %s18
    %p20 = scmp.eq.s32.totalorder %s19, 0
    %s22 = sadd.s32 %s21, 1
    %s23 = scalar_select %p20, %s21, %s22
    %p26 = pneg %p20
    %p27 = scmp.eq.s32.totalorder %s11, 1
    %p28 = por %p26, %p27
    %p29 = scmp.ne.s32.totalorder %s21, %s24
    %p30 = scmp.eq.s32.totalorder %s11, 0
    %p31 = por %p29, %p30
    %p32 = scmp.ne.s32.totalorder %s21, %s24
    %p33 = scmp.eq.s32.totalorder %s16, 1
    %p34 = por %p32, %p33
    %p35 = scmp.ne.s32.totalorder %s24, %s25
    %p36 = scmp.eq.s32.totalorder %s16, 0
    %p37 = por %p35, %p36
    %p38 = scmp.ne.s32.totalorder %s24, %s25
    %p39 = scmp.eq.s32.totalorder %s17, 1
    %p40 = por %p38, %p39
    %p42 = scmp.ne.s32.totalorder %s25, %s41
    %p43 = scmp.eq.s32.totalorder %s17, 0
    %p44 = por %p42, %p43
    %s46 = sadd.s32 %s45, 1
    %p49 = scmp.eq.s32.totalorder %s11, 1
    %p50 = scmp.ne.s32.totalorder %s45, %s47
    %p51 = scmp.eq.s32.totalorder %s11, 0
    %p52 = por %p50, %p51
    %p53 = scmp.ne.s32.totalorder %s45, %s47
    %p54 = scmp.eq.s32.totalorder %s16, 1
    %p55 = por %p53, %p54
    %p56 = scmp.ne.s32.totalorder %s47, %s48
    %p57 = scmp.eq.s32.totalorder %s16, 0
    %p58 = por %p56, %p57
    %p59 = scmp.ne.s32.totalorder %s47, %s48
    %p60 = scmp.eq.s32.totalorder %s17, 1
    %p61 = por %p59, %p60
    %p63 = scmp.ne.s32.totalorder %s48, %s62
    %p64 = scmp.eq.s32.totalorder %s17, 0
    %p65 = por %p63, %p64
    %s67 = sadd.s32 %s66, 1
    %p70 = scmp.eq.s32.totalorder %s11, 1
    %p71 = scmp.ne.s32.totalorder %s66, %s68
    %p72 = scmp.eq.s32.totalorder %s11, 0
    %p73 = por %p71, %p72
    %p74 = scmp.ne.s32.totalorder %s66, %s68
    %p75 = scmp.eq.s32.totalorder %s16, 1
    %p76 = por %p74, %p75
    %p77 = scmp.ne.s32.totalorder %s68, %s69
    %p78 = scmp.eq.s32.totalorder %s16, 0
    %p79 = por %p77, %p78
    %p80 = scmp.ne.s32.totalorder %s68, %s69
    %p81 = scmp.eq.s32.totalorder %s17, 1
    %p82 = por %p80, %p81
    %p84 = scmp.ne.s32.totalorder %s69, %s83
    %p85 = scmp.eq.s32.totalorder %s17, 0
    %p86 = por %p84, %p85
    %s88 = sadd.s32 %s87, 1
    %p91 = scmp.eq.s32.totalorder %s11, 1
    %p92 = scmp.ne.s32.totalorder %s87, %s89
    %p93 = scmp.eq.s32.totalorder %s11, 0
    %p94 = por %p92, %p93
    %p95 = scmp.ne.s32.totalorder %s87, %s89
    %p96 = scmp.eq.s32.totalorder %s16, 1
    %p97 = por %p95, %p96
    %p98 = scmp.ne.s32.totalorder %s89, %s90
    %p99 = scmp.eq.s32.totalorder %s16, 0
    %p100 = por %p98, %p99
    %p101 = scmp.ne.s32.totalorder %s89, %s90
    %p102 = scmp.eq.s32.totalorder %s17, 1
    %p103 = por %p101, %p102
    %p105 = scmp.ne.s32.totalorder %s90, %s104
    %p106 = scmp.eq.s32.totalorder %s17, 0
    %p107 = por %p105, %p106
    %s109 = sadd.s32 %s108, 1
    %p112 = scmp.eq.s32.totalorder %s11, 1
    %p113 = scmp.ne.s32.totalorder %s108, %s110
    %p114 = scmp.eq.s32.totalorder %s11, 0
    %p115 = por %p113, %p114
    %p116 = scmp.ne.s32.totalorder %s108, %s110
    %p117 = scmp.eq.s32.totalorder %s16, 1
    %p118 = por %p116, %p117
    %p119 = scmp.ne.s32.totalorder %s110, %s111
    %p120 = scmp.eq.s32.totalorder %s16, 0
    %p121 = por %p119, %p120
    %p122 = scmp.ne.s32.totalorder %s110, %s111
    %p123 = scmp.eq.s32.totalorder %s17, 1
    %p124 = por %p122, %p123
    %p126 = scmp.ne.s32.totalorder %s111, %s125
    %p127 = scmp.eq.s32.totalorder %s17, 0
    %p128 = por %p126, %p127
    %s129 = ssub.s32 %s11, %s18
    %p130 = scmp.eq.s32.totalorder %s129, 0
    %s132 = sadd.s32 %s131, 1
    %s133 = scalar_select %p130, %s131, %s132
    %p136 = pneg %p130
    %p137 = scmp.eq.s32.totalorder %s11, 1
    %p138 = por %p136, %p137
    %p139 = scmp.ne.s32.totalorder %s131, %s134
    %p140 = scmp.eq.s32.totalorder %s11, 0
    %p141 = por %p139, %p140
    %p142 = scmp.ne.s32.totalorder %s131, %s134
    %p143 = scmp.eq.s32.totalorder %s16, 1
    %p144 = por %p142, %p143
    %p145 = scmp.ne.s32.totalorder %s134, %s135
    %p146 = scmp.eq.s32.totalorder %s16, 0
    %p147 = por %p145, %p146
    %p148 = scmp.ne.s32.totalorder %s134, %s135
    %p149 = scmp.eq.s32.totalorder %s17, 1
    %p150 = por %p148, %p149
    %p152 = scmp.ne.s32.totalorder %s135, %s151
    %p153 = scmp.eq.s32.totalorder %s17, 0
    %p154 = por %p152, %p153
    %p155 = scmp.le.s32.totalorder 1, %s11
    %p156 = scmp.lt.s32.totalorder %s11, 3
    %p157 = pnand %p155, %p156
    %p158 = pneg %p157
    // Predicated region
    $region9: #{tpu_custom_call.1} parent=5 // pred_check
      _
    $region10: #{tpu_custom_call.1} parent=5 // pred_check_branch
      %160 = sbr.rel (%p157) target = $region12
    $region11: #{tpu_custom_call.1} parent=5 // pred_region
      %s161 = ssub.s32 %s11, 1
      // Predicated region
      $region13: #{tpu_custom_call.1} parent=11 // pred_check
        %p162 = pneg %p58
      $region14: #{tpu_custom_call.1} parent=11 // pred_check_branch
        %164 = sbr.rel (%p162) target = $region16
      $region15: #{tpu_custom_call.1} parent=11 // pred_region
        _
      $region16: #{tpu_custom_call.1} parent=11 // pred_fallthru
        _
      // Predicated region
      $region17: #{tpu_custom_call.1} parent=11 // pred_check
        %p165 = pneg %p79
      $region18: #{tpu_custom_call.1} parent=11 // pred_check_branch
        %167 = sbr.rel (%p165) target = $region20
      $region19: #{tpu_custom_call.1} parent=11 // pred_region
        _
      $region20: #{tpu_custom_call.1} parent=11 // pred_fallthru
        _
      // Predicated region
      $region21: #{tpu_custom_call.1} parent=11 // pred_check
        %p168 = pneg %p100
      $region22: #{tpu_custom_call.1} parent=11 // pred_check_branch
        %170 = sbr.rel (%p168) target = $region24
      $region23: #{tpu_custom_call.1} parent=11 // pred_region
        _
      $region24: #{tpu_custom_call.1} parent=11 // pred_fallthru
        _
      // Predicated region
      $region25: #{tpu_custom_call.1} parent=11 // pred_check
        %p171 = pneg %p121
      $region26: #{tpu_custom_call.1} parent=11 // pred_check_branch
        %173 = sbr.rel (%p171) target = $region28
      $region27: #{tpu_custom_call.1} parent=11 // pred_region
        _
      $region28: #{tpu_custom_call.1} parent=11 // pred_fallthru
        _
    $region12: #{tpu_custom_call.1} parent=5 // pred_fallthru
      _
    %p174 = scmp.lt.s32.totalorder %s11, 2
    // Predicated region
    $region29: #{tpu_custom_call.1} parent=5 // pred_check
      %p175 = pneg %p174
    $region30: #{tpu_custom_call.1} parent=5 // pred_check_branch
      %177 = sbr.rel (%p175) target = $region32
    $region31: #{tpu_custom_call.1} parent=5 // pred_region
      // Predicated region
      $region33: #{tpu_custom_call.1} parent=31 // pred_check
        %p178 = pneg %p31
      $region34: #{tpu_custom_call.1} parent=31 // pred_check_branch
        %180 = sbr.rel (%p178) target = $region36
      $region35: #{tpu_custom_call.1} parent=31 // pred_region
        %p181 = scmp.lt.s32.totalorder %s11, 1
        %s182 = scalar_select %p181, %s11, 1
        %s183 = smul.addr %s182, 54
        %s184 = smul.addr %s183, 8
        %s185 = scalar_lea.vmem %s0, %s184
      $region36: #{tpu_custom_call.1} parent=31 // pred_fallthru
        _
    $region32: #{tpu_custom_call.1} parent=5 // pred_fallthru
      _
    %p186 = scmp.le.s32.totalorder 1, %s11
    %p187 = scmp.lt.s32.totalorder %s11, 3
    %p188 = pnand %p186, %p187
    %p189 = pneg %p188
    // Predicated region
    $region37: #{tpu_custom_call.1} parent=5 // pred_check
      _
    $region38: #{tpu_custom_call.1} parent=5 // pred_check_branch
      %191 = sbr.rel (%p188) target = $region40
    $region39: #{tpu_custom_call.1} parent=5 // pred_region
      %s192 = ssub.s32 %s11, 1
      %p193 = scmp.lt.s32.totalorder %s16, 1
      %s194 = scalar_select %p193, %s16, 1
      %s195 = smul.addr %s194, 54
      %s196 = smul.addr %s195, 8
      %s197 = scalar_lea.vmem %s0, %s196
      %p198 = pneg %p37
      %p199 = pneg %p34
      %p200 = pneg %p58
      %p201 = pneg %p55
      %p202 = pneg %p79
      %p203 = pneg %p76
      %p204 = pneg %p100
      %p205 = pneg %p97
      %p206 = pneg %p121
      %p207 = pneg %p118
      %p208 = pneg %p147
      %p209 = pneg %p144
      %s210 = smul.u32 2, %s16
      %p211 = scmp.lt.s32.totalorder %s210, 3
      %s212 = scalar_select %p211, %s210, 3
      %s213 = smul.addr %s212, 8
      %s214 = scalar_lea.vmem %s5, %s213
      %p215 = scmp.lt.s32.totalorder %s16, 1
      %s216 = scalar_select %p215, %s16, 1
      %s217 = smul.addr %s216, 54
      %s218 = smul.addr %s217, 8
      %s219 = scalar_lea.vmem %s0, %s218
      %s220 = smul.u32 2, %s16
      %p221 = scmp.lt.s32.totalorder %s220, 3
      %s222 = scalar_select %p221, %s220, 3
      %s223 = smul.addr %s222, 8
      %s224 = scalar_lea.vmem %s5, %s223
      %s225 = smul.u32 2, %s16
      %v227 = vld [vmem:[%s219] sm:$0xff]
      %v228 = vld [vmem:[%s219 + $0x8] sm:$0xff]
      %v229 = vld [vmem:[%s219 + $0x10] sm:$0x3]
      %v230 = vld [vmem:[%s219 + $0x18] sm:$0xff]
      %v231 = vld [vmem:[%s219 + $0x20] sm:$0xff]
      %v232 = vld [vmem:[%s219 + $0x28] sm:$0x3]
      %v233 = vld [vmem:[%s219 + $0x30] sm:$0xff]
      %v234 = vld [vmem:[%s219 + $0x38] sm:$0xff]
      %v235 = vld [vmem:[%s219 + $0x40] sm:$0x3]
      %v236 = vld [vmem:[%s219 + $0x48] sm:$0xff]
      %v237 = vld [vmem:[%s219 + $0x50] sm:$0xff]
      %v238 = vld [vmem:[%s219 + $0x58] sm:$0x3]
      %v239 = vld [vmem:[%s219 + $0x60] sm:$0xff]
      %v240 = vld [vmem:[%s219 + $0x68] sm:$0xff]
      %v241 = vld [vmem:[%s219 + $0x70] sm:$0x3]
      %v242 = vld [vmem:[%s219 + $0x78] sm:$0xff]
      %v243 = vld [vmem:[%s219 + $0x80] sm:$0xff]
      %v244 = vld [vmem:[%s219 + $0x88] sm:$0x3]
      %v245 = vld [vmem:[%s219 + $0x90] sm:$0xff]
      %v246 = vld [vmem:[%s219 + $0x98] sm:$0xff]
      %v247 = vld [vmem:[%s219 + $0xa0] sm:$0x3]
      %v248 = vld [vmem:[%s219 + $0xa8] sm:$0xff]
      %v249 = vld [vmem:[%s219 + $0xb0] sm:$0xff]
      %v250 = vld [vmem:[%s219 + $0xb8] sm:$0x3]
      %v251 = vld [vmem:[%s219 + $0xc0] sm:$0xff]
      %v252 = vld [vmem:[%s219 + $0xc8] sm:$0xff]
      %v253 = vld [vmem:[%s219 + $0xd0] sm:$0x3]
      %v254 = vld [vmem:[%s219 + $0xd8] sm:$0xff]
      %v255 = vld [vmem:[%s219 + $0xe0] sm:$0xff]
      %v256 = vld [vmem:[%s219 + $0xe8] sm:$0x3]
      %v257 = vld [vmem:[%s219 + $0xf0] sm:$0xff]
      %v258 = vld [vmem:[%s219 + $0xf8] sm:$0xff]
      %v259 = vld [vmem:[%s219 + $0x100] sm:$0x3]
      %v260 = vld [vmem:[%s219 + $0x108] sm:$0xff]
      %v261 = vld [vmem:[%s219 + $0x110] sm:$0xff]
      %v262 = vld [vmem:[%s219 + $0x118] sm:$0x3]
      %v263 = vld [vmem:[%s219 + $0x120] sm:$0xff]
      %v264 = vld [vmem:[%s219 + $0x128] sm:$0xff]
      %v265 = vld [vmem:[%s219 + $0x130] sm:$0x3]
      %v266 = vld [vmem:[%s219 + $0x138] sm:$0xff]
      %v267 = vld [vmem:[%s219 + $0x140] sm:$0xff]
      %v268 = vld [vmem:[%s219 + $0x148] sm:$0x3]
      %v269 = vld [vmem:[%s219 + $0x150] sm:$0xff]
      %v270 = vld [vmem:[%s219 + $0x158] sm:$0xff]
      %v271 = vld [vmem:[%s219 + $0x160] sm:$0x3]
      %v272 = vld [vmem:[%s219 + $0x168] sm:$0xff]
      %v273 = vld [vmem:[%s219 + $0x170] sm:$0xff]
      %v274 = vld [vmem:[%s219 + $0x178] sm:$0x3]
      %v275 = vld [vmem:[%s219 + $0x180] sm:$0xff]
      %v276 = vld [vmem:[%s219 + $0x188] sm:$0xff]
      %v277 = vld [vmem:[%s219 + $0x190] sm:$0x3]
      %v278 = vld [vmem:[%s219 + $0x198] sm:$0xff]
      %v279 = vld [vmem:[%s219 + $0x1a0] sm:$0xff]
      %v280 = vld [vmem:[%s219 + $0x1a8] sm:$0x3]
      %v281 = vld [vmem:[%s1] sm:$0xf]
      %v282 = vld [vmem:[%s1 + $0x4] sm:$0x1]
      %v283 = vld [vmem:[%s2] sm:$0x1]
      %vm332 = vcmask 1046528
      %v333 = vrot.slane %v227, 1
      %v334 = vrot.slane %v228, 1
      %v335 = vsel %vm332, %v333, %v334
      %v336 = vrot.slane %v229, 1
      %v337 = vsel %vm332, %v334, %v336
      %v338 = vrot.slane %v230, 1
      %v339 = vrot.slane %v231, 1
      %v340 = vsel %vm332, %v338, %v339
      %v341 = vrot.slane %v232, 1
      %v342 = vsel %vm332, %v339, %v341
      %v343 = vrot.slane %v233, 1
      %v344 = vrot.slane %v234, 1
      %v345 = vsel %vm332, %v343, %v344
      %v346 = vrot.slane %v235, 1
      %v347 = vsel %vm332, %v344, %v346
      %v348 = vrot.slane %v236, 1
      %v349 = vrot.slane %v237, 1
      %v350 = vsel %vm332, %v348, %v349
      %v351 = vrot.slane %v238, 1
      %v352 = vsel %vm332, %v349, %v351
      %v353 = vrot.slane %v239, 1
      %v354 = vrot.slane %v240, 1
      %v355 = vsel %vm332, %v353, %v354
      %v356 = vrot.slane %v241, 1
      %v357 = vsel %vm332, %v354, %v356
      %v358 = vrot.slane %v242, 1
      %v359 = vrot.slane %v243, 1
      %v360 = vsel %vm332, %v358, %v359
      %v361 = vrot.slane %v244, 1
      %v362 = vsel %vm332, %v359, %v361
      %v363 = vrot.slane %v245, 1
      %v364 = vrot.slane %v246, 1
      %v365 = vsel %vm332, %v363, %v364
      %v366 = vrot.slane %v247, 1
      %v367 = vsel %vm332, %v364, %v366
      %v368 = vrot.slane %v248, 1
      %v369 = vrot.slane %v249, 1
      %v370 = vsel %vm332, %v368, %v369
      %v371 = vrot.slane %v250, 1
      %v372 = vsel %vm332, %v369, %v371
      %v373 = vrot.slane %v251, 1
      %v374 = vrot.slane %v252, 1
      %v375 = vsel %vm332, %v373, %v374
      %v376 = vrot.slane %v253, 1
      %v377 = vsel %vm332, %v374, %v376
      %v378 = vrot.slane %v254, 1
      %v379 = vrot.slane %v255, 1
      %v380 = vsel %vm332, %v378, %v379
      %v381 = vrot.slane %v256, 1
      %v382 = vsel %vm332, %v379, %v381
      %v383 = vrot.slane %v257, 1
      %v384 = vrot.slane %v258, 1
      %v385 = vsel %vm332, %v383, %v384
      %v386 = vrot.slane %v259, 1
      %v387 = vsel %vm332, %v384, %v386
      %v388 = vrot.slane %v260, 1
      %v389 = vrot.slane %v261, 1
      %v390 = vsel %vm332, %v388, %v389
      %v391 = vrot.slane %v262, 1
      %v392 = vsel %vm332, %v389, %v391
      %v393 = vrot.slane %v263, 1
      %v394 = vrot.slane %v264, 1
      %v395 = vsel %vm332, %v393, %v394
      %v396 = vrot.slane %v265, 1
      %v397 = vsel %vm332, %v394, %v396
      %v398 = vrot.slane %v266, 1
      %v399 = vrot.slane %v267, 1
      %v400 = vsel %vm332, %v398, %v399
      %v401 = vrot.slane %v268, 1
      %v402 = vsel %vm332, %v399, %v401
      %v403 = vrot.slane %v269, 1
      %v404 = vrot.slane %v270, 1
      %v405 = vsel %vm332, %v403, %v404
      %v406 = vrot.slane %v271, 1
      %v407 = vsel %vm332, %v404, %v406
      %v408 = vrot.slane %v272, 1
      %v409 = vrot.slane %v273, 1
      %v410 = vsel %vm332, %v408, %v409
      %v411 = vrot.slane %v274, 1
      %v412 = vsel %vm332, %v409, %v411
      %vm413 = vcmask 1045504
      %v414 = vrot.slane %v227, 2
      %v415 = vrot.slane %v228, 2
      %v416 = vsel %vm413, %v414, %v415
      %v417 = vrot.slane %v229, 2
      %v418 = vsel %vm413, %v415, %v417
      %v419 = vrot.slane %v230, 2
      %v420 = vrot.slane %v231, 2
      %v421 = vsel %vm413, %v419, %v420
      %v422 = vrot.slane %v232, 2
      %v423 = vsel %vm413, %v420, %v422
      %v424 = vrot.slane %v233, 2
      %v425 = vrot.slane %v234, 2
      %v426 = vsel %vm413, %v424, %v425
      %v427 = vrot.slane %v235, 2
      %v428 = vsel %vm413, %v425, %v427
      %v429 = vrot.slane %v236, 2
      %v430 = vrot.slane %v237, 2
      %v431 = vsel %vm413, %v429, %v430
      %v432 = vrot.slane %v238, 2
      %v433 = vsel %vm413, %v430, %v432
      %v434 = vrot.slane %v239, 2
      %v435 = vrot.slane %v240, 2
      %v436 = vsel %vm413, %v434, %v435
      %v437 = vrot.slane %v241, 2
      %v438 = vsel %vm413, %v435, %v437
      %v439 = vrot.slane %v242, 2
      %v440 = vrot.slane %v243, 2
      %v441 = vsel %vm413, %v439, %v440
      %v442 = vrot.slane %v244, 2
      %v443 = vsel %vm413, %v440, %v442
      %v444 = vrot.slane %v245, 2
      %v445 = vrot.slane %v246, 2
      %v446 = vsel %vm413, %v444, %v445
      %v447 = vrot.slane %v247, 2
      %v448 = vsel %vm413, %v445, %v447
      %v449 = vrot.slane %v248, 2
      %v450 = vrot.slane %v249, 2
      %v451 = vsel %vm413, %v449, %v450
      %v452 = vrot.slane %v250, 2
      %v453 = vsel %vm413, %v450, %v452
      %v454 = vrot.slane %v251, 2
      %v455 = vrot.slane %v252, 2
      %v456 = vsel %vm413, %v454, %v455
      %v457 = vrot.slane %v253, 2
      %v458 = vsel %vm413, %v455, %v457
      %v459 = vrot.slane %v254, 2
      %v460 = vrot.slane %v255, 2
      %v461 = vsel %vm413, %v459, %v460
      %v462 = vrot.slane %v256, 2
      %v463 = vsel %vm413, %v460, %v462
      %v464 = vrot.slane %v257, 2
      %v465 = vrot.slane %v258, 2
      %v466 = vsel %vm413, %v464, %v465
      %v467 = vrot.slane %v259, 2
      %v468 = vsel %vm413, %v465, %v467
      %v469 = vrot.slane %v260, 2
      %v470 = vrot.slane %v261, 2
      %v471 = vsel %vm413, %v469, %v470
      %v472 = vrot.slane %v262, 2
      %v473 = vsel %vm413, %v470, %v472
      %v474 = vrot.slane %v263, 2
      %v475 = vrot.slane %v264, 2
      %v476 = vsel %vm413, %v474, %v475
      %v477 = vrot.slane %v265, 2
      %v478 = vsel %vm413, %v475, %v477
      %v479 = vrot.slane %v266, 2
      %v480 = vrot.slane %v267, 2
      %v481 = vsel %vm413, %v479, %v480
      %v482 = vrot.slane %v268, 2
      %v483 = vsel %vm413, %v480, %v482
      %v484 = vrot.slane %v269, 2
      %v485 = vrot.slane %v270, 2
      %v486 = vsel %vm413, %v484, %v485
      %v487 = vrot.slane %v271, 2
      %v488 = vsel %vm413, %v485, %v487
      %v489 = vrot.slane %v272, 2
      %v490 = vrot.slane %v273, 2
      %v491 = vsel %vm413, %v489, %v490
      %v492 = vrot.slane %v274, 2
      %v493 = vsel %vm413, %v490, %v492
      %v497 = vrot.slane %v275, 1
      %v498 = vrot.slane %v276, 1
      %v499 = vsel %vm332, %v497, %v498
      %v500 = vrot.slane %v277, 1
      %v501 = vsel %vm332, %v498, %v500
      %v502 = vrot.slane %v275, 2
      %v503 = vrot.slane %v276, 2
      %v504 = vsel %vm413, %v502, %v503
      %v505 = vrot.slane %v277, 2
      %v506 = vsel %vm413, %v503, %v505
      %v510 = vrot.slane %v278, 1
      %v511 = vrot.slane %v279, 1
      %v512 = vsel %vm332, %v510, %v511
      %v513 = vrot.slane %v280, 1
      %v514 = vsel %vm332, %v511, %v513
      %v515 = vrot.slane %v278, 2
      %v516 = vrot.slane %v279, 2
      %v517 = vsel %vm413, %v515, %v516
      %v518 = vrot.slane %v280, 2
      %v519 = vsel %vm413, %v516, %v518
      %520 = vrot.lane.b32.xlu0 %v335, 1
      %v521 = vpop.permute.xlu0 %520
      %522 = vrot.lane.b32.xlu0 %v337, 1
      %v523 = vpop.permute.xlu0 %522
      %524 = vrot.lane.b32.xlu0 %v340, 1
      %v525 = vpop.permute.xlu0 %524
      %526 = vrot.lane.b32.xlu0 %v342, 1
      %v527 = vpop.permute.xlu0 %526
      %528 = vrot.lane.b32.xlu0 %v345, 1
      %v529 = vpop.permute.xlu0 %528
      %530 = vrot.lane.b32.xlu0 %v347, 1
      %v531 = vpop.permute.xlu0 %530
      %532 = vrot.lane.b32.xlu0 %v350, 1
      %v533 = vpop.permute.xlu0 %532
      %534 = vrot.lane.b32.xlu0 %v352, 1
      %v535 = vpop.permute.xlu0 %534
      %536 = vrot.lane.b32.xlu0 %v355, 1
      %v537 = vpop.permute.xlu0 %536
      %538 = vrot.lane.b32.xlu0 %v357, 1
      %v539 = vpop.permute.xlu0 %538
      %540 = vrot.lane.b32.xlu0 %v360, 1
      %v541 = vpop.permute.xlu0 %540
      %542 = vrot.lane.b32.xlu0 %v362, 1
      %v543 = vpop.permute.xlu0 %542
      %544 = vrot.lane.b32.xlu0 %v365, 1
      %v545 = vpop.permute.xlu0 %544
      %546 = vrot.lane.b32.xlu0 %v367, 1
      %v547 = vpop.permute.xlu0 %546
      %548 = vrot.lane.b32.xlu0 %v370, 1
      %v549 = vpop.permute.xlu0 %548
      %550 = vrot.lane.b32.xlu0 %v372, 1
      %v551 = vpop.permute.xlu0 %550
      %552 = vrot.lane.b32.xlu0 %v375, 1
      %v553 = vpop.permute.xlu0 %552
      %554 = vrot.lane.b32.xlu0 %v377, 1
      %v555 = vpop.permute.xlu0 %554
      %556 = vrot.lane.b32.xlu0 %v380, 1
      %v557 = vpop.permute.xlu0 %556
      %558 = vrot.lane.b32.xlu0 %v382, 1
      %v559 = vpop.permute.xlu0 %558
      %560 = vrot.lane.b32.xlu0 %v385, 1
      %v561 = vpop.permute.xlu0 %560
      %562 = vrot.lane.b32.xlu0 %v387, 1
      %v563 = vpop.permute.xlu0 %562
      %564 = vrot.lane.b32.xlu0 %v390, 1
      %v565 = vpop.permute.xlu0 %564
      %566 = vrot.lane.b32.xlu0 %v392, 1
      %v567 = vpop.permute.xlu0 %566
      %568 = vrot.lane.b32.xlu0 %v395, 1
      %v569 = vpop.permute.xlu0 %568
      %570 = vrot.lane.b32.xlu0 %v397, 1
      %v571 = vpop.permute.xlu0 %570
      %572 = vrot.lane.b32.xlu0 %v400, 1
      %v573 = vpop.permute.xlu0 %572
      %574 = vrot.lane.b32.xlu0 %v402, 1
      %v575 = vpop.permute.xlu0 %574
      %576 = vrot.lane.b32.xlu0 %v405, 1
      %v577 = vpop.permute.xlu0 %576
      %578 = vrot.lane.b32.xlu0 %v407, 1
      %v579 = vpop.permute.xlu0 %578
      %580 = vrot.lane.b32.xlu0 %v410, 1
      %v581 = vpop.permute.xlu0 %580
      %582 = vrot.lane.b32.xlu0 %v412, 1
      %v583 = vpop.permute.xlu0 %582
      %616 = vrot.lane.b32.xlu0 %v416, 2
      %v617 = vpop.permute.xlu0 %616
      %618 = vrot.lane.b32.xlu0 %v418, 2
      %v619 = vpop.permute.xlu0 %618
      %620 = vrot.lane.b32.xlu0 %v421, 2
      %v621 = vpop.permute.xlu0 %620
      %622 = vrot.lane.b32.xlu0 %v423, 2
      %v623 = vpop.permute.xlu0 %622
      %624 = vrot.lane.b32.xlu0 %v426, 2
      %v625 = vpop.permute.xlu0 %624
      %626 = vrot.lane.b32.xlu0 %v428, 2
      %v627 = vpop.permute.xlu0 %626
      %628 = vrot.lane.b32.xlu0 %v431, 2
      %v629 = vpop.permute.xlu0 %628
      %630 = vrot.lane.b32.xlu0 %v433, 2
      %v631 = vpop.permute.xlu0 %630
      %632 = vrot.lane.b32.xlu0 %v436, 2
      %v633 = vpop.permute.xlu0 %632
      %634 = vrot.lane.b32.xlu0 %v438, 2
      %v635 = vpop.permute.xlu0 %634
      %636 = vrot.lane.b32.xlu0 %v441, 2
      %v637 = vpop.permute.xlu0 %636
      %638 = vrot.lane.b32.xlu0 %v443, 2
      %v639 = vpop.permute.xlu0 %638
      %640 = vrot.lane.b32.xlu0 %v446, 2
      %v641 = vpop.permute.xlu0 %640
      %642 = vrot.lane.b32.xlu0 %v448, 2
      %v643 = vpop.permute.xlu0 %642
      %644 = vrot.lane.b32.xlu0 %v451, 2
      %v645 = vpop.permute.xlu0 %644
      %646 = vrot.lane.b32.xlu0 %v453, 2
      %v647 = vpop.permute.xlu0 %646
      %648 = vrot.lane.b32.xlu0 %v456, 2
      %v649 = vpop.permute.xlu0 %648
      %650 = vrot.lane.b32.xlu0 %v458, 2
      %v651 = vpop.permute.xlu0 %650
      %652 = vrot.lane.b32.xlu0 %v461, 2
      %v653 = vpop.permute.xlu0 %652
      %654 = vrot.lane.b32.xlu0 %v463, 2
      %v655 = vpop.permute.xlu0 %654
      %656 = vrot.lane.b32.xlu0 %v466, 2
      %v657 = vpop.permute.xlu0 %656
      %658 = vrot.lane.b32.xlu0 %v468, 2
      %v659 = vpop.permute.xlu0 %658
      %660 = vrot.lane.b32.xlu0 %v471, 2
      %v661 = vpop.permute.xlu0 %660
      %662 = vrot.lane.b32.xlu0 %v473, 2
      %v663 = vpop.permute.xlu0 %662
      %664 = vrot.lane.b32.xlu0 %v476, 2
      %v665 = vpop.permute.xlu0 %664
      %666 = vrot.lane.b32.xlu0 %v478, 2
      %v667 = vpop.permute.xlu0 %666
      %668 = vrot.lane.b32.xlu0 %v481, 2
      %v669 = vpop.permute.xlu0 %668
      %670 = vrot.lane.b32.xlu0 %v483, 2
      %v671 = vpop.permute.xlu0 %670
      %672 = vrot.lane.b32.xlu0 %v486, 2
      %v673 = vpop.permute.xlu0 %672
      %674 = vrot.lane.b32.xlu0 %v488, 2
      %v675 = vpop.permute.xlu0 %674
      %676 = vrot.lane.b32.xlu0 %v491, 2
      %v677 = vpop.permute.xlu0 %676
      %678 = vrot.lane.b32.xlu0 %v493, 2
      %v679 = vpop.permute.xlu0 %678
      %712 = vrot.lane.b32.xlu0 %v230, 3
      %v713 = vpop.permute.xlu0 %712
      %714 = vrot.lane.b32.xlu0 %v231, 3
      %v715 = vpop.permute.xlu0 %714
      %716 = vrot.lane.b32.xlu0 %v233, 3
      %v717 = vpop.permute.xlu0 %716
      %718 = vrot.lane.b32.xlu0 %v234, 3
      %v719 = vpop.permute.xlu0 %718
      %720 = vrot.lane.b32.xlu0 %v236, 3
      %v721 = vpop.permute.xlu0 %720
      %722 = vrot.lane.b32.xlu0 %v237, 3
      %v723 = vpop.permute.xlu0 %722
      %724 = vrot.lane.b32.xlu0 %v239, 3
      %v725 = vpop.permute.xlu0 %724
      %726 = vrot.lane.b32.xlu0 %v240, 3
      %v727 = vpop.permute.xlu0 %726
      %728 = vrot.lane.b32.xlu0 %v242, 3
      %v729 = vpop.permute.xlu0 %728
      %730 = vrot.lane.b32.xlu0 %v243, 3
      %v731 = vpop.permute.xlu0 %730
      %732 = vrot.lane.b32.xlu0 %v245, 3
      %v733 = vpop.permute.xlu0 %732
      %734 = vrot.lane.b32.xlu0 %v246, 3
      %v735 = vpop.permute.xlu0 %734
      %736 = vrot.lane.b32.xlu0 %v248, 3
      %v737 = vpop.permute.xlu0 %736
      %738 = vrot.lane.b32.xlu0 %v249, 3
      %v739 = vpop.permute.xlu0 %738
      %740 = vrot.lane.b32.xlu0 %v251, 3
      %v741 = vpop.permute.xlu0 %740
      %742 = vrot.lane.b32.xlu0 %v252, 3
      %v743 = vpop.permute.xlu0 %742
      %744 = vrot.lane.b32.xlu0 %v254, 3
      %v745 = vpop.permute.xlu0 %744
      %746 = vrot.lane.b32.xlu0 %v255, 3
      %v747 = vpop.permute.xlu0 %746
      %748 = vrot.lane.b32.xlu0 %v257, 3
      %v749 = vpop.permute.xlu0 %748
      %750 = vrot.lane.b32.xlu0 %v258, 3
      %v751 = vpop.permute.xlu0 %750
      %752 = vrot.lane.b32.xlu0 %v260, 3
      %v753 = vpop.permute.xlu0 %752
      %754 = vrot.lane.b32.xlu0 %v261, 3
      %v755 = vpop.permute.xlu0 %754
      %756 = vrot.lane.b32.xlu0 %v263, 3
      %v757 = vpop.permute.xlu0 %756
      %758 = vrot.lane.b32.xlu0 %v264, 3
      %v759 = vpop.permute.xlu0 %758
      %760 = vrot.lane.b32.xlu0 %v266, 3
      %v761 = vpop.permute.xlu0 %760
      %762 = vrot.lane.b32.xlu0 %v267, 3
      %v763 = vpop.permute.xlu0 %762
      %764 = vrot.lane.b32.xlu0 %v269, 3
      %v765 = vpop.permute.xlu0 %764
      %766 = vrot.lane.b32.xlu0 %v270, 3
      %v767 = vpop.permute.xlu0 %766
      %768 = vrot.lane.b32.xlu0 %v272, 3
      %v769 = vpop.permute.xlu0 %768
      %770 = vrot.lane.b32.xlu0 %v273, 3
      %v771 = vpop.permute.xlu0 %770
      %772 = vrot.lane.b32.xlu0 %v275, 3
      %v773 = vpop.permute.xlu0 %772
      %774 = vrot.lane.b32.xlu0 %v276, 3
      %v775 = vpop.permute.xlu0 %774
      %808 = vrot.lane.b32.xlu0 %v340, 4
      %v809 = vpop.permute.xlu0 %808
      %810 = vrot.lane.b32.xlu0 %v342, 4
      %v811 = vpop.permute.xlu0 %810
      %812 = vrot.lane.b32.xlu0 %v345, 4
      %v813 = vpop.permute.xlu0 %812
      %814 = vrot.lane.b32.xlu0 %v347, 4
      %v815 = vpop.permute.xlu0 %814
      %816 = vrot.lane.b32.xlu0 %v350, 4
      %v817 = vpop.permute.xlu0 %816
      %818 = vrot.lane.b32.xlu0 %v352, 4
      %v819 = vpop.permute.xlu0 %818
      %820 = vrot.lane.b32.xlu0 %v355, 4
      %v821 = vpop.permute.xlu0 %820
      %822 = vrot.lane.b32.xlu0 %v357, 4
      %v823 = vpop.permute.xlu0 %822
      %824 = vrot.lane.b32.xlu0 %v360, 4
      %v825 = vpop.permute.xlu0 %824
      %826 = vrot.lane.b32.xlu0 %v362, 4
      %v827 = vpop.permute.xlu0 %826
      %828 = vrot.lane.b32.xlu0 %v365, 4
      %v829 = vpop.permute.xlu0 %828
      %830 = vrot.lane.b32.xlu0 %v367, 4
      %v831 = vpop.permute.xlu0 %830
      %832 = vrot.lane.b32.xlu0 %v370, 4
      %v833 = vpop.permute.xlu0 %832
      %834 = vrot.lane.b32.xlu0 %v372, 4
      %v835 = vpop.permute.xlu0 %834
      %836 = vrot.lane.b32.xlu0 %v375, 4
      %v837 = vpop.permute.xlu0 %836
      %838 = vrot.lane.b32.xlu0 %v377, 4
      %v839 = vpop.permute.xlu0 %838
      %840 = vrot.lane.b32.xlu0 %v380, 4
      %v841 = vpop.permute.xlu0 %840
      %842 = vrot.lane.b32.xlu0 %v382, 4
      %v843 = vpop.permute.xlu0 %842
      %844 = vrot.lane.b32.xlu0 %v385, 4
      %v845 = vpop.permute.xlu0 %844
      %846 = vrot.lane.b32.xlu0 %v387, 4
      %v847 = vpop.permute.xlu0 %846
      %848 = vrot.lane.b32.xlu0 %v390, 4
      %v849 = vpop.permute.xlu0 %848
      %850 = vrot.lane.b32.xlu0 %v392, 4
      %v851 = vpop.permute.xlu0 %850
      %852 = vrot.lane.b32.xlu0 %v395, 4
      %v853 = vpop.permute.xlu0 %852
      %854 = vrot.lane.b32.xlu0 %v397, 4
      %v855 = vpop.permute.xlu0 %854
      %856 = vrot.lane.b32.xlu0 %v400, 4
      %v857 = vpop.permute.xlu0 %856
      %858 = vrot.lane.b32.xlu0 %v402, 4
      %v859 = vpop.permute.xlu0 %858
      %860 = vrot.lane.b32.xlu0 %v405, 4
      %v861 = vpop.permute.xlu0 %860
      %862 = vrot.lane.b32.xlu0 %v407, 4
      %v863 = vpop.permute.xlu0 %862
      %864 = vrot.lane.b32.xlu0 %v410, 4
      %v865 = vpop.permute.xlu0 %864
      %866 = vrot.lane.b32.xlu0 %v412, 4
      %v867 = vpop.permute.xlu0 %866
      %868 = vrot.lane.b32.xlu0 %v499, 4
      %v869 = vpop.permute.xlu0 %868
      %870 = vrot.lane.b32.xlu0 %v501, 4
      %v871 = vpop.permute.xlu0 %870
      %904 = vrot.lane.b32.xlu0 %v421, 5
      %v905 = vpop.permute.xlu0 %904
      %906 = vrot.lane.b32.xlu0 %v423, 5
      %v907 = vpop.permute.xlu0 %906
      %908 = vrot.lane.b32.xlu0 %v426, 5
      %v909 = vpop.permute.xlu0 %908
      %910 = vrot.lane.b32.xlu0 %v428, 5
      %v911 = vpop.permute.xlu0 %910
      %912 = vrot.lane.b32.xlu0 %v431, 5
      %v913 = vpop.permute.xlu0 %912
      %914 = vrot.lane.b32.xlu0 %v433, 5
      %v915 = vpop.permute.xlu0 %914
      %916 = vrot.lane.b32.xlu0 %v436, 5
      %v917 = vpop.permute.xlu0 %916
      %918 = vrot.lane.b32.xlu0 %v438, 5
      %v919 = vpop.permute.xlu0 %918
      %920 = vrot.lane.b32.xlu0 %v441, 5
      %v921 = vpop.permute.xlu0 %920
      %922 = vrot.lane.b32.xlu0 %v443, 5
      %v923 = vpop.permute.xlu0 %922
      %924 = vrot.lane.b32.xlu0 %v446, 5
      %v925 = vpop.permute.xlu0 %924
      %926 = vrot.lane.b32.xlu0 %v448, 5
      %v927 = vpop.permute.xlu0 %926
      %928 = vrot.lane.b32.xlu0 %v451, 5
      %v929 = vpop.permute.xlu0 %928
      %930 = vrot.lane.b32.xlu0 %v453, 5
      %v931 = vpop.permute.xlu0 %930
      %932 = vrot.lane.b32.xlu0 %v456, 5
      %v933 = vpop.permute.xlu0 %932
      %934 = vrot.lane.b32.xlu0 %v458, 5
      %v935 = vpop.permute.xlu0 %934
      %936 = vrot.lane.b32.xlu0 %v461, 5
      %v937 = vpop.permute.xlu0 %936
      %938 = vrot.lane.b32.xlu0 %v463, 5
      %v939 = vpop.permute.xlu0 %938
      %940 = vrot.lane.b32.xlu0 %v466, 5
      %v941 = vpop.permute.xlu0 %940
      %942 = vrot.lane.b32.xlu0 %v468, 5
      %v943 = vpop.permute.xlu0 %942
      %944 = vrot.lane.b32.xlu0 %v471, 5
      %v945 = vpop.permute.xlu0 %944
      %946 = vrot.lane.b32.xlu0 %v473, 5
      %v947 = vpop.permute.xlu0 %946
      %948 = vrot.lane.b32.xlu0 %v476, 5
      %v949 = vpop.permute.xlu0 %948
      %950 = vrot.lane.b32.xlu0 %v478, 5
      %v951 = vpop.permute.xlu0 %950
      %952 = vrot.lane.b32.xlu0 %v481, 5
      %v953 = vpop.permute.xlu0 %952
      %954 = vrot.lane.b32.xlu0 %v483, 5
      %v955 = vpop.permute.xlu0 %954
      %956 = vrot.lane.b32.xlu0 %v486, 5
      %v957 = vpop.permute.xlu0 %956
      %958 = vrot.lane.b32.xlu0 %v488, 5
      %v959 = vpop.permute.xlu0 %958
      %960 = vrot.lane.b32.xlu0 %v491, 5
      %v961 = vpop.permute.xlu0 %960
      %962 = vrot.lane.b32.xlu0 %v493, 5
      %v963 = vpop.permute.xlu0 %962
      %964 = vrot.lane.b32.xlu0 %v504, 5
      %v965 = vpop.permute.xlu0 %964
      %966 = vrot.lane.b32.xlu0 %v506, 5
      %v967 = vpop.permute.xlu0 %966
      %1000 = vrot.lane.b32.xlu0 %v233, 6
      %v1001 = vpop.permute.xlu0 %1000
      %1002 = vrot.lane.b32.xlu0 %v234, 6
      %v1003 = vpop.permute.xlu0 %1002
      %1004 = vrot.lane.b32.xlu0 %v236, 6
      %v1005 = vpop.permute.xlu0 %1004
      %1006 = vrot.lane.b32.xlu0 %v237, 6
      %v1007 = vpop.permute.xlu0 %1006
      %1008 = vrot.lane.b32.xlu0 %v239, 6
      %v1009 = vpop.permute.xlu0 %1008
      %1010 = vrot.lane.b32.xlu0 %v240, 6
      %v1011 = vpop.permute.xlu0 %1010
      %1012 = vrot.lane.b32.xlu0 %v242, 6
      %v1013 = vpop.permute.xlu0 %1012
      %1014 = vrot.lane.b32.xlu0 %v243, 6
      %v1015 = vpop.permute.xlu0 %1014
      %1016 = vrot.lane.b32.xlu0 %v245, 6
      %v1017 = vpop.permute.xlu0 %1016
      %1018 = vrot.lane.b32.xlu0 %v246, 6
      %v1019 = vpop.permute.xlu0 %1018
      %1020 = vrot.lane.b32.xlu0 %v248, 6
      %v1021 = vpop.permute.xlu0 %1020
      %1022 = vrot.lane.b32.xlu0 %v249, 6
      %v1023 = vpop.permute.xlu0 %1022
      %1024 = vrot.lane.b32.xlu0 %v251, 6
      %v1025 = vpop.permute.xlu0 %1024
      %1026 = vrot.lane.b32.xlu0 %v252, 6
      %v1027 = vpop.permute.xlu0 %1026
      %1028 = vrot.lane.b32.xlu0 %v254, 6
      %v1029 = vpop.permute.xlu0 %1028
      %1030 = vrot.lane.b32.xlu0 %v255, 6
      %v1031 = vpop.permute.xlu0 %1030
      %1032 = vrot.lane.b32.xlu0 %v257, 6
      %v1033 = vpop.permute.xlu0 %1032
      %1034 = vrot.lane.b32.xlu0 %v258, 6
      %v1035 = vpop.permute.xlu0 %1034
      %1036 = vrot.lane.b32.xlu0 %v260, 6
      %v1037 = vpop.permute.xlu0 %1036
      %1038 = vrot.lane.b32.xlu0 %v261, 6
      %v1039 = vpop.permute.xlu0 %1038
      %1040 = vrot.lane.b32.xlu0 %v263, 6
      %v1041 = vpop.permute.xlu0 %1040
      %1042 = vrot.lane.b32.xlu0 %v264, 6
      %v1043 = vpop.permute.xlu0 %1042
      %1044 = vrot.lane.b32.xlu0 %v266, 6
      %v1045 = vpop.permute.xlu0 %1044
      %1046 = vrot.lane.b32.xlu0 %v267, 6
      %v1047 = vpop.permute.xlu0 %1046
      %1048 = vrot.lane.b32.xlu0 %v269, 6
      %v1049 = vpop.permute.xlu0 %1048
      %1050 = vrot.lane.b32.xlu0 %v270, 6
      %v1051 = vpop.permute.xlu0 %1050
      %1052 = vrot.lane.b32.xlu0 %v272, 6
      %v1053 = vpop.permute.xlu0 %1052
      %1054 = vrot.lane.b32.xlu0 %v273, 6
      %v1055 = vpop.permute.xlu0 %1054
      %1056 = vrot.lane.b32.xlu0 %v275, 6
      %v1057 = vpop.permute.xlu0 %1056
      %1058 = vrot.lane.b32.xlu0 %v276, 6
      %v1059 = vpop.permute.xlu0 %1058
      %1060 = vrot.lane.b32.xlu0 %v278, 6
      %v1061 = vpop.permute.xlu0 %1060
      %1062 = vrot.lane.b32.xlu0 %v279, 6
      %v1063 = vpop.permute.xlu0 %1062
      %1096 = vrot.lane.b32.xlu0 %v345, 7
      %v1097 = vpop.permute.xlu0 %1096
      %1098 = vrot.lane.b32.xlu0 %v347, 7
      %v1099 = vpop.permute.xlu0 %1098
      %1100 = vrot.lane.b32.xlu0 %v350, 7
      %v1101 = vpop.permute.xlu0 %1100
      %1102 = vrot.lane.b32.xlu0 %v352, 7
      %v1103 = vpop.permute.xlu0 %1102
      %1104 = vrot.lane.b32.xlu0 %v355, 7
      %v1105 = vpop.permute.xlu0 %1104
      %1106 = vrot.lane.b32.xlu0 %v357, 7
      %v1107 = vpop.permute.xlu0 %1106
      %1108 = vrot.lane.b32.xlu0 %v360, 7
      %v1109 = vpop.permute.xlu0 %1108
      %1110 = vrot.lane.b32.xlu0 %v362, 7
      %v1111 = vpop.permute.xlu0 %1110
      %1112 = vrot.lane.b32.xlu0 %v365, 7
      %v1113 = vpop.permute.xlu0 %1112
      %1114 = vrot.lane.b32.xlu0 %v367, 7
      %v1115 = vpop.permute.xlu0 %1114
      %1116 = vrot.lane.b32.xlu0 %v370, 7
      %v1117 = vpop.permute.xlu0 %1116
      %1118 = vrot.lane.b32.xlu0 %v372, 7
      %v1119 = vpop.permute.xlu0 %1118
      %1120 = vrot.lane.b32.xlu0 %v375, 7
      %v1121 = vpop.permute.xlu0 %1120
      %1122 = vrot.lane.b32.xlu0 %v377, 7
      %v1123 = vpop.permute.xlu0 %1122
      %1124 = vrot.lane.b32.xlu0 %v380, 7
      %v1125 = vpop.permute.xlu0 %1124
      %1126 = vrot.lane.b32.xlu0 %v382, 7
      %v1127 = vpop.permute.xlu0 %1126
      %1128 = vrot.lane.b32.xlu0 %v385, 7
      %v1129 = vpop.permute.xlu0 %1128
      %1130 = vrot.lane.b32.xlu0 %v387, 7
      %v1131 = vpop.permute.xlu0 %1130
      %1132 = vrot.lane.b32.xlu0 %v390, 7
      %v1133 = vpop.permute.xlu0 %1132
      %1134 = vrot.lane.b32.xlu0 %v392, 7
      %v1135 = vpop.permute.xlu0 %1134
      %1136 = vrot.lane.b32.xlu0 %v395, 7
      %v1137 = vpop.permute.xlu0 %1136
      %1138 = vrot.lane.b32.xlu0 %v397, 7
      %v1139 = vpop.permute.xlu0 %1138
      %1140 = vrot.lane.b32.xlu0 %v400, 7
      %v1141 = vpop.permute.xlu0 %1140
      %1142 = vrot.lane.b32.xlu0 %v402, 7
      %v1143 = vpop.permute.xlu0 %1142
      %1144 = vrot.lane.b32.xlu0 %v405, 7
      %v1145 = vpop.permute.xlu0 %1144
      %1146 = vrot.lane.b32.xlu0 %v407, 7
      %v1147 = vpop.permute.xlu0 %1146
      %1148 = vrot.lane.b32.xlu0 %v410, 7
      %v1149 = vpop.permute.xlu0 %1148
      %1150 = vrot.lane.b32.xlu0 %v412, 7
      %v1151 = vpop.permute.xlu0 %1150
      %1152 = vrot.lane.b32.xlu0 %v499, 7
      %v1153 = vpop.permute.xlu0 %1152
      %1154 = vrot.lane.b32.xlu0 %v501, 7
      %v1155 = vpop.permute.xlu0 %1154
      %1156 = vrot.lane.b32.xlu0 %v512, 7
      %v1157 = vpop.permute.xlu0 %1156
      %1158 = vrot.lane.b32.xlu0 %v514, 7
      %v1159 = vpop.permute.xlu0 %1158
      %1192 = vrot.lane.b32.xlu0 %v426, 8
      %v1193 = vpop.permute.xlu0 %1192
      %1194 = vrot.lane.b32.xlu0 %v428, 8
      %v1195 = vpop.permute.xlu0 %1194
      %1196 = vrot.lane.b32.xlu0 %v431, 8
      %v1197 = vpop.permute.xlu0 %1196
      %1198 = vrot.lane.b32.xlu0 %v433, 8
      %v1199 = vpop.permute.xlu0 %1198
      %1200 = vrot.lane.b32.xlu0 %v436, 8
      %v1201 = vpop.permute.xlu0 %1200
      %1202 = vrot.lane.b32.xlu0 %v438, 8
      %v1203 = vpop.permute.xlu0 %1202
      %1204 = vrot.lane.b32.xlu0 %v441, 8
      %v1205 = vpop.permute.xlu0 %1204
      %1206 = vrot.lane.b32.xlu0 %v443, 8
      %v1207 = vpop.permute.xlu0 %1206
      %1208 = vrot.lane.b32.xlu0 %v446, 8
      %v1209 = vpop.permute.xlu0 %1208
      %1210 = vrot.lane.b32.xlu0 %v448, 8
      %v1211 = vpop.permute.xlu0 %1210
      %1212 = vrot.lane.b32.xlu0 %v451, 8
      %v1213 = vpop.permute.xlu0 %1212
      %1214 = vrot.lane.b32.xlu0 %v453, 8
      %v1215 = vpop.permute.xlu0 %1214
      %1216 = vrot.lane.b32.xlu0 %v456, 8
      %v1217 = vpop.permute.xlu0 %1216
      %1218 = vrot.lane.b32.xlu0 %v458, 8
      %v1219 = vpop.permute.xlu0 %1218
      %1220 = vrot.lane.b32.xlu0 %v461, 8
      %v1221 = vpop.permute.xlu0 %1220
      %1222 = vrot.lane.b32.xlu0 %v463, 8
      %v1223 = vpop.permute.xlu0 %1222
      %1224 = vrot.lane.b32.xlu0 %v466, 8
      %v1225 = vpop.permute.xlu0 %1224
      %1226 = vrot.lane.b32.xlu0 %v468, 8
      %v1227 = vpop.permute.xlu0 %1226
      %1228 = vrot.lane.b32.xlu0 %v471, 8
      %v1229 = vpop.permute.xlu0 %1228
      %1230 = vrot.lane.b32.xlu0 %v473, 8
      %v1231 = vpop.permute.xlu0 %1230
      %1232 = vrot.lane.b32.xlu0 %v476, 8
      %v1233 = vpop.permute.xlu0 %1232
      %1234 = vrot.lane.b32.xlu0 %v478, 8
      %v1235 = vpop.permute.xlu0 %1234
      %1236 = vrot.lane.b32.xlu0 %v481, 8
      %v1237 = vpop.permute.xlu0 %1236
      %1238 = vrot.lane.b32.xlu0 %v483, 8
      %v1239 = vpop.permute.xlu0 %1238
      %1240 = vrot.lane.b32.xlu0 %v486, 8
      %v1241 = vpop.permute.xlu0 %1240
      %1242 = vrot.lane.b32.xlu0 %v488, 8
      %v1243 = vpop.permute.xlu0 %1242
      %1244 = vrot.lane.b32.xlu0 %v491, 8
      %v1245 = vpop.permute.xlu0 %1244
      %1246 = vrot.lane.b32.xlu0 %v493, 8
      %v1247 = vpop.permute.xlu0 %1246
      %1248 = vrot.lane.b32.xlu0 %v504, 8
      %v1249 = vpop.permute.xlu0 %1248
      %1250 = vrot.lane.b32.xlu0 %v506, 8
      %v1251 = vpop.permute.xlu0 %1250
      %1252 = vrot.lane.b32.xlu0 %v517, 8
      %v1253 = vpop.permute.xlu0 %1252
      %1254 = vrot.lane.b32.xlu0 %v519, 8
      %v1255 = vpop.permute.xlu0 %1254
      %vm1288 = vcmask 7168
      %v1289 = vsel %vm1288, %v227, %v521
      %v1290 = vsel %vm1288, %v228, %v523
      %v1291 = vsel %vm1288, %v230, %v525
      %v1292 = vsel %vm1288, %v231, %v527
      %v1293 = vsel %vm1288, %v233, %v529
      %v1294 = vsel %vm1288, %v234, %v531
      %v1295 = vsel %vm1288, %v236, %v533
      %v1296 = vsel %vm1288, %v237, %v535
      %v1297 = vsel %vm1288, %v239, %v537
      %v1298 = vsel %vm1288, %v240, %v539
      %v1299 = vsel %vm1288, %v242, %v541
      %v1300 = vsel %vm1288, %v243, %v543
      %v1301 = vsel %vm1288, %v245, %v545
      %v1302 = vsel %vm1288, %v246, %v547
      %v1303 = vsel %vm1288, %v248, %v549
      %v1304 = vsel %vm1288, %v249, %v551
      %v1305 = vsel %vm1288, %v251, %v553
      %v1306 = vsel %vm1288, %v252, %v555
      %v1307 = vsel %vm1288, %v254, %v557
      %v1308 = vsel %vm1288, %v255, %v559
      %v1309 = vsel %vm1288, %v257, %v561
      %v1310 = vsel %vm1288, %v258, %v563
      %v1311 = vsel %vm1288, %v260, %v565
      %v1312 = vsel %vm1288, %v261, %v567
      %v1313 = vsel %vm1288, %v263, %v569
      %v1314 = vsel %vm1288, %v264, %v571
      %v1315 = vsel %vm1288, %v266, %v573
      %v1316 = vsel %vm1288, %v267, %v575
      %v1317 = vsel %vm1288, %v269, %v577
      %v1318 = vsel %vm1288, %v270, %v579
      %v1319 = vsel %vm1288, %v272, %v581
      %v1320 = vsel %vm1288, %v273, %v583
      %vm1321 = vcmask 15360
      %v1322 = vsel %vm1321, %v1289, %v617
      %v1323 = vsel %vm1321, %v1290, %v619
      %v1324 = vsel %vm1321, %v1291, %v621
      %v1325 = vsel %vm1321, %v1292, %v623
      %v1326 = vsel %vm1321, %v1293, %v625
      %v1327 = vsel %vm1321, %v1294, %v627
      %v1328 = vsel %vm1321, %v1295, %v629
      %v1329 = vsel %vm1321, %v1296, %v631
      %v1330 = vsel %vm1321, %v1297, %v633
      %v1331 = vsel %vm1321, %v1298, %v635
      %v1332 = vsel %vm1321, %v1299, %v637
      %v1333 = vsel %vm1321, %v1300, %v639
      %v1334 = vsel %vm1321, %v1301, %v641
      %v1335 = vsel %vm1321, %v1302, %v643
      %v1336 = vsel %vm1321, %v1303, %v645
      %v1337 = vsel %vm1321, %v1304, %v647
      %v1338 = vsel %vm1321, %v1305, %v649
      %v1339 = vsel %vm1321, %v1306, %v651
      %v1340 = vsel %vm1321, %v1307, %v653
      %v1341 = vsel %vm1321, %v1308, %v655
      %v1342 = vsel %vm1321, %v1309, %v657
      %v1343 = vsel %vm1321, %v1310, %v659
      %v1344 = vsel %vm1321, %v1311, %v661
      %v1345 = vsel %vm1321, %v1312, %v663
      %v1346 = vsel %vm1321, %v1313, %v665
      %v1347 = vsel %vm1321, %v1314, %v667
      %v1348 = vsel %vm1321, %v1315, %v669
      %v1349 = vsel %vm1321, %v1316, %v671
      %v1350 = vsel %vm1321, %v1317, %v673
      %v1351 = vsel %vm1321, %v1318, %v675
      %v1352 = vsel %vm1321, %v1319, %v677
      %v1353 = vsel %vm1321, %v1320, %v679
      %vm1354 = vcmask 23552
      %v1355 = vsel %vm1354, %v1322, %v713
      %v1356 = vsel %vm1354, %v1323, %v715
      %v1357 = vsel %vm1354, %v1324, %v717
      %v1358 = vsel %vm1354, %v1325, %v719
      %v1359 = vsel %vm1354, %v1326, %v721
      %v1360 = vsel %vm1354, %v1327, %v723
      %v1361 = vsel %vm1354, %v1328, %v725
      %v1362 = vsel %vm1354, %v1329, %v727
      %v1363 = vsel %vm1354, %v1330, %v729
      %v1364 = vsel %vm1354, %v1331, %v731
      %v1365 = vsel %vm1354, %v1332, %v733
      %v1366 = vsel %vm1354, %v1333, %v735
      %v1367 = vsel %vm1354, %v1334, %v737
      %v1368 = vsel %vm1354, %v1335, %v739
      %v1369 = vsel %vm1354, %v1336, %v741
      %v1370 = vsel %vm1354, %v1337, %v743
      %v1371 = vsel %vm1354, %v1338, %v745
      %v1372 = vsel %vm1354, %v1339, %v747
      %v1373 = vsel %vm1354, %v1340, %v749
      %v1374 = vsel %vm1354, %v1341, %v751
      %v1375 = vsel %vm1354, %v1342, %v753
      %v1376 = vsel %vm1354, %v1343, %v755
      %v1377 = vsel %vm1354, %v1344, %v757
      %v1378 = vsel %vm1354, %v1345, %v759
      %v1379 = vsel %vm1354, %v1346, %v761
      %v1380 = vsel %vm1354, %v1347, %v763
      %v1381 = vsel %vm1354, %v1348, %v765
      %v1382 = vsel %vm1354, %v1349, %v767
      %v1383 = vsel %vm1354, %v1350, %v769
      %v1384 = vsel %vm1354, %v1351, %v771
      %v1385 = vsel %vm1354, %v1352, %v773
      %v1386 = vsel %vm1354, %v1353, %v775
      %vm1387 = vcmask 31744
      %v1388 = vsel %vm1387, %v1355, %v809
      %v1389 = vsel %vm1387, %v1356, %v811
      %v1390 = vsel %vm1387, %v1357, %v813
      %v1391 = vsel %vm1387, %v1358, %v815
      %v1392 = vsel %vm1387, %v1359, %v817
      %v1393 = vsel %vm1387, %v1360, %v819
      %v1394 = vsel %vm1387, %v1361, %v821
      %v1395 = vsel %vm1387, %v1362, %v823
      %v1396 = vsel %vm1387, %v1363, %v825
      %v1397 = vsel %vm1387, %v1364, %v827
      %v1398 = vsel %vm1387, %v1365, %v829
      %v1399 = vsel %vm1387, %v1366, %v831
      %v1400 = vsel %vm1387, %v1367, %v833
      %v1401 = vsel %vm1387, %v1368, %v835
      %v1402 = vsel %vm1387, %v1369, %v837
      %v1403 = vsel %vm1387, %v1370, %v839
      %v1404 = vsel %vm1387, %v1371, %v841
      %v1405 = vsel %vm1387, %v1372, %v843
      %v1406 = vsel %vm1387, %v1373, %v845
      %v1407 = vsel %vm1387, %v1374, %v847
      %v1408 = vsel %vm1387, %v1375, %v849
      %v1409 = vsel %vm1387, %v1376, %v851
      %v1410 = vsel %vm1387, %v1377, %v853
      %v1411 = vsel %vm1387, %v1378, %v855
      %v1412 = vsel %vm1387, %v1379, %v857
      %v1413 = vsel %vm1387, %v1380, %v859
      %v1414 = vsel %vm1387, %v1381, %v861
      %v1415 = vsel %vm1387, %v1382, %v863
      %v1416 = vsel %vm1387, %v1383, %v865
      %v1417 = vsel %vm1387, %v1384, %v867
      %v1418 = vsel %vm1387, %v1385, %v869
      %v1419 = vsel %vm1387, %v1386, %v871
      %vm1420 = vcmask 39936
      %v1421 = vsel %vm1420, %v1388, %v905
      %v1422 = vsel %vm1420, %v1389, %v907
      %v1423 = vsel %vm1420, %v1390, %v909
      %v1424 = vsel %vm1420, %v1391, %v911
      %v1425 = vsel %vm1420, %v1392, %v913
      %v1426 = vsel %vm1420, %v1393, %v915
      %v1427 = vsel %vm1420, %v1394, %v917
      %v1428 = vsel %vm1420, %v1395, %v919
      %v1429 = vsel %vm1420, %v1396, %v921
      %v1430 = vsel %vm1420, %v1397, %v923
      %v1431 = vsel %vm1420, %v1398, %v925
      %v1432 = vsel %vm1420, %v1399, %v927
      %v1433 = vsel %vm1420, %v1400, %v929
      %v1434 = vsel %vm1420, %v1401, %v931
      %v1435 = vsel %vm1420, %v1402, %v933
      %v1436 = vsel %vm1420, %v1403, %v935
      %v1437 = vsel %vm1420, %v1404, %v937
      %v1438 = vsel %vm1420, %v1405, %v939
      %v1439 = vsel %vm1420, %v1406, %v941
      %v1440 = vsel %vm1420, %v1407, %v943
      %v1441 = vsel %vm1420, %v1408, %v945
      %v1442 = vsel %vm1420, %v1409, %v947
      %v1443 = vsel %vm1420, %v1410, %v949
      %v1444 = vsel %vm1420, %v1411, %v951
      %v1445 = vsel %vm1420, %v1412, %v953
      %v1446 = vsel %vm1420, %v1413, %v955
      %v1447 = vsel %vm1420, %v1414, %v957
      %v1448 = vsel %vm1420, %v1415, %v959
      %v1449 = vsel %vm1420, %v1416, %v961
      %v1450 = vsel %vm1420, %v1417, %v963
      %v1451 = vsel %vm1420, %v1418, %v965
      %v1452 = vsel %vm1420, %v1419, %v967
      %vm1453 = vcmask 48128
      %v1454 = vsel %vm1453, %v1421, %v1001
      %v1455 = vsel %vm1453, %v1422, %v1003
      %v1456 = vsel %vm1453, %v1423, %v1005
      %v1457 = vsel %vm1453, %v1424, %v1007
      %v1458 = vsel %vm1453, %v1425, %v1009
      %v1459 = vsel %vm1453, %v1426, %v1011
      %v1460 = vsel %vm1453, %v1427, %v1013
      %v1461 = vsel %vm1453, %v1428, %v1015
      %v1462 = vsel %vm1453, %v1429, %v1017
      %v1463 = vsel %vm1453, %v1430, %v1019
      %v1464 = vsel %vm1453, %v1431, %v1021
      %v1465 = vsel %vm1453, %v1432, %v1023
      %v1466 = vsel %vm1453, %v1433, %v1025
      %v1467 = vsel %vm1453, %v1434, %v1027
      %v1468 = vsel %vm1453, %v1435, %v1029
      %v1469 = vsel %vm1453, %v1436, %v1031
      %v1470 = vsel %vm1453, %v1437, %v1033
      %v1471 = vsel %vm1453, %v1438, %v1035
      %v1472 = vsel %vm1453, %v1439, %v1037
      %v1473 = vsel %vm1453, %v1440, %v1039
      %v1474 = vsel %vm1453, %v1441, %v1041
      %v1475 = vsel %vm1453, %v1442, %v1043
      %v1476 = vsel %vm1453, %v1443, %v1045
      %v1477 = vsel %vm1453, %v1444, %v1047
      %v1478 = vsel %vm1453, %v1445, %v1049
      %v1479 = vsel %vm1453, %v1446, %v1051
      %v1480 = vsel %vm1453, %v1447, %v1053
      %v1481 = vsel %vm1453, %v1448, %v1055
      %v1482 = vsel %vm1453, %v1449, %v1057
      %v1483 = vsel %vm1453, %v1450, %v1059
      %v1484 = vsel %vm1453, %v1451, %v1061
      %v1485 = vsel %vm1453, %v1452, %v1063
      %vm1486 = vcmask 56320
      %v1487 = vsel %vm1486, %v1454, %v1097
      %v1488 = vsel %vm1486, %v1455, %v1099
      %v1489 = vsel %vm1486, %v1456, %v1101
      %v1490 = vsel %vm1486, %v1457, %v1103
      %v1491 = vsel %vm1486, %v1458, %v1105
      %v1492 = vsel %vm1486, %v1459, %v1107
      %v1493 = vsel %vm1486, %v1460, %v1109
      %v1494 = vsel %vm1486, %v1461, %v1111
      %v1495 = vsel %vm1486, %v1462, %v1113
      %v1496 = vsel %vm1486, %v1463, %v1115
      %v1497 = vsel %vm1486, %v1464, %v1117
      %v1498 = vsel %vm1486, %v1465, %v1119
      %v1499 = vsel %vm1486, %v1466, %v1121
      %v1500 = vsel %vm1486, %v1467, %v1123
      %v1501 = vsel %vm1486, %v1468, %v1125
      %v1502 = vsel %vm1486, %v1469, %v1127
      %v1503 = vsel %vm1486, %v1470, %v1129
      %v1504 = vsel %vm1486, %v1471, %v1131
      %v1505 = vsel %vm1486, %v1472, %v1133
      %v1506 = vsel %vm1486, %v1473, %v1135
      %v1507 = vsel %vm1486, %v1474, %v1137
      %v1508 = vsel %vm1486, %v1475, %v1139
      %v1509 = vsel %vm1486, %v1476, %v1141
      %v1510 = vsel %vm1486, %v1477, %v1143
      %v1511 = vsel %vm1486, %v1478, %v1145
      %v1512 = vsel %vm1486, %v1479, %v1147
      %v1513 = vsel %vm1486, %v1480, %v1149
      %v1514 = vsel %vm1486, %v1481, %v1151
      %v1515 = vsel %vm1486, %v1482, %v1153
      %v1516 = vsel %vm1486, %v1483, %v1155
      %v1517 = vsel %vm1486, %v1484, %v1157
      %v1518 = vsel %vm1486, %v1485, %v1159
      %vm1519 = vcmask 64512
      %v1520 = vsel %vm1519, %v1487, %v1193
      %v1521 = vsel %vm1519, %v1488, %v1195
      %v1522 = vsel %vm1519, %v1489, %v1197
      %v1523 = vsel %vm1519, %v1490, %v1199
      %v1524 = vsel %vm1519, %v1491, %v1201
      %v1525 = vsel %vm1519, %v1492, %v1203
      %v1526 = vsel %vm1519, %v1493, %v1205
      %v1527 = vsel %vm1519, %v1494, %v1207
      %v1528 = vsel %vm1519, %v1495, %v1209
      %v1529 = vsel %vm1519, %v1496, %v1211
      %v1530 = vsel %vm1519, %v1497, %v1213
      %v1531 = vsel %vm1519, %v1498, %v1215
      %v1532 = vsel %vm1519, %v1499, %v1217
      %v1533 = vsel %vm1519, %v1500, %v1219
      %v1534 = vsel %vm1519, %v1501, %v1221
      %v1535 = vsel %vm1519, %v1502, %v1223
      %v1536 = vsel %vm1519, %v1503, %v1225
      %v1537 = vsel %vm1519, %v1504, %v1227
      %v1538 = vsel %vm1519, %v1505, %v1229
      %v1539 = vsel %vm1519, %v1506, %v1231
      %v1540 = vsel %vm1519, %v1507, %v1233
      %v1541 = vsel %vm1519, %v1508, %v1235
      %v1542 = vsel %vm1519, %v1509, %v1237
      %v1543 = vsel %vm1519, %v1510, %v1239
      %v1544 = vsel %vm1519, %v1511, %v1241
      %v1545 = vsel %vm1519, %v1512, %v1243
      %v1546 = vsel %vm1519, %v1513, %v1245
      %v1547 = vsel %vm1519, %v1514, %v1247
      %v1548 = vsel %vm1519, %v1515, %v1249
      %v1549 = vsel %vm1519, %v1516, %v1251
      %v1550 = vsel %vm1519, %v1517, %v1253
      %v1551 = vsel %vm1519, %v1518, %v1255
      %v1552 = vpack.c.bf16 %v1521, %v1520
      %v1553 = vpack.c.bf16 %v1523, %v1522
      %v1554 = vpack.c.bf16 %v1525, %v1524
      %v1555 = vpack.c.bf16 %v1527, %v1526
      %v1556 = vpack.c.bf16 %v1529, %v1528
      %v1557 = vpack.c.bf16 %v1531, %v1530
      %v1558 = vpack.c.bf16 %v1533, %v1532
      %v1559 = vpack.c.bf16 %v1535, %v1534
      %v1560 = vpack.c.bf16 %v1537, %v1536
      %v1561 = vpack.c.bf16 %v1539, %v1538
      %v1562 = vpack.c.bf16 %v1541, %v1540
      %v1563 = vpack.c.bf16 %v1543, %v1542
      %v1564 = vpack.c.bf16 %v1545, %v1544
      %v1565 = vpack.c.bf16 %v1547, %v1546
      %v1566 = vpack.c.bf16 %v1549, %v1548
      %v1567 = vpack.c.bf16 %v1551, %v1550
      %v1569 = vlaneseq
      %v1570 = vshrl.u32 %v1569, 7
      %v1571 = vsub.s32 0, %v1570
      %v1572 = vrot.slane %v283, %v1571
      %v1576 = vunpack.c.l.b16 %v281
      %v1577 = vunpack.c.l.b16 %v282
      %v1578 = vpack.c.b16 %v1577, %v1576
      %vm1579 = vcmask 72704
      %v1581 = vsel %vm1579, %v1552, 0
      %v1584 = vsel %vm1579, %v1553, 0
      %v1587 = vsel %vm1579, %v1554, 0
      %v1590 = vsel %vm1579, %v1555, 0
      %v1593 = vsel %vm1579, %v1556, 0
      %v1596 = vsel %vm1579, %v1557, 0
      %v1599 = vsel %vm1579, %v1558, 0
      %v1602 = vsel %vm1579, %v1559, 0
      %v1605 = vsel %vm1579, %v1560, 0
      %v1608 = vsel %vm1579, %v1561, 0
      %v1611 = vsel %vm1579, %v1562, 0
      %v1614 = vsel %vm1579, %v1563, 0
      %v1617 = vsel %vm1579, %v1564, 0
      %v1620 = vsel %vm1579, %v1565, 0
      %v1623 = vsel %vm1579, %v1566, 0
      %v1626 = vsel %vm1579, %v1567, 0
      %vm1628 = vcmask 1043456
      %vm1629 = vcmask 1044480
      %v1630 = vsel %vm1628, 4294967295, 65535
      %v1631 = vsel %vm1629, %v1630, 0
      %v1633 = vand.u32 %v1578, %v1631
      %1635 = vmatprep.subr.bf16.mxu0 0
      %1636 = vmatpush1.bf16.msra.mxu0 %v1633
      %1637 = vmatprep.subr.bf16.mxu0 0
      %1638 = vmatpush1.bf16.msra.mxu0 0
      %1639 = vmatprep.subr.bf16.mxu0 0
      %1640 = vmatpush1.bf16.msra.mxu0 0
      %1641 = vmatprep.subr.bf16.mxu0 0
      %1642 = vmatpush1.bf16.msra.mxu0 0
      %1643 = vmatprep.subr.bf16.mxu0 0
      %1644 = vmatpush1.bf16.msra.mxu0 0
      %1645 = vmatprep.subr.bf16.mxu0 0
      %1646 = vmatpush1.bf16.msra.mxu0 0
      %1647 = vmatprep.subr.bf16.mxu0 0
      %1648 = vmatpush1.bf16.msra.mxu0 0
      %1649 = vmatprep.subr.bf16.mxu0 0
      %1650 = vmatpush1.bf16.msra.mxu0 0
      %1651 = vmatprep.subr.bf16.mxu0 0
      %1652 = vmatpush1.bf16.msra.mxu0 0
      %1653 = vmatprep.subr.bf16.mxu0 0
      %1654 = vmatpush1.bf16.msra.mxu0 0
      %1655 = vmatprep.subr.bf16.mxu0 0
      %1656 = vmatpush1.bf16.msra.mxu0 0
      %1657 = vmatprep.subr.bf16.mxu0 0
      %1658 = vmatpush1.bf16.msra.mxu0 0
      %1659 = vmatprep.subr.bf16.mxu0 0
      %1660 = vmatpush1.bf16.msra.mxu0 0
      %1661 = vmatprep.subr.bf16.mxu0 0
      %1662 = vmatpush1.bf16.msra.mxu0 0
      %1663 = vmatprep.subr.bf16.mxu0 0
      %1664 = vmatpush1.bf16.msra.mxu0 0
      %1665 = vmatprep.subr.bf16.mxu0 0
      %1666 = vmatpush1.bf16.msra.mxu0 0
      %1667 = vmatprep.mubr.bf16.mxu0 0
      %1668 = vmatmul.mubr.bf16.gmra.mrb[0].mxu0 %v1581
      %v1669 = vpop.f32.mrb[0].mxu0
      %v1670 = vadd.f32 %v1572, %v1669
      %v1671 = vpop.f32.mrb[0].mxu0
      %v1672 = vpop.f32.mrb[0].mxu0
      %v1673 = vadd.f32 %v1572, %v1672
      %v1674 = vpop.f32.mrb[0].mxu0
      %1675 = vmatprep.mubr.bf16.mxu0 0
      %1676 = vmatmul.mubr.bf16.gmra.mrb[0].mxu0 %v1584
      %v1677 = vpop.f32.mrb[0].mxu0
      %v1678 = vadd.f32 %v1572, %v1677
      %v1679 = vpop.f32.mrb[0].mxu0
      %v1680 = vpop.f32.mrb[0].mxu0
      %v1681 = vadd.f32 %v1572, %v1680
      %v1682 = vpop.f32.mrb[0].mxu0
      %1683 = vmatprep.mubr.bf16.mxu0 0
      %1684 = vmatmul.mubr.bf16.gmra.mrb[0].mxu0 %v1587
      %v1685 = vpop.f32.mrb[0].mxu0
      %v1686 = vadd.f32 %v1572, %v1685
      %v1687 = vpop.f32.mrb[0].mxu0
      %v1688 = vpop.f32.mrb[0].mxu0
      %v1689 = vadd.f32 %v1572, %v1688
      %v1690 = vpop.f32.mrb[0].mxu0
      %1691 = vmatprep.mubr.bf16.mxu0 0
      %1692 = vmatmul.mubr.bf16.gmra.mrb[0].mxu0 %v1590
      %v1693 = vpop.f32.mrb[0].mxu0
      %v1694 = vadd.f32 %v1572, %v1693
      %v1695 = vpop.f32.mrb[0].mxu0
      %v1696 = vpop.f32.mrb[0].mxu0
      %v1697 = vadd.f32 %v1572, %v1696
      %v1698 = vpop.f32.mrb[0].mxu0
      %1699 = vmatprep.mubr.bf16.mxu0 0
      %1700 = vmatmul.mubr.bf16.gmra.mrb[0].mxu0 %v1593
      %v1701 = vpop.f32.mrb[0].mxu0
      %v1702 = vadd.f32 %v1572, %v1701
      %v1703 = vpop.f32.mrb[0].mxu0
      %v1704 = vpop.f32.mrb[0].mxu0
      %v1705 = vadd.f32 %v1572, %v1704
      %v1706 = vpop.f32.mrb[0].mxu0
      %1707 = vmatprep.mubr.bf16.mxu0 0
      %1708 = vmatmul.mubr.bf16.gmra.mrb[0].mxu0 %v1596
      %v1709 = vpop.f32.mrb[0].mxu0
      %v1710 = vadd.f32 %v1572, %v1709
      %v1711 = vpop.f32.mrb[0].mxu0
      %v1712 = vpop.f32.mrb[0].mxu0
      %v1713 = vadd.f32 %v1572, %v1712
      %v1714 = vpop.f32.mrb[0].mxu0
      %1715 = vmatprep.mubr.bf16.mxu0 0
      %1716 = vmatmul.mubr.bf16.gmra.mrb[0].mxu0 %v1599
      %v1717 = vpop.f32.mrb[0].mxu0
      %v1718 = vadd.f32 %v1572, %v1717
      %v1719 = vpop.f32.mrb[0].mxu0
      %v1720 = vpop.f32.mrb[0].mxu0
      %v1721 = vadd.f32 %v1572, %v1720
      %v1722 = vpop.f32.mrb[0].mxu0
      %1723 = vmatprep.mubr.bf16.mxu0 0
      %1724 = vmatmul.mubr.bf16.gmra.mrb[0].mxu0 %v1602
      %v1725 = vpop.f32.mrb[0].mxu0
      %v1726 = vadd.f32 %v1572, %v1725
      %v1727 = vpop.f32.mrb[0].mxu0
      %v1728 = vpop.f32.mrb[0].mxu0
      %v1729 = vadd.f32 %v1572, %v1728
      %v1730 = vpop.f32.mrb[0].mxu0
      %1731 = vmatprep.mubr.bf16.mxu0 0
      %1732 = vmatmul.mubr.bf16.gmra.mrb[0].mxu0 %v1605
      %v1733 = vpop.f32.mrb[0].mxu0
      %v1734 = vadd.f32 %v1572, %v1733
      %v1735 = vpop.f32.mrb[0].mxu0
      %v1736 = vpop.f32.mrb[0].mxu0
      %v1737 = vadd.f32 %v1572, %v1736
      %v1738 = vpop.f32.mrb[0].mxu0
      %1739 = vmatprep.mubr.bf16.mxu0 0
      %1740 = vmatmul.mubr.bf16.gmra.mrb[0].mxu0 %v1608
      %v1741 = vpop.f32.mrb[0].mxu0
      %v1742 = vadd.f32 %v1572, %v1741
      %v1743 = vpop.f32.mrb[0].mxu0
      %v1744 = vpop.f32.mrb[0].mxu0
      %v1745 = vadd.f32 %v1572, %v1744
      %v1746 = vpop.f32.mrb[0].mxu0
      %1747 = vmatprep.mubr.bf16.mxu0 0
      %1748 = vmatmul.mubr.bf16.gmra.mrb[0].mxu0 %v1611
      %v1749 = vpop.f32.mrb[0].mxu0
      %v1750 = vadd.f32 %v1572, %v1749
      %v1751 = vpop.f32.mrb[0].mxu0
      %v1752 = vpop.f32.mrb[0].mxu0
      %v1753 = vadd.f32 %v1572, %v1752
      %v1754 = vpop.f32.mrb[0].mxu0
      %1755 = vmatprep.mubr.bf16.mxu0 0
      %1756 = vmatmul.mubr.bf16.gmra.mrb[0].mxu0 %v1614
      %v1757 = vpop.f32.mrb[0].mxu0
      %v1758 = vadd.f32 %v1572, %v1757
      %v1759 = vpop.f32.mrb[0].mxu0
      %v1760 = vpop.f32.mrb[0].mxu0
      %v1761 = vadd.f32 %v1572, %v1760
      %v1762 = vpop.f32.mrb[0].mxu0
      %1763 = vmatprep.mubr.bf16.mxu0 0
      %1764 = vmatmul.mubr.bf16.gmra.mrb[0].mxu0 %v1617
      %v1765 = vpop.f32.mrb[0].mxu0
      %v1766 = vadd.f32 %v1572, %v1765
      %v1767 = vpop.f32.mrb[0].mxu0
      %v1768 = vpop.f32.mrb[0].mxu0
      %v1769 = vadd.f32 %v1572, %v1768
      %v1770 = vpop.f32.mrb[0].mxu0
      %1771 = vmatprep.mubr.bf16.mxu0 0
      %1772 = vmatmul.mubr.bf16.gmra.mrb[0].mxu0 %v1620
      %v1773 = vpop.f32.mrb[0].mxu0
      %v1774 = vadd.f32 %v1572, %v1773
      %v1775 = vpop.f32.mrb[0].mxu0
      %v1776 = vpop.f32.mrb[0].mxu0
      %v1777 = vadd.f32 %v1572, %v1776
      %v1778 = vpop.f32.mrb[0].mxu0
      %1779 = vmatprep.mubr.bf16.mxu0 0
      %1780 = vmatmul.mubr.bf16.gmra.mrb[0].mxu0 %v1623
      %v1781 = vpop.f32.mrb[0].mxu0
      %v1782 = vadd.f32 %v1572, %v1781
      %v1783 = vpop.f32.mrb[0].mxu0
      %v1784 = vpop.f32.mrb[0].mxu0
      %v1785 = vadd.f32 %v1572, %v1784
      %v1786 = vpop.f32.mrb[0].mxu0
      %1787 = vmatprep.mubr.bf16.mxu0 0
      %1788 = vmatmul.mubr.bf16.gmra.mrb[0].mxu0 %v1626
      %v1789 = vpop.f32.mrb[0].mxu0
      %v1790 = vadd.f32 %v1572, %v1789
      %v1791 = vpop.f32.mrb[0].mxu0
      %v1792 = vpop.f32.mrb[0].mxu0
      %v1793 = vadd.f32 %v1572, %v1792
      %v1794 = vpop.f32.mrb[0].mxu0
      %1795 = vdwg.mxu0
      %v1796 = vmax.f32 %v1670, 0.0
      %v1797 = vmax.f32 %v1673, 0.0
      %v1798 = vmax.f32 %v1678, 0.0
      %v1799 = vmax.f32 %v1681, 0.0
      %v1800 = vmax.f32 %v1686, 0.0
      %v1801 = vmax.f32 %v1689, 0.0
      %v1802 = vmax.f32 %v1694, 0.0
      %v1803 = vmax.f32 %v1697, 0.0
      %v1804 = vmax.f32 %v1702, 0.0
      %v1805 = vmax.f32 %v1705, 0.0
      %v1806 = vmax.f32 %v1710, 0.0
      %v1807 = vmax.f32 %v1713, 0.0
      %v1808 = vmax.f32 %v1718, 0.0
      %v1809 = vmax.f32 %v1721, 0.0
      %v1810 = vmax.f32 %v1726, 0.0
      %v1811 = vmax.f32 %v1729, 0.0
      %v1812 = vmax.f32 %v1734, 0.0
      %v1813 = vmax.f32 %v1737, 0.0
      %v1814 = vmax.f32 %v1742, 0.0
      %v1815 = vmax.f32 %v1745, 0.0
      %v1816 = vmax.f32 %v1750, 0.0
      %v1817 = vmax.f32 %v1753, 0.0
      %v1818 = vmax.f32 %v1758, 0.0
      %v1819 = vmax.f32 %v1761, 0.0
      %v1820 = vmax.f32 %v1766, 0.0
      %v1821 = vmax.f32 %v1769, 0.0
      %v1822 = vmax.f32 %v1774, 0.0
      %v1823 = vmax.f32 %v1777, 0.0
      %v1824 = vmax.f32 %v1782, 0.0
      %v1825 = vmax.f32 %v1785, 0.0
      %v1826 = vmax.f32 %v1790, 0.0
      %v1827 = vmax.f32 %v1793, 0.0
      %v1860 = vcombine.high %v1796, %v1796
      %v1862 = vunpack.c.l.s4 1983009808
      %v1863 = vunpack.c.0.s8 %v1862
      %v1864 = vlaneseq
      %v1865 = vshrl.u32 %v1864, 7
      %v1866 = vsub.s32 %v1863, %v1865
      %v1867 = vrot.slane %v1796, %v1866
      %v1869 = vunpack.c.l.s4 1983009808
      %v1870 = vunpack.c.0.s8 %v1869
      %v1871 = vlaneseq
      %v1872 = vshrl.u32 %v1871, 7
      %v1873 = vsub.s32 %v1870, %v1872
      %v1874 = vrot.slane %v1860, %v1873
      %v1875 = vcombine.high %v1867, %v1867
      %v1876 = vcombine.high %v1874, %v1874
      %v1877 = vcombine.high %v1797, %v1797
      %v1879 = vunpack.c.l.s4 1983009808
      %v1880 = vunpack.c.0.s8 %v1879
      %v1881 = vlaneseq
      %v1882 = vshrl.u32 %v1881, 7
      %v1883 = vsub.s32 %v1880, %v1882
      %v1884 = vrot.slane %v1797, %v1883
      %v1886 = vunpack.c.l.s4 1983009808
      %v1887 = vunpack.c.0.s8 %v1886
      %v1888 = vlaneseq
      %v1889 = vshrl.u32 %v1888, 7
      %v1890 = vsub.s32 %v1887, %v1889
      %v1891 = vrot.slane %v1877, %v1890
      %v1892 = vcombine.high %v1884, %v1884
      %v1893 = vcombine.high %v1891, %v1891
      %v1894 = vcombine.high %v1798, %v1798
      %v1896 = vunpack.c.l.s4 1983009808
      %v1897 = vunpack.c.0.s8 %v1896
      %v1898 = vlaneseq
      %v1899 = vshrl.u32 %v1898, 7
      %v1900 = vsub.s32 %v1897, %v1899
      %v1901 = vrot.slane %v1798, %v1900
      %v1903 = vunpack.c.l.s4 1983009808
      %v1904 = vunpack.c.0.s8 %v1903
      %v1905 = vlaneseq
      %v1906 = vshrl.u32 %v1905, 7
      %v1907 = vsub.s32 %v1904, %v1906
      %v1908 = vrot.slane %v1894, %v1907
      %v1909 = vcombine.high %v1901, %v1901
      %v1910 = vcombine.high %v1908, %v1908
      %v1911 = vcombine.high %v1799, %v1799
      %v1913 = vunpack.c.l.s4 1983009808
      %v1914 = vunpack.c.0.s8 %v1913
      %v1915 = vlaneseq
      %v1916 = vshrl.u32 %v1915, 7
      %v1917 = vsub.s32 %v1914, %v1916
      %v1918 = vrot.slane %v1799, %v1917
      %v1920 = vunpack.c.l.s4 1983009808
      %v1921 = vunpack.c.0.s8 %v1920
      %v1922 = vlaneseq
      %v1923 = vshrl.u32 %v1922, 7
      %v1924 = vsub.s32 %v1921, %v1923
      %v1925 = vrot.slane %v1911, %v1924
      %v1926 = vcombine.high %v1918, %v1918
      %v1927 = vcombine.high %v1925, %v1925
      %v1928 = vcombine.high %v1800, %v1800
      %v1930 = vunpack.c.l.s4 1983009808
      %v1931 = vunpack.c.0.s8 %v1930
      %v1932 = vlaneseq
      %v1933 = vshrl.u32 %v1932, 7
      %v1934 = vsub.s32 %v1931, %v1933
      %v1935 = vrot.slane %v1800, %v1934
      %v1937 = vunpack.c.l.s4 1983009808
      %v1938 = vunpack.c.0.s8 %v1937
      %v1939 = vlaneseq
      %v1940 = vshrl.u32 %v1939, 7
      %v1941 = vsub.s32 %v1938, %v1940
      %v1942 = vrot.slane %v1928, %v1941
      %v1943 = vcombine.high %v1935, %v1935
      %v1944 = vcombine.high %v1942, %v1942
      %v1945 = vcombine.high %v1801, %v1801
      %v1947 = vunpack.c.l.s4 1983009808
      %v1948 = vunpack.c.0.s8 %v1947
      %v1949 = vlaneseq
      %v1950 = vshrl.u32 %v1949, 7
      %v1951 = vsub.s32 %v1948, %v1950
      %v1952 = vrot.slane %v1801, %v1951
      %v1954 = vunpack.c.l.s4 1983009808
      %v1955 = vunpack.c.0.s8 %v1954
      %v1956 = vlaneseq
      %v1957 = vshrl.u32 %v1956, 7
      %v1958 = vsub.s32 %v1955, %v1957
      %v1959 = vrot.slane %v1945, %v1958
      %v1960 = vcombine.high %v1952, %v1952
      %v1961 = vcombine.high %v1959, %v1959
      %v1962 = vcombine.high %v1802, %v1802
      %v1964 = vunpack.c.l.s4 1983009808
      %v1965 = vunpack.c.0.s8 %v1964
      %v1966 = vlaneseq
      %v1967 = vshrl.u32 %v1966, 7
      %v1968 = vsub.s32 %v1965, %v1967
      %v1969 = vrot.slane %v1802, %v1968
      %v1971 = vunpack.c.l.s4 1983009808
      %v1972 = vunpack.c.0.s8 %v1971
      %v1973 = vlaneseq
      %v1974 = vshrl.u32 %v1973, 7
      %v1975 = vsub.s32 %v1972, %v1974
      %v1976 = vrot.slane %v1962, %v1975
      %v1977 = vcombine.high %v1969, %v1969
      %v1978 = vcombine.high %v1976, %v1976
      %v1979 = vcombine.high %v1803, %v1803
      %v1981 = vunpack.c.l.s4 1983009808
      %v1982 = vunpack.c.0.s8 %v1981
      %v1983 = vlaneseq
      %v1984 = vshrl.u32 %v1983, 7
      %v1985 = vsub.s32 %v1982, %v1984
      %v1986 = vrot.slane %v1803, %v1985
      %v1988 = vunpack.c.l.s4 1983009808
      %v1989 = vunpack.c.0.s8 %v1988
      %v1990 = vlaneseq
      %v1991 = vshrl.u32 %v1990, 7
      %v1992 = vsub.s32 %v1989, %v1991
      %v1993 = vrot.slane %v1979, %v1992
      %v1994 = vcombine.high %v1986, %v1986
      %v1995 = vcombine.high %v1993, %v1993
      %v1996 = vcombine.high %v1804, %v1804
      %v1998 = vunpack.c.l.s4 1983009808
      %v1999 = vunpack.c.0.s8 %v1998
      %v2000 = vlaneseq
      %v2001 = vshrl.u32 %v2000, 7
      %v2002 = vsub.s32 %v1999, %v2001
      %v2003 = vrot.slane %v1804, %v2002
      %v2005 = vunpack.c.l.s4 1983009808
      %v2006 = vunpack.c.0.s8 %v2005
      %v2007 = vlaneseq
      %v2008 = vshrl.u32 %v2007, 7
      %v2009 = vsub.s32 %v2006, %v2008
      %v2010 = vrot.slane %v1996, %v2009
      %v2011 = vcombine.high %v2003, %v2003
      %v2012 = vcombine.high %v2010, %v2010
      %v2013 = vcombine.high %v1805, %v1805
      %v2015 = vunpack.c.l.s4 1983009808
      %v2016 = vunpack.c.0.s8 %v2015
      %v2017 = vlaneseq
      %v2018 = vshrl.u32 %v2017, 7
      %v2019 = vsub.s32 %v2016, %v2018
      %v2020 = vrot.slane %v1805, %v2019
      %v2022 = vunpack.c.l.s4 1983009808
      %v2023 = vunpack.c.0.s8 %v2022
      %v2024 = vlaneseq
      %v2025 = vshrl.u32 %v2024, 7
      %v2026 = vsub.s32 %v2023, %v2025
      %v2027 = vrot.slane %v2013, %v2026
      %v2028 = vcombine.high %v2020, %v2020
      %v2029 = vcombine.high %v2027, %v2027
      %v2030 = vcombine.high %v1806, %v1806
      %v2032 = vunpack.c.l.s4 1983009808
      %v2033 = vunpack.c.0.s8 %v2032
      %v2034 = vlaneseq
      %v2035 = vshrl.u32 %v2034, 7
      %v2036 = vsub.s32 %v2033, %v2035
      %v2037 = vrot.slane %v1806, %v2036
      %v2039 = vunpack.c.l.s4 1983009808
      %v2040 = vunpack.c.0.s8 %v2039
      %v2041 = vlaneseq
      %v2042 = vshrl.u32 %v2041, 7
      %v2043 = vsub.s32 %v2040, %v2042
      %v2044 = vrot.slane %v2030, %v2043
      %v2045 = vcombine.high %v2037, %v2037
      %v2046 = vcombine.high %v2044, %v2044
      %v2047 = vcombine.high %v1807, %v1807
      %v2049 = vunpack.c.l.s4 1983009808
      %v2050 = vunpack.c.0.s8 %v2049
      %v2051 = vlaneseq
      %v2052 = vshrl.u32 %v2051, 7
      %v2053 = vsub.s32 %v2050, %v2052
      %v2054 = vrot.slane %v1807, %v2053
      %v2056 = vunpack.c.l.s4 1983009808
      %v2057 = vunpack.c.0.s8 %v2056
      %v2058 = vlaneseq
      %v2059 = vshrl.u32 %v2058, 7
      %v2060 = vsub.s32 %v2057, %v2059
      %v2061 = vrot.slane %v2047, %v2060
      %v2062 = vcombine.high %v2054, %v2054
      %v2063 = vcombine.high %v2061, %v2061
      %v2064 = vcombine.high %v1808, %v1808
      %v2066 = vunpack.c.l.s4 1983009808
      %v2067 = vunpack.c.0.s8 %v2066
      %v2068 = vlaneseq
      %v2069 = vshrl.u32 %v2068, 7
      %v2070 = vsub.s32 %v2067, %v2069
      %v2071 = vrot.slane %v1808, %v2070
      %v2073 = vunpack.c.l.s4 1983009808
      %v2074 = vunpack.c.0.s8 %v2073
      %v2075 = vlaneseq
      %v2076 = vshrl.u32 %v2075, 7
      %v2077 = vsub.s32 %v2074, %v2076
      %v2078 = vrot.slane %v2064, %v2077
      %v2079 = vcombine.high %v2071, %v2071
      %v2080 = vcombine.high %v2078, %v2078
      %v2081 = vcombine.high %v1809, %v1809
      %v2083 = vunpack.c.l.s4 1983009808
      %v2084 = vunpack.c.0.s8 %v2083
      %v2085 = vlaneseq
      %v2086 = vshrl.u32 %v2085, 7
      %v2087 = vsub.s32 %v2084, %v2086
      %v2088 = vrot.slane %v1809, %v2087
      %v2090 = vunpack.c.l.s4 1983009808
      %v2091 = vunpack.c.0.s8 %v2090
      %v2092 = vlaneseq
      %v2093 = vshrl.u32 %v2092, 7
      %v2094 = vsub.s32 %v2091, %v2093
      %v2095 = vrot.slane %v2081, %v2094
      %v2096 = vcombine.high %v2088, %v2088
      %v2097 = vcombine.high %v2095, %v2095
      %v2098 = vcombine.high %v1810, %v1810
      %v2100 = vunpack.c.l.s4 1983009808
      %v2101 = vunpack.c.0.s8 %v2100
      %v2102 = vlaneseq
      %v2103 = vshrl.u32 %v2102, 7
      %v2104 = vsub.s32 %v2101, %v2103
      %v2105 = vrot.slane %v1810, %v2104
      %v2107 = vunpack.c.l.s4 1983009808
      %v2108 = vunpack.c.0.s8 %v2107
      %v2109 = vlaneseq
      %v2110 = vshrl.u32 %v2109, 7
      %v2111 = vsub.s32 %v2108, %v2110
      %v2112 = vrot.slane %v2098, %v2111
      %v2113 = vcombine.high %v2105, %v2105
      %v2114 = vcombine.high %v2112, %v2112
      %v2115 = vcombine.high %v1811, %v1811
      %v2117 = vunpack.c.l.s4 1983009808
      %v2118 = vunpack.c.0.s8 %v2117
      %v2119 = vlaneseq
      %v2120 = vshrl.u32 %v2119, 7
      %v2121 = vsub.s32 %v2118, %v2120
      %v2122 = vrot.slane %v1811, %v2121
      %v2124 = vunpack.c.l.s4 1983009808
      %v2125 = vunpack.c.0.s8 %v2124
      %v2126 = vlaneseq
      %v2127 = vshrl.u32 %v2126, 7
      %v2128 = vsub.s32 %v2125, %v2127
      %v2129 = vrot.slane %v2115, %v2128
      %v2130 = vcombine.high %v2122, %v2122
      %v2131 = vcombine.high %v2129, %v2129
      %v2132 = vcombine.high %v1812, %v1812
      %v2134 = vunpack.c.l.s4 1983009808
      %v2135 = vunpack.c.0.s8 %v2134
      %v2136 = vlaneseq
      %v2137 = vshrl.u32 %v2136, 7
      %v2138 = vsub.s32 %v2135, %v2137
      %v2139 = vrot.slane %v1812, %v2138
      %v2141 = vunpack.c.l.s4 1983009808
      %v2142 = vunpack.c.0.s8 %v2141
      %v2143 = vlaneseq
      %v2144 = vshrl.u32 %v2143, 7
      %v2145 = vsub.s32 %v2142, %v2144
      %v2146 = vrot.slane %v2132, %v2145
      %v2147 = vcombine.high %v2139, %v2139
      %v2148 = vcombine.high %v2146, %v2146
      %v2149 = vcombine.high %v1813, %v1813
      %v2151 = vunpack.c.l.s4 1983009808
      %v2152 = vunpack.c.0.s8 %v2151
      %v2153 = vlaneseq
      %v2154 = vshrl.u32 %v2153, 7
      %v2155 = vsub.s32 %v2152, %v2154
      %v2156 = vrot.slane %v1813, %v2155
      %v2158 = vunpack.c.l.s4 1983009808
      %v2159 = vunpack.c.0.s8 %v2158
      %v2160 = vlaneseq
      %v2161 = vshrl.u32 %v2160, 7
      %v2162 = vsub.s32 %v2159, %v2161
      %v2163 = vrot.slane %v2149, %v2162
      %v2164 = vcombine.high %v2156, %v2156
      %v2165 = vcombine.high %v2163, %v2163
      %v2166 = vcombine.high %v1814, %v1814
      %v2168 = vunpack.c.l.s4 1983009808
      %v2169 = vunpack.c.0.s8 %v2168
      %v2170 = vlaneseq
      %v2171 = vshrl.u32 %v2170, 7
      %v2172 = vsub.s32 %v2169, %v2171
      %v2173 = vrot.slane %v1814, %v2172
      %v2175 = vunpack.c.l.s4 1983009808
      %v2176 = vunpack.c.0.s8 %v2175
      %v2177 = vlaneseq
      %v2178 = vshrl.u32 %v2177, 7
      %v2179 = vsub.s32 %v2176, %v2178
      %v2180 = vrot.slane %v2166, %v2179
      %v2181 = vcombine.high %v2173, %v2173
      %v2182 = vcombine.high %v2180, %v2180
      %v2183 = vcombine.high %v1815, %v1815
      %v2185 = vunpack.c.l.s4 1983009808
      %v2186 = vunpack.c.0.s8 %v2185
      %v2187 = vlaneseq
      %v2188 = vshrl.u32 %v2187, 7
      %v2189 = vsub.s32 %v2186, %v2188
      %v2190 = vrot.slane %v1815, %v2189
      %v2192 = vunpack.c.l.s4 1983009808
      %v2193 = vunpack.c.0.s8 %v2192
      %v2194 = vlaneseq
      %v2195 = vshrl.u32 %v2194, 7
      %v2196 = vsub.s32 %v2193, %v2195
      %v2197 = vrot.slane %v2183, %v2196
      %v2198 = vcombine.high %v2190, %v2190
      %v2199 = vcombine.high %v2197, %v2197
      %v2200 = vcombine.high %v1816, %v1816
      %v2202 = vunpack.c.l.s4 1983009808
      %v2203 = vunpack.c.0.s8 %v2202
      %v2204 = vlaneseq
      %v2205 = vshrl.u32 %v2204, 7
      %v2206 = vsub.s32 %v2203, %v2205
      %v2207 = vrot.slane %v1816, %v2206
      %v2209 = vunpack.c.l.s4 1983009808
      %v2210 = vunpack.c.0.s8 %v2209
      %v2211 = vlaneseq
      %v2212 = vshrl.u32 %v2211, 7
      %v2213 = vsub.s32 %v2210, %v2212
      %v2214 = vrot.slane %v2200, %v2213
      %v2215 = vcombine.high %v2207, %v2207
      %v2216 = vcombine.high %v2214, %v2214
      %v2217 = vcombine.high %v1817, %v1817
      %v2219 = vunpack.c.l.s4 1983009808
      %v2220 = vunpack.c.0.s8 %v2219
      %v2221 = vlaneseq
      %v2222 = vshrl.u32 %v2221, 7
      %v2223 = vsub.s32 %v2220, %v2222
      %v2224 = vrot.slane %v1817, %v2223
      %v2226 = vunpack.c.l.s4 1983009808
      %v2227 = vunpack.c.0.s8 %v2226
      %v2228 = vlaneseq
      %v2229 = vshrl.u32 %v2228, 7
      %v2230 = vsub.s32 %v2227, %v2229
      %v2231 = vrot.slane %v2217, %v2230
      %v2232 = vcombine.high %v2224, %v2224
      %v2233 = vcombine.high %v2231, %v2231
      %v2234 = vcombine.high %v1818, %v1818
      %v2236 = vunpack.c.l.s4 1983009808
      %v2237 = vunpack.c.0.s8 %v2236
      %v2238 = vlaneseq
      %v2239 = vshrl.u32 %v2238, 7
      %v2240 = vsub.s32 %v2237, %v2239
      %v2241 = vrot.slane %v1818, %v2240
      %v2243 = vunpack.c.l.s4 1983009808
      %v2244 = vunpack.c.0.s8 %v2243
      %v2245 = vlaneseq
      %v2246 = vshrl.u32 %v2245, 7
      %v2247 = vsub.s32 %v2244, %v2246
      %v2248 = vrot.slane %v2234, %v2247
      %v2249 = vcombine.high %v2241, %v2241
      %v2250 = vcombine.high %v2248, %v2248
      %v2251 = vcombine.high %v1819, %v1819
      %v2253 = vunpack.c.l.s4 1983009808
      %v2254 = vunpack.c.0.s8 %v2253
      %v2255 = vlaneseq
      %v2256 = vshrl.u32 %v2255, 7
      %v2257 = vsub.s32 %v2254, %v2256
      %v2258 = vrot.slane %v1819, %v2257
      %v2260 = vunpack.c.l.s4 1983009808
      %v2261 = vunpack.c.0.s8 %v2260
      %v2262 = vlaneseq
      %v2263 = vshrl.u32 %v2262, 7
      %v2264 = vsub.s32 %v2261, %v2263
      %v2265 = vrot.slane %v2251, %v2264
      %v2266 = vcombine.high %v2258, %v2258
      %v2267 = vcombine.high %v2265, %v2265
      %v2268 = vcombine.high %v1820, %v1820
      %v2270 = vunpack.c.l.s4 1983009808
      %v2271 = vunpack.c.0.s8 %v2270
      %v2272 = vlaneseq
      %v2273 = vshrl.u32 %v2272, 7
      %v2274 = vsub.s32 %v2271, %v2273
      %v2275 = vrot.slane %v1820, %v2274
      %v2277 = vunpack.c.l.s4 1983009808
      %v2278 = vunpack.c.0.s8 %v2277
      %v2279 = vlaneseq
      %v2280 = vshrl.u32 %v2279, 7
      %v2281 = vsub.s32 %v2278, %v2280
      %v2282 = vrot.slane %v2268, %v2281
      %v2283 = vcombine.high %v2275, %v2275
      %v2284 = vcombine.high %v2282, %v2282
      %v2285 = vcombine.high %v1821, %v1821
      %v2287 = vunpack.c.l.s4 1983009808
      %v2288 = vunpack.c.0.s8 %v2287
      %v2289 = vlaneseq
      %v2290 = vshrl.u32 %v2289, 7
      %v2291 = vsub.s32 %v2288, %v2290
      %v2292 = vrot.slane %v1821, %v2291
      %v2294 = vunpack.c.l.s4 1983009808
      %v2295 = vunpack.c.0.s8 %v2294
      %v2296 = vlaneseq
      %v2297 = vshrl.u32 %v2296, 7
      %v2298 = vsub.s32 %v2295, %v2297
      %v2299 = vrot.slane %v2285, %v2298
      %v2300 = vcombine.high %v2292, %v2292
      %v2301 = vcombine.high %v2299, %v2299
      %v2302 = vcombine.high %v1822, %v1822
      %v2304 = vunpack.c.l.s4 1983009808
      %v2305 = vunpack.c.0.s8 %v2304
      %v2306 = vlaneseq
      %v2307 = vshrl.u32 %v2306, 7
      %v2308 = vsub.s32 %v2305, %v2307
      %v2309 = vrot.slane %v1822, %v2308
      %v2311 = vunpack.c.l.s4 1983009808
      %v2312 = vunpack.c.0.s8 %v2311
      %v2313 = vlaneseq
      %v2314 = vshrl.u32 %v2313, 7
      %v2315 = vsub.s32 %v2312, %v2314
      %v2316 = vrot.slane %v2302, %v2315
      %v2317 = vcombine.high %v2309, %v2309
      %v2318 = vcombine.high %v2316, %v2316
      %v2319 = vcombine.high %v1823, %v1823
      %v2321 = vunpack.c.l.s4 1983009808
      %v2322 = vunpack.c.0.s8 %v2321
      %v2323 = vlaneseq
      %v2324 = vshrl.u32 %v2323, 7
      %v2325 = vsub.s32 %v2322, %v2324
      %v2326 = vrot.slane %v1823, %v2325
      %v2328 = vunpack.c.l.s4 1983009808
      %v2329 = vunpack.c.0.s8 %v2328
      %v2330 = vlaneseq
      %v2331 = vshrl.u32 %v2330, 7
      %v2332 = vsub.s32 %v2329, %v2331
      %v2333 = vrot.slane %v2319, %v2332
      %v2334 = vcombine.high %v2326, %v2326
      %v2335 = vcombine.high %v2333, %v2333
      %v2336 = vcombine.high %v1824, %v1824
      %v2338 = vunpack.c.l.s4 1983009808
      %v2339 = vunpack.c.0.s8 %v2338
      %v2340 = vlaneseq
      %v2341 = vshrl.u32 %v2340, 7
      %v2342 = vsub.s32 %v2339, %v2341
      %v2343 = vrot.slane %v1824, %v2342
      %v2345 = vunpack.c.l.s4 1983009808
      %v2346 = vunpack.c.0.s8 %v2345
      %v2347 = vlaneseq
      %v2348 = vshrl.u32 %v2347, 7
      %v2349 = vsub.s32 %v2346, %v2348
      %v2350 = vrot.slane %v2336, %v2349
      %v2351 = vcombine.high %v2343, %v2343
      %v2352 = vcombine.high %v2350, %v2350
      %v2353 = vcombine.high %v1825, %v1825
      %v2355 = vunpack.c.l.s4 1983009808
      %v2356 = vunpack.c.0.s8 %v2355
      %v2357 = vlaneseq
      %v2358 = vshrl.u32 %v2357, 7
      %v2359 = vsub.s32 %v2356, %v2358
      %v2360 = vrot.slane %v1825, %v2359
      %v2362 = vunpack.c.l.s4 1983009808
      %v2363 = vunpack.c.0.s8 %v2362
      %v2364 = vlaneseq
      %v2365 = vshrl.u32 %v2364, 7
      %v2366 = vsub.s32 %v2363, %v2365
      %v2367 = vrot.slane %v2353, %v2366
      %v2368 = vcombine.high %v2360, %v2360
      %v2369 = vcombine.high %v2367, %v2367
      %v2370 = vcombine.high %v1826, %v1826
      %v2372 = vunpack.c.l.s4 1983009808
      %v2373 = vunpack.c.0.s8 %v2372
      %v2374 = vlaneseq
      %v2375 = vshrl.u32 %v2374, 7
      %v2376 = vsub.s32 %v2373, %v2375
      %v2377 = vrot.slane %v1826, %v2376
      %v2379 = vunpack.c.l.s4 1983009808
      %v2380 = vunpack.c.0.s8 %v2379
      %v2381 = vlaneseq
      %v2382 = vshrl.u32 %v2381, 7
      %v2383 = vsub.s32 %v2380, %v2382
      %v2384 = vrot.slane %v2370, %v2383
      %v2385 = vcombine.high %v2377, %v2377
      %v2386 = vcombine.high %v2384, %v2384
      %v2387 = vcombine.high %v1827, %v1827
      %v2389 = vunpack.c.l.s4 1983009808
      %v2390 = vunpack.c.0.s8 %v2389
      %v2391 = vlaneseq
      %v2392 = vshrl.u32 %v2391, 7
      %v2393 = vsub.s32 %v2390, %v2392
      %v2394 = vrot.slane %v1827, %v2393
      %v2396 = vunpack.c.l.s4 1983009808
      %v2397 = vunpack.c.0.s8 %v2396
      %v2398 = vlaneseq
      %v2399 = vshrl.u32 %v2398, 7
      %v2400 = vsub.s32 %v2397, %v2399
      %v2401 = vrot.slane %v2387, %v2400
      %v2402 = vcombine.high %v2394, %v2394
      %v2403 = vcombine.high %v2401, %v2401
      %v2532 = vrot.slane %v1867, 7
      %v2533 = vrot.slane %v2532, 2
      %v2534 = vrot.slane %v1875, 7
      %v2535 = vrot.slane %v2534, 2
      %v2536 = vrot.slane %v1874, 7
      %v2537 = vrot.slane %v2536, 2
      %v2538 = vrot.slane %v1876, 7
      %v2539 = vrot.slane %v2538, 2
      %v2540 = vrot.slane %v1884, 7
      %v2541 = vrot.slane %v2540, 2
      %v2542 = vrot.slane %v1892, 7
      %v2543 = vrot.slane %v2542, 2
      %v2544 = vrot.slane %v1891, 7
      %v2545 = vrot.slane %v2544, 2
      %v2546 = vrot.slane %v1893, 7
      %v2547 = vrot.slane %v2546, 2
      %v2548 = vrot.slane %v1901, 7
      %v2549 = vrot.slane %v2548, 2
      %v2550 = vrot.slane %v1909, 7
      %v2551 = vrot.slane %v2550, 2
      %v2552 = vrot.slane %v1908, 7
      %v2553 = vrot.slane %v2552, 2
      %v2554 = vrot.slane %v1910, 7
      %v2555 = vrot.slane %v2554, 2
      %v2556 = vrot.slane %v1918, 7
      %v2557 = vrot.slane %v2556, 2
      %v2558 = vrot.slane %v1926, 7
      %v2559 = vrot.slane %v2558, 2
      %v2560 = vrot.slane %v1925, 7
      %v2561 = vrot.slane %v2560, 2
      %v2562 = vrot.slane %v1927, 7
      %v2563 = vrot.slane %v2562, 2
      %v2564 = vrot.slane %v1935, 7
      %v2565 = vrot.slane %v2564, 2
      %v2566 = vrot.slane %v1943, 7
      %v2567 = vrot.slane %v2566, 2
      %v2568 = vrot.slane %v1942, 7
      %v2569 = vrot.slane %v2568, 2
      %v2570 = vrot.slane %v1944, 7
      %v2571 = vrot.slane %v2570, 2
      %v2572 = vrot.slane %v1952, 7
      %v2573 = vrot.slane %v2572, 2
      %v2574 = vrot.slane %v1960, 7
      %v2575 = vrot.slane %v2574, 2
      %v2576 = vrot.slane %v1959, 7
      %v2577 = vrot.slane %v2576, 2
      %v2578 = vrot.slane %v1961, 7
      %v2579 = vrot.slane %v2578, 2
      %v2580 = vrot.slane %v1969, 7
      %v2581 = vrot.slane %v2580, 2
      %v2582 = vrot.slane %v1977, 7
      %v2583 = vrot.slane %v2582, 2
      %v2584 = vrot.slane %v1976, 7
      %v2585 = vrot.slane %v2584, 2
      %v2586 = vrot.slane %v1978, 7
      %v2587 = vrot.slane %v2586, 2
      %v2588 = vrot.slane %v1986, 7
      %v2589 = vrot.slane %v2588, 2
      %v2590 = vrot.slane %v1994, 7
      %v2591 = vrot.slane %v2590, 2
      %v2592 = vrot.slane %v1993, 7
      %v2593 = vrot.slane %v2592, 2
      %v2594 = vrot.slane %v1995, 7
      %v2595 = vrot.slane %v2594, 2
      %v2596 = vrot.slane %v2003, 7
      %v2597 = vrot.slane %v2596, 2
      %v2598 = vrot.slane %v2011, 7
      %v2599 = vrot.slane %v2598, 2
      %v2600 = vrot.slane %v2010, 7
      %v2601 = vrot.slane %v2600, 2
      %v2602 = vrot.slane %v2012, 7
      %v2603 = vrot.slane %v2602, 2
      %v2604 = vrot.slane %v2020, 7
      %v2605 = vrot.slane %v2604, 2
      %v2606 = vrot.slane %v2028, 7
      %v2607 = vrot.slane %v2606, 2
      %v2608 = vrot.slane %v2027, 7
      %v2609 = vrot.slane %v2608, 2
      %v2610 = vrot.slane %v2029, 7
      %v2611 = vrot.slane %v2610, 2
      %v2612 = vrot.slane %v2037, 7
      %v2613 = vrot.slane %v2612, 2
      %v2614 = vrot.slane %v2045, 7
      %v2615 = vrot.slane %v2614, 2
      %v2616 = vrot.slane %v2044, 7
      %v2617 = vrot.slane %v2616, 2
      %v2618 = vrot.slane %v2046, 7
      %v2619 = vrot.slane %v2618, 2
      %v2620 = vrot.slane %v2054, 7
      %v2621 = vrot.slane %v2620, 2
      %v2622 = vrot.slane %v2062, 7
      %v2623 = vrot.slane %v2622, 2
      %v2624 = vrot.slane %v2061, 7
      %v2625 = vrot.slane %v2624, 2
      %v2626 = vrot.slane %v2063, 7
      %v2627 = vrot.slane %v2626, 2
      %v2628 = vrot.slane %v2071, 7
      %v2629 = vrot.slane %v2628, 2
      %v2630 = vrot.slane %v2079, 7
      %v2631 = vrot.slane %v2630, 2
      %v2632 = vrot.slane %v2078, 7
      %v2633 = vrot.slane %v2632, 2
      %v2634 = vrot.slane %v2080, 7
      %v2635 = vrot.slane %v2634, 2
      %v2636 = vrot.slane %v2088, 7
      %v2637 = vrot.slane %v2636, 2
      %v2638 = vrot.slane %v2096, 7
      %v2639 = vrot.slane %v2638, 2
      %v2640 = vrot.slane %v2095, 7
      %v2641 = vrot.slane %v2640, 2
      %v2642 = vrot.slane %v2097, 7
      %v2643 = vrot.slane %v2642, 2
      %v2644 = vrot.slane %v2105, 7
      %v2645 = vrot.slane %v2644, 2
      %v2646 = vrot.slane %v2113, 7
      %v2647 = vrot.slane %v2646, 2
      %v2648 = vrot.slane %v2112, 7
      %v2649 = vrot.slane %v2648, 2
      %v2650 = vrot.slane %v2114, 7
      %v2651 = vrot.slane %v2650, 2
      %v2652 = vrot.slane %v2122, 7
      %v2653 = vrot.slane %v2652, 2
      %v2654 = vrot.slane %v2130, 7
      %v2655 = vrot.slane %v2654, 2
      %v2656 = vrot.slane %v2129, 7
      %v2657 = vrot.slane %v2656, 2
      %v2658 = vrot.slane %v2131, 7
      %v2659 = vrot.slane %v2658, 2
      %v2660 = vrot.slane %v2139, 7
      %v2661 = vrot.slane %v2660, 2
      %v2662 = vrot.slane %v2147, 7
      %v2663 = vrot.slane %v2662, 2
      %v2664 = vrot.slane %v2146, 7
      %v2665 = vrot.slane %v2664, 2
      %v2666 = vrot.slane %v2148, 7
      %v2667 = vrot.slane %v2666, 2
      %v2668 = vrot.slane %v2156, 7
      %v2669 = vrot.slane %v2668, 2
      %v2670 = vrot.slane %v2164, 7
      %v2671 = vrot.slane %v2670, 2
      %v2672 = vrot.slane %v2163, 7
      %v2673 = vrot.slane %v2672, 2
      %v2674 = vrot.slane %v2165, 7
      %v2675 = vrot.slane %v2674, 2
      %v2676 = vrot.slane %v2173, 7
      %v2677 = vrot.slane %v2676, 2
      %v2678 = vrot.slane %v2181, 7
      %v2679 = vrot.slane %v2678, 2
      %v2680 = vrot.slane %v2180, 7
      %v2681 = vrot.slane %v2680, 2
      %v2682 = vrot.slane %v2182, 7
      %v2683 = vrot.slane %v2682, 2
      %v2684 = vrot.slane %v2190, 7
      %v2685 = vrot.slane %v2684, 2
      %v2686 = vrot.slane %v2198, 7
      %v2687 = vrot.slane %v2686, 2
      %v2688 = vrot.slane %v2197, 7
      %v2689 = vrot.slane %v2688, 2
      %v2690 = vrot.slane %v2199, 7
      %v2691 = vrot.slane %v2690, 2
      %v2692 = vrot.slane %v2207, 7
      %v2693 = vrot.slane %v2692, 2
      %v2694 = vrot.slane %v2215, 7
      %v2695 = vrot.slane %v2694, 2
      %v2696 = vrot.slane %v2214, 7
      %v2697 = vrot.slane %v2696, 2
      %v2698 = vrot.slane %v2216, 7
      %v2699 = vrot.slane %v2698, 2
      %v2700 = vrot.slane %v2224, 7
      %v2701 = vrot.slane %v2700, 2
      %v2702 = vrot.slane %v2232, 7
      %v2703 = vrot.slane %v2702, 2
      %v2704 = vrot.slane %v2231, 7
      %v2705 = vrot.slane %v2704, 2
      %v2706 = vrot.slane %v2233, 7
      %v2707 = vrot.slane %v2706, 2
      %v2708 = vrot.slane %v2241, 7
      %v2709 = vrot.slane %v2708, 2
      %v2710 = vrot.slane %v2249, 7
      %v2711 = vrot.slane %v2710, 2
      %v2712 = vrot.slane %v2248, 7
      %v2713 = vrot.slane %v2712, 2
      %v2714 = vrot.slane %v2250, 7
      %v2715 = vrot.slane %v2714, 2
      %v2716 = vrot.slane %v2258, 7
      %v2717 = vrot.slane %v2716, 2
      %v2718 = vrot.slane %v2266, 7
      %v2719 = vrot.slane %v2718, 2
      %v2720 = vrot.slane %v2265, 7
      %v2721 = vrot.slane %v2720, 2
      %v2722 = vrot.slane %v2267, 7
      %v2723 = vrot.slane %v2722, 2
      %v2724 = vrot.slane %v2275, 7
      %v2725 = vrot.slane %v2724, 2
      %v2726 = vrot.slane %v2283, 7
      %v2727 = vrot.slane %v2726, 2
      %v2728 = vrot.slane %v2282, 7
      %v2729 = vrot.slane %v2728, 2
      %v2730 = vrot.slane %v2284, 7
      %v2731 = vrot.slane %v2730, 2
      %v2732 = vrot.slane %v2292, 7
      %v2733 = vrot.slane %v2732, 2
      %v2734 = vrot.slane %v2300, 7
      %v2735 = vrot.slane %v2734, 2
      %v2736 = vrot.slane %v2299, 7
      %v2737 = vrot.slane %v2736, 2
      %v2738 = vrot.slane %v2301, 7
      %v2739 = vrot.slane %v2738, 2
      %v2740 = vrot.slane %v2309, 7
      %v2741 = vrot.slane %v2740, 2
      %v2742 = vrot.slane %v2317, 7
      %v2743 = vrot.slane %v2742, 2
      %v2744 = vrot.slane %v2316, 7
      %v2745 = vrot.slane %v2744, 2
      %v2746 = vrot.slane %v2318, 7
      %v2747 = vrot.slane %v2746, 2
      %v2748 = vrot.slane %v2326, 7
      %v2749 = vrot.slane %v2748, 2
      %v2750 = vrot.slane %v2334, 7
      %v2751 = vrot.slane %v2750, 2
      %v2752 = vrot.slane %v2333, 7
      %v2753 = vrot.slane %v2752, 2
      %v2754 = vrot.slane %v2335, 7
      %v2755 = vrot.slane %v2754, 2
      %v2756 = vrot.slane %v2343, 7
      %v2757 = vrot.slane %v2756, 2
      %v2758 = vrot.slane %v2351, 7
      %v2759 = vrot.slane %v2758, 2
      %v2760 = vrot.slane %v2350, 7
      %v2761 = vrot.slane %v2760, 2
      %v2762 = vrot.slane %v2352, 7
      %v2763 = vrot.slane %v2762, 2
      %v2764 = vrot.slane %v2360, 7
      %v2765 = vrot.slane %v2764, 2
      %v2766 = vrot.slane %v2368, 7
      %v2767 = vrot.slane %v2766, 2
      %v2768 = vrot.slane %v2367, 7
      %v2769 = vrot.slane %v2768, 2
      %v2770 = vrot.slane %v2369, 7
      %v2771 = vrot.slane %v2770, 2
      %v2772 = vrot.slane %v2377, 7
      %v2773 = vrot.slane %v2772, 2
      %v2774 = vrot.slane %v2385, 7
      %v2775 = vrot.slane %v2774, 2
      %v2776 = vrot.slane %v2384, 7
      %v2777 = vrot.slane %v2776, 2
      %v2778 = vrot.slane %v2386, 7
      %v2779 = vrot.slane %v2778, 2
      %v2780 = vrot.slane %v2394, 7
      %v2781 = vrot.slane %v2780, 2
      %v2782 = vrot.slane %v2402, 7
      %v2783 = vrot.slane %v2782, 2
      %v2784 = vrot.slane %v2401, 7
      %v2785 = vrot.slane %v2784, 2
      %v2786 = vrot.slane %v2403, 7
      %v2787 = vrot.slane %v2786, 2
      %v2916 = vmax.f32 %v1867, %v2533
      %v2917 = vmax.f32 %v1875, %v2535
      %v2918 = vmax.f32 %v1874, %v2537
      %v2919 = vmax.f32 %v1876, %v2539
      %v2920 = vmax.f32 %v1884, %v2541
      %v2921 = vmax.f32 %v1892, %v2543
      %v2922 = vmax.f32 %v1891, %v2545
      %v2923 = vmax.f32 %v1893, %v2547
      %v2924 = vmax.f32 %v1901, %v2549
      %v2925 = vmax.f32 %v1909, %v2551
      %v2926 = vmax.f32 %v1908, %v2553
      %v2927 = vmax.f32 %v1910, %v2555
      %v2928 = vmax.f32 %v1918, %v2557
      %v2929 = vmax.f32 %v1926, %v2559
      %v2930 = vmax.f32 %v1925, %v2561
      %v2931 = vmax.f32 %v1927, %v2563
      %v2932 = vmax.f32 %v1935, %v2565
      %v2933 = vmax.f32 %v1943, %v2567
      %v2934 = vmax.f32 %v1942, %v2569
      %v2935 = vmax.f32 %v1944, %v2571
      %v2936 = vmax.f32 %v1952, %v2573
      %v2937 = vmax.f32 %v1960, %v2575
      %v2938 = vmax.f32 %v1959, %v2577
      %v2939 = vmax.f32 %v1961, %v2579
      %v2940 = vmax.f32 %v1969, %v2581
      %v2941 = vmax.f32 %v1977, %v2583
      %v2942 = vmax.f32 %v1976, %v2585
      %v2943 = vmax.f32 %v1978, %v2587
      %v2944 = vmax.f32 %v1986, %v2589
      %v2945 = vmax.f32 %v1994, %v2591
      %v2946 = vmax.f32 %v1993, %v2593
      %v2947 = vmax.f32 %v1995, %v2595
      %v2948 = vmax.f32 %v2003, %v2597
      %v2949 = vmax.f32 %v2011, %v2599
      %v2950 = vmax.f32 %v2010, %v2601
      %v2951 = vmax.f32 %v2012, %v2603
      %v2952 = vmax.f32 %v2020, %v2605
      %v2953 = vmax.f32 %v2028, %v2607
      %v2954 = vmax.f32 %v2027, %v2609
      %v2955 = vmax.f32 %v2029, %v2611
      %v2956 = vmax.f32 %v2037, %v2613
      %v2957 = vmax.f32 %v2045, %v2615
      %v2958 = vmax.f32 %v2044, %v2617
      %v2959 = vmax.f32 %v2046, %v2619
      %v2960 = vmax.f32 %v2054, %v2621
      %v2961 = vmax.f32 %v2062, %v2623
      %v2962 = vmax.f32 %v2061, %v2625
      %v2963 = vmax.f32 %v2063, %v2627
      %v2964 = vmax.f32 %v2071, %v2629
      %v2965 = vmax.f32 %v2079, %v2631
      %v2966 = vmax.f32 %v2078, %v2633
      %v2967 = vmax.f32 %v2080, %v2635
      %v2968 = vmax.f32 %v2088, %v2637
      %v2969 = vmax.f32 %v2096, %v2639
      %v2970 = vmax.f32 %v2095, %v2641
      %v2971 = vmax.f32 %v2097, %v2643
      %v2972 = vmax.f32 %v2105, %v2645
      %v2973 = vmax.f32 %v2113, %v2647
      %v2974 = vmax.f32 %v2112, %v2649
      %v2975 = vmax.f32 %v2114, %v2651
      %v2976 = vmax.f32 %v2122, %v2653
      %v2977 = vmax.f32 %v2130, %v2655
      %v2978 = vmax.f32 %v2129, %v2657
      %v2979 = vmax.f32 %v2131, %v2659
      %v2980 = vmax.f32 %v2139, %v2661
      %v2981 = vmax.f32 %v2147, %v2663
      %v2982 = vmax.f32 %v2146, %v2665
      %v2983 = vmax.f32 %v2148, %v2667
      %v2984 = vmax.f32 %v2156, %v2669
      %v2985 = vmax.f32 %v2164, %v2671
      %v2986 = vmax.f32 %v2163, %v2673
      %v2987 = vmax.f32 %v2165, %v2675
      %v2988 = vmax.f32 %v2173, %v2677
      %v2989 = vmax.f32 %v2181, %v2679
      %v2990 = vmax.f32 %v2180, %v2681
      %v2991 = vmax.f32 %v2182, %v2683
      %v2992 = vmax.f32 %v2190, %v2685
      %v2993 = vmax.f32 %v2198, %v2687
      %v2994 = vmax.f32 %v2197, %v2689
      %v2995 = vmax.f32 %v2199, %v2691
      %v2996 = vmax.f32 %v2207, %v2693
      %v2997 = vmax.f32 %v2215, %v2695
      %v2998 = vmax.f32 %v2214, %v2697
      %v2999 = vmax.f32 %v2216, %v2699
      %v3000 = vmax.f32 %v2224, %v2701
      %v3001 = vmax.f32 %v2232, %v2703
      %v3002 = vmax.f32 %v2231, %v2705
      %v3003 = vmax.f32 %v2233, %v2707
      %v3004 = vmax.f32 %v2241, %v2709
      %v3005 = vmax.f32 %v2249, %v2711
      %v3006 = vmax.f32 %v2248, %v2713
      %v3007 = vmax.f32 %v2250, %v2715
      %v3008 = vmax.f32 %v2258, %v2717
      %v3009 = vmax.f32 %v2266, %v2719
      %v3010 = vmax.f32 %v2265, %v2721
      %v3011 = vmax.f32 %v2267, %v2723
      %v3012 = vmax.f32 %v2275, %v2725
      %v3013 = vmax.f32 %v2283, %v2727
      %v3014 = vmax.f32 %v2282, %v2729
      %v3015 = vmax.f32 %v2284, %v2731
      %v3016 = vmax.f32 %v2292, %v2733
      %v3017 = vmax.f32 %v2300, %v2735
      %v3018 = vmax.f32 %v2299, %v2737
      %v3019 = vmax.f32 %v2301, %v2739
      %v3020 = vmax.f32 %v2309, %v2741
      %v3021 = vmax.f32 %v2317, %v2743
      %v3022 = vmax.f32 %v2316, %v2745
      %v3023 = vmax.f32 %v2318, %v2747
      %v3024 = vmax.f32 %v2326, %v2749
      %v3025 = vmax.f32 %v2334, %v2751
      %v3026 = vmax.f32 %v2333, %v2753
      %v3027 = vmax.f32 %v2335, %v2755
      %v3028 = vmax.f32 %v2343, %v2757
      %v3029 = vmax.f32 %v2351, %v2759
      %v3030 = vmax.f32 %v2350, %v2761
      %v3031 = vmax.f32 %v2352, %v2763
      %v3032 = vmax.f32 %v2360, %v2765
      %v3033 = vmax.f32 %v2368, %v2767
      %v3034 = vmax.f32 %v2367, %v2769
      %v3035 = vmax.f32 %v2369, %v2771
      %v3036 = vmax.f32 %v2377, %v2773
      %v3037 = vmax.f32 %v2385, %v2775
      %v3038 = vmax.f32 %v2384, %v2777
      %v3039 = vmax.f32 %v2386, %v2779
      %v3040 = vmax.f32 %v2394, %v2781
      %v3041 = vmax.f32 %v2402, %v2783
      %v3042 = vmax.f32 %v2401, %v2785
      %v3043 = vmax.f32 %v2403, %v2787
      %v3044 = vmax.f32 %v2916, %v2924
      %v3045 = vmax.f32 %v2917, %v2925
      %v3046 = vmax.f32 %v2918, %v2926
      %v3047 = vmax.f32 %v2919, %v2927
      %v3048 = vmax.f32 %v2920, %v2928
      %v3049 = vmax.f32 %v2921, %v2929
      %v3050 = vmax.f32 %v2922, %v2930
      %v3051 = vmax.f32 %v2923, %v2931
      %v3052 = vmax.f32 %v2932, %v2940
      %v3053 = vmax.f32 %v2933, %v2941
      %v3054 = vmax.f32 %v2934, %v2942
      %v3055 = vmax.f32 %v2935, %v2943
      %v3056 = vmax.f32 %v2936, %v2944
      %v3057 = vmax.f32 %v2937, %v2945
      %v3058 = vmax.f32 %v2938, %v2946
      %v3059 = vmax.f32 %v2939, %v2947
      %v3060 = vmax.f32 %v2948, %v2956
      %v3061 = vmax.f32 %v2949, %v2957
      %v3062 = vmax.f32 %v2950, %v2958
      %v3063 = vmax.f32 %v2951, %v2959
      %v3064 = vmax.f32 %v2952, %v2960
      %v3065 = vmax.f32 %v2953, %v2961
      %v3066 = vmax.f32 %v2954, %v2962
      %v3067 = vmax.f32 %v2955, %v2963
      %v3068 = vmax.f32 %v2964, %v2972
      %v3069 = vmax.f32 %v2965, %v2973
      %v3070 = vmax.f32 %v2966, %v2974
      %v3071 = vmax.f32 %v2967, %v2975
      %v3072 = vmax.f32 %v2968, %v2976
      %v3073 = vmax.f32 %v2969, %v2977
      %v3074 = vmax.f32 %v2970, %v2978
      %v3075 = vmax.f32 %v2971, %v2979
      %v3076 = vmax.f32 %v2980, %v2988
      %v3077 = vmax.f32 %v2981, %v2989
      %v3078 = vmax.f32 %v2982, %v2990
      %v3079 = vmax.f32 %v2983, %v2991
      %v3080 = vmax.f32 %v2984, %v2992
      %v3081 = vmax.f32 %v2985, %v2993
      %v3082 = vmax.f32 %v2986, %v2994
      %v3083 = vmax.f32 %v2987, %v2995
      %v3084 = vmax.f32 %v2996, %v3004
      %v3085 = vmax.f32 %v2997, %v3005
      %v3086 = vmax.f32 %v2998, %v3006
      %v3087 = vmax.f32 %v2999, %v3007
      %v3088 = vmax.f32 %v3000, %v3008
      %v3089 = vmax.f32 %v3001, %v3009
      %v3090 = vmax.f32 %v3002, %v3010
      %v3091 = vmax.f32 %v3003, %v3011
      %v3092 = vmax.f32 %v3012, %v3020
      %v3093 = vmax.f32 %v3013, %v3021
      %v3094 = vmax.f32 %v3014, %v3022
      %v3095 = vmax.f32 %v3015, %v3023
      %v3096 = vmax.f32 %v3016, %v3024
      %v3097 = vmax.f32 %v3017, %v3025
      %v3098 = vmax.f32 %v3018, %v3026
      %v3099 = vmax.f32 %v3019, %v3027
      %v3100 = vmax.f32 %v3028, %v3036
      %v3101 = vmax.f32 %v3029, %v3037
      %v3102 = vmax.f32 %v3030, %v3038
      %v3103 = vmax.f32 %v3031, %v3039
      %v3104 = vmax.f32 %v3032, %v3040
      %v3105 = vmax.f32 %v3033, %v3041
      %v3106 = vmax.f32 %v3034, %v3042
      %v3107 = vmax.f32 %v3035, %v3043
      %v3172 = vlaneseq
      %v3173 = vshrl.u32 %v3172, 7
      %v3174 = vsub.s32 0, %v3173
      %v3175 = vrot.slane %v3044, %v3174
      %v3176 = vlaneseq
      %v3177 = vshrl.u32 %v3176, 7
      %v3178 = vsub.s32 0, %v3177
      %v3179 = vrot.slane %v3045, %v3178
      %v3180 = vlaneseq
      %v3181 = vshrl.u32 %v3180, 7
      %v3182 = vsub.s32 0, %v3181
      %v3183 = vrot.slane %v3046, %v3182
      %v3184 = vlaneseq
      %v3185 = vshrl.u32 %v3184, 7
      %v3186 = vsub.s32 0, %v3185
      %v3187 = vrot.slane %v3047, %v3186
      %v3188 = vlaneseq
      %v3189 = vshrl.u32 %v3188, 7
      %v3190 = vsub.s32 0, %v3189
      %v3191 = vrot.slane %v3048, %v3190
      %v3192 = vlaneseq
      %v3193 = vshrl.u32 %v3192, 7
      %v3194 = vsub.s32 0, %v3193
      %v3195 = vrot.slane %v3049, %v3194
      %v3196 = vlaneseq
      %v3197 = vshrl.u32 %v3196, 7
      %v3198 = vsub.s32 0, %v3197
      %v3199 = vrot.slane %v3050, %v3198
      %v3200 = vlaneseq
      %v3201 = vshrl.u32 %v3200, 7
      %v3202 = vsub.s32 0, %v3201
      %v3203 = vrot.slane %v3051, %v3202
      %v3204 = vlaneseq
      %v3205 = vshrl.u32 %v3204, 7
      %v3206 = vsub.s32 0, %v3205
      %v3207 = vrot.slane %v3052, %v3206
      %v3208 = vlaneseq
      %v3209 = vshrl.u32 %v3208, 7
      %v3210 = vsub.s32 0, %v3209
      %v3211 = vrot.slane %v3053, %v3210
      %v3212 = vlaneseq
      %v3213 = vshrl.u32 %v3212, 7
      %v3214 = vsub.s32 0, %v3213
      %v3215 = vrot.slane %v3054, %v3214
      %v3216 = vlaneseq
      %v3217 = vshrl.u32 %v3216, 7
      %v3218 = vsub.s32 0, %v3217
      %v3219 = vrot.slane %v3055, %v3218
      %v3220 = vlaneseq
      %v3221 = vshrl.u32 %v3220, 7
      %v3222 = vsub.s32 0, %v3221
      %v3223 = vrot.slane %v3056, %v3222
      %v3224 = vlaneseq
      %v3225 = vshrl.u32 %v3224, 7
      %v3226 = vsub.s32 0, %v3225
      %v3227 = vrot.slane %v3057, %v3226
      %v3228 = vlaneseq
      %v3229 = vshrl.u32 %v3228, 7
      %v3230 = vsub.s32 0, %v3229
      %v3231 = vrot.slane %v3058, %v3230
      %v3232 = vlaneseq
      %v3233 = vshrl.u32 %v3232, 7
      %v3234 = vsub.s32 0, %v3233
      %v3235 = vrot.slane %v3059, %v3234
      %v3236 = vlaneseq
      %v3237 = vshrl.u32 %v3236, 7
      %v3238 = vsub.s32 0, %v3237
      %v3239 = vrot.slane %v3060, %v3238
      %v3240 = vlaneseq
      %v3241 = vshrl.u32 %v3240, 7
      %v3242 = vsub.s32 0, %v3241
      %v3243 = vrot.slane %v3061, %v3242
      %v3244 = vlaneseq
      %v3245 = vshrl.u32 %v3244, 7
      %v3246 = vsub.s32 0, %v3245
      %v3247 = vrot.slane %v3062, %v3246
      %v3248 = vlaneseq
      %v3249 = vshrl.u32 %v3248, 7
      %v3250 = vsub.s32 0, %v3249
      %v3251 = vrot.slane %v3063, %v3250
      %v3252 = vlaneseq
      %v3253 = vshrl.u32 %v3252, 7
      %v3254 = vsub.s32 0, %v3253
      %v3255 = vrot.slane %v3064, %v3254
      %v3256 = vlaneseq
      %v3257 = vshrl.u32 %v3256, 7
      %v3258 = vsub.s32 0, %v3257
      %v3259 = vrot.slane %v3065, %v3258
      %v3260 = vlaneseq
      %v3261 = vshrl.u32 %v3260, 7
      %v3262 = vsub.s32 0, %v3261
      %v3263 = vrot.slane %v3066, %v3262
      %v3264 = vlaneseq
      %v3265 = vshrl.u32 %v3264, 7
      %v3266 = vsub.s32 0, %v3265
      %v3267 = vrot.slane %v3067, %v3266
      %v3268 = vlaneseq
      %v3269 = vshrl.u32 %v3268, 7
      %v3270 = vsub.s32 0, %v3269
      %v3271 = vrot.slane %v3068, %v3270
      %v3272 = vlaneseq
      %v3273 = vshrl.u32 %v3272, 7
      %v3274 = vsub.s32 0, %v3273
      %v3275 = vrot.slane %v3069, %v3274
      %v3276 = vlaneseq
      %v3277 = vshrl.u32 %v3276, 7
      %v3278 = vsub.s32 0, %v3277
      %v3279 = vrot.slane %v3070, %v3278
      %v3280 = vlaneseq
      %v3281 = vshrl.u32 %v3280, 7
      %v3282 = vsub.s32 0, %v3281
      %v3283 = vrot.slane %v3071, %v3282
      %v3284 = vlaneseq
      %v3285 = vshrl.u32 %v3284, 7
      %v3286 = vsub.s32 0, %v3285
      %v3287 = vrot.slane %v3072, %v3286
      %v3288 = vlaneseq
      %v3289 = vshrl.u32 %v3288, 7
      %v3290 = vsub.s32 0, %v3289
      %v3291 = vrot.slane %v3073, %v3290
      %v3292 = vlaneseq
      %v3293 = vshrl.u32 %v3292, 7
      %v3294 = vsub.s32 0, %v3293
      %v3295 = vrot.slane %v3074, %v3294
      %v3296 = vlaneseq
      %v3297 = vshrl.u32 %v3296, 7
      %v3298 = vsub.s32 0, %v3297
      %v3299 = vrot.slane %v3075, %v3298
      %v3300 = vlaneseq
      %v3301 = vshrl.u32 %v3300, 7
      %v3302 = vsub.s32 0, %v3301
      %v3303 = vrot.slane %v3076, %v3302
      %v3304 = vlaneseq
      %v3305 = vshrl.u32 %v3304, 7
      %v3306 = vsub.s32 0, %v3305
      %v3307 = vrot.slane %v3077, %v3306
      %v3308 = vlaneseq
      %v3309 = vshrl.u32 %v3308, 7
      %v3310 = vsub.s32 0, %v3309
      %v3311 = vrot.slane %v3078, %v3310
      %v3312 = vlaneseq
      %v3313 = vshrl.u32 %v3312, 7
      %v3314 = vsub.s32 0, %v3313
      %v3315 = vrot.slane %v3079, %v3314
      %v3316 = vlaneseq
      %v3317 = vshrl.u32 %v3316, 7
      %v3318 = vsub.s32 0, %v3317
      %v3319 = vrot.slane %v3080, %v3318
      %v3320 = vlaneseq
      %v3321 = vshrl.u32 %v3320, 7
      %v3322 = vsub.s32 0, %v3321
      %v3323 = vrot.slane %v3081, %v3322
      %v3324 = vlaneseq
      %v3325 = vshrl.u32 %v3324, 7
      %v3326 = vsub.s32 0, %v3325
      %v3327 = vrot.slane %v3082, %v3326
      %v3328 = vlaneseq
      %v3329 = vshrl.u32 %v3328, 7
      %v3330 = vsub.s32 0, %v3329
      %v3331 = vrot.slane %v3083, %v3330
      %v3332 = vlaneseq
      %v3333 = vshrl.u32 %v3332, 7
      %v3334 = vsub.s32 0, %v3333
      %v3335 = vrot.slane %v3084, %v3334
      %v3336 = vlaneseq
      %v3337 = vshrl.u32 %v3336, 7
      %v3338 = vsub.s32 0, %v3337
      %v3339 = vrot.slane %v3085, %v3338
      %v3340 = vlaneseq
      %v3341 = vshrl.u32 %v3340, 7
      %v3342 = vsub.s32 0, %v3341
      %v3343 = vrot.slane %v3086, %v3342
      %v3344 = vlaneseq
      %v3345 = vshrl.u32 %v3344, 7
      %v3346 = vsub.s32 0, %v3345
      %v3347 = vrot.slane %v3087, %v3346
      %v3348 = vlaneseq
      %v3349 = vshrl.u32 %v3348, 7
      %v3350 = vsub.s32 0, %v3349
      %v3351 = vrot.slane %v3088, %v3350
      %v3352 = vlaneseq
      %v3353 = vshrl.u32 %v3352, 7
      %v3354 = vsub.s32 0, %v3353
      %v3355 = vrot.slane %v3089, %v3354
      %v3356 = vlaneseq
      %v3357 = vshrl.u32 %v3356, 7
      %v3358 = vsub.s32 0, %v3357
      %v3359 = vrot.slane %v3090, %v3358
      %v3360 = vlaneseq
      %v3361 = vshrl.u32 %v3360, 7
      %v3362 = vsub.s32 0, %v3361
      %v3363 = vrot.slane %v3091, %v3362
      %v3364 = vlaneseq
      %v3365 = vshrl.u32 %v3364, 7
      %v3366 = vsub.s32 0, %v3365
      %v3367 = vrot.slane %v3092, %v3366
      %v3368 = vlaneseq
      %v3369 = vshrl.u32 %v3368, 7
      %v3370 = vsub.s32 0, %v3369
      %v3371 = vrot.slane %v3093, %v3370
      %v3372 = vlaneseq
      %v3373 = vshrl.u32 %v3372, 7
      %v3374 = vsub.s32 0, %v3373
      %v3375 = vrot.slane %v3094, %v3374
      %v3376 = vlaneseq
      %v3377 = vshrl.u32 %v3376, 7
      %v3378 = vsub.s32 0, %v3377
      %v3379 = vrot.slane %v3095, %v3378
      %v3380 = vlaneseq
      %v3381 = vshrl.u32 %v3380, 7
      %v3382 = vsub.s32 0, %v3381
      %v3383 = vrot.slane %v3096, %v3382
      %v3384 = vlaneseq
      %v3385 = vshrl.u32 %v3384, 7
      %v3386 = vsub.s32 0, %v3385
      %v3387 = vrot.slane %v3097, %v3386
      %v3388 = vlaneseq
      %v3389 = vshrl.u32 %v3388, 7
      %v3390 = vsub.s32 0, %v3389
      %v3391 = vrot.slane %v3098, %v3390
      %v3392 = vlaneseq
      %v3393 = vshrl.u32 %v3392, 7
      %v3394 = vsub.s32 0, %v3393
      %v3395 = vrot.slane %v3099, %v3394
      %v3396 = vlaneseq
      %v3397 = vshrl.u32 %v3396, 7
      %v3398 = vsub.s32 0, %v3397
      %v3399 = vrot.slane %v3100, %v3398
      %v3400 = vlaneseq
      %v3401 = vshrl.u32 %v3400, 7
      %v3402 = vsub.s32 0, %v3401
      %v3403 = vrot.slane %v3101, %v3402
      %v3404 = vlaneseq
      %v3405 = vshrl.u32 %v3404, 7
      %v3406 = vsub.s32 0, %v3405
      %v3407 = vrot.slane %v3102, %v3406
      %v3408 = vlaneseq
      %v3409 = vshrl.u32 %v3408, 7
      %v3410 = vsub.s32 0, %v3409
      %v3411 = vrot.slane %v3103, %v3410
      %v3412 = vlaneseq
      %v3413 = vshrl.u32 %v3412, 7
      %v3414 = vsub.s32 0, %v3413
      %v3415 = vrot.slane %v3104, %v3414
      %v3416 = vlaneseq
      %v3417 = vshrl.u32 %v3416, 7
      %v3418 = vsub.s32 0, %v3417
      %v3419 = vrot.slane %v3105, %v3418
      %v3420 = vlaneseq
      %v3421 = vshrl.u32 %v3420, 7
      %v3422 = vsub.s32 0, %v3421
      %v3423 = vrot.slane %v3106, %v3422
      %v3424 = vlaneseq
      %v3425 = vshrl.u32 %v3424, 7
      %v3426 = vsub.s32 0, %v3425
      %v3427 = vrot.slane %v3107, %v3426
      %vm3428 = vcmask 1041409
      %v3429 = vsel %vm3428, %v3179, %v3175
      %vm3430 = vcmask 1042434
      %v3431 = vsel %vm3430, %v3183, %v3429
      %vm3432 = vcmask 1043459
      %v3433 = vsel %vm3432, %v3187, %v3431
      %vm3434 = vcmask 1044484
      %v3435 = vsel %vm3434, %v3191, %v3433
      %vm3436 = vcmask 1045509
      %v3437 = vsel %vm3436, %v3195, %v3435
      %vm3438 = vcmask 1046534
      %v3439 = vsel %vm3438, %v3199, %v3437
      %vm3440 = vcmask 1047559
      %v3441 = vsel %vm3440, %v3203, %v3439
      %v3442 = vsel %vm3428, %v3211, %v3207
      %v3443 = vsel %vm3430, %v3215, %v3442
      %v3444 = vsel %vm3432, %v3219, %v3443
      %v3445 = vsel %vm3434, %v3223, %v3444
      %v3446 = vsel %vm3436, %v3227, %v3445
      %v3447 = vsel %vm3438, %v3231, %v3446
      %v3448 = vsel %vm3440, %v3235, %v3447
      %v3449 = vsel %vm3428, %v3243, %v3239
      %v3450 = vsel %vm3430, %v3247, %v3449
      %v3451 = vsel %vm3432, %v3251, %v3450
      %v3452 = vsel %vm3434, %v3255, %v3451
      %v3453 = vsel %vm3436, %v3259, %v3452
      %v3454 = vsel %vm3438, %v3263, %v3453
      %v3455 = vsel %vm3440, %v3267, %v3454
      %v3456 = vsel %vm3428, %v3275, %v3271
      %v3457 = vsel %vm3430, %v3279, %v3456
      %v3458 = vsel %vm3432, %v3283, %v3457
      %v3459 = vsel %vm3434, %v3287, %v3458
      %v3460 = vsel %vm3436, %v3291, %v3459
      %v3461 = vsel %vm3438, %v3295, %v3460
      %v3462 = vsel %vm3440, %v3299, %v3461
      %v3463 = vsel %vm3428, %v3307, %v3303
      %v3464 = vsel %vm3430, %v3311, %v3463
      %v3465 = vsel %vm3432, %v3315, %v3464
      %v3466 = vsel %vm3434, %v3319, %v3465
      %v3467 = vsel %vm3436, %v3323, %v3466
      %v3468 = vsel %vm3438, %v3327, %v3467
      %v3469 = vsel %vm3440, %v3331, %v3468
      %v3470 = vsel %vm3428, %v3339, %v3335
      %v3471 = vsel %vm3430, %v3343, %v3470
      %v3472 = vsel %vm3432, %v3347, %v3471
      %v3473 = vsel %vm3434, %v3351, %v3472
      %v3474 = vsel %vm3436, %v3355, %v3473
      %v3475 = vsel %vm3438, %v3359, %v3474
      %v3476 = vsel %vm3440, %v3363, %v3475
      %v3477 = vsel %vm3428, %v3371, %v3367
      %v3478 = vsel %vm3430, %v3375, %v3477
      %v3479 = vsel %vm3432, %v3379, %v3478
      %v3480 = vsel %vm3434, %v3383, %v3479
      %v3481 = vsel %vm3436, %v3387, %v3480
      %v3482 = vsel %vm3438, %v3391, %v3481
      %v3483 = vsel %vm3440, %v3395, %v3482
      %v3484 = vsel %vm3428, %v3403, %v3399
      %v3485 = vsel %vm3430, %v3407, %v3484
      %v3486 = vsel %vm3432, %v3411, %v3485
      %v3487 = vsel %vm3434, %v3415, %v3486
      %v3488 = vsel %vm3436, %v3419, %v3487
      %v3489 = vsel %vm3438, %v3423, %v3488
      %v3490 = vsel %vm3440, %v3427, %v3489
      %v3492 = vrot.slane 0.0, 7
      %v3493 = vrot.slane %v3441, 7
      %v3494 = vrot.slane %v3448, 7
      %v3495 = vrot.slane %v3455, 7
      %v3496 = vrot.slane %v3462, 7
      %v3497 = vrot.slane %v3469, 7
      %v3498 = vrot.slane %v3476, 7
      %v3499 = vrot.slane %v3483, 7
      %v3500 = vrot.slane %v3490, 7
      %vm3510 = vcmask 1040384
      %v3511 = vsel %vm3510, 0.0, %v3492
      %v3512 = vsel %vm3510, 0.0, %v3493
      %v3513 = vsel %vm3510, 0.0, %v3494
      %v3514 = vsel %vm3510, 0.0, %v3495
      %v3515 = vsel %vm3510, 0.0, %v3496
      %v3516 = vsel %vm3510, 0.0, %v3497
      %v3517 = vsel %vm3510, 0.0, %v3498
      %v3518 = vsel %vm3510, 0.0, %v3499
      %v3519 = vsel %vm3510, 0.0, %v3500
      %v3520 = vsel %vm3510, %v3492, 0.0
      %v3521 = vsel %vm3510, %v3493, 0.0
      %v3522 = vsel %vm3510, %v3494, 0.0
      %v3523 = vsel %vm3510, %v3495, 0.0
      %v3524 = vsel %vm3510, %v3496, 0.0
      %v3525 = vsel %vm3510, %v3497, 0.0
      %v3526 = vsel %vm3510, %v3498, 0.0
      %v3527 = vsel %vm3510, %v3499, 0.0
      %v3528 = vsel %vm3510, %v3500, 0.0
      %v3529 = vld [vmem:[%s3] sm:$0xf]
      %v3530 = vld [vmem:[%s3 + $0x4] sm:$0xf]
      %v3531 = vld [vmem:[%s3 + $0x8] sm:$0xf]
      %v3532 = vld [vmem:[%s3 + $0xc] sm:$0xf]
      %v3533 = vld [vmem:[%s3 + $0x10] sm:$0xf]
      %v3534 = vld [vmem:[%s3 + $0x14] sm:$0xf]
      %v3535 = vld [vmem:[%s3 + $0x18] sm:$0xf]
      %v3536 = vld [vmem:[%s3 + $0x1c] sm:$0xf]
      %v3537 = vld [vmem:[%s3 + $0x20] sm:$0xf]
      %v3538 = vld [vmem:[%s4] sm:$0x1]
      %v3555 = vrot.slane %v3511, 1
      %v3556 = vrot.slane %v3520, 1
      %v3557 = vsel %vm332, %v3555, %v3556
      %v3558 = vrot.slane %v3512, 1
      %v3559 = vrot.slane %v3521, 1
      %v3560 = vsel %vm332, %v3558, %v3559
      %v3561 = vrot.slane %v3513, 1
      %v3562 = vrot.slane %v3522, 1
      %v3563 = vsel %vm332, %v3561, %v3562
      %v3564 = vrot.slane %v3514, 1
      %v3565 = vrot.slane %v3523, 1
      %v3566 = vsel %vm332, %v3564, %v3565
      %v3567 = vrot.slane %v3515, 1
      %v3568 = vrot.slane %v3524, 1
      %v3569 = vsel %vm332, %v3567, %v3568
      %v3570 = vrot.slane %v3516, 1
      %v3571 = vrot.slane %v3525, 1
      %v3572 = vsel %vm332, %v3570, %v3571
      %v3573 = vrot.slane %v3517, 1
      %v3574 = vrot.slane %v3526, 1
      %v3575 = vsel %vm332, %v3573, %v3574
      %v3576 = vrot.slane %v3518, 1
      %v3577 = vrot.slane %v3527, 1
      %v3578 = vsel %vm332, %v3576, %v3577
      %v3579 = vrot.slane %v3511, 2
      %v3580 = vrot.slane %v3520, 2
      %v3581 = vsel %vm413, %v3579, %v3580
      %v3582 = vrot.slane %v3512, 2
      %v3583 = vrot.slane %v3521, 2
      %v3584 = vsel %vm413, %v3582, %v3583
      %v3585 = vrot.slane %v3513, 2
      %v3586 = vrot.slane %v3522, 2
      %v3587 = vsel %vm413, %v3585, %v3586
      %v3588 = vrot.slane %v3514, 2
      %v3589 = vrot.slane %v3523, 2
      %v3590 = vsel %vm413, %v3588, %v3589
      %v3591 = vrot.slane %v3515, 2
      %v3592 = vrot.slane %v3524, 2
      %v3593 = vsel %vm413, %v3591, %v3592
      %v3594 = vrot.slane %v3516, 2
      %v3595 = vrot.slane %v3525, 2
      %v3596 = vsel %vm413, %v3594, %v3595
      %v3597 = vrot.slane %v3517, 2
      %v3598 = vrot.slane %v3526, 2
      %v3599 = vsel %vm413, %v3597, %v3598
      %v3600 = vrot.slane %v3518, 2
      %v3601 = vrot.slane %v3527, 2
      %v3602 = vsel %vm413, %v3600, %v3601
      %v3605 = vrot.slane %v3519, 1
      %v3606 = vrot.slane %v3528, 1
      %v3607 = vsel %vm332, %v3605, %v3606
      %v3608 = vrot.slane %v3519, 2
      %v3609 = vrot.slane %v3528, 2
      %v3610 = vsel %vm413, %v3608, %v3609
      %3611 = vrot.lane.b32.xlu0 %v3557, 8
      %v3612 = vpop.permute.xlu0 %3611
      %3613 = vrot.lane.b32.xlu0 %v3560, 8
      %v3614 = vpop.permute.xlu0 %3613
      %3615 = vrot.lane.b32.xlu0 %v3563, 8
      %v3616 = vpop.permute.xlu0 %3615
      %3617 = vrot.lane.b32.xlu0 %v3566, 8
      %v3618 = vpop.permute.xlu0 %3617
      %3619 = vrot.lane.b32.xlu0 %v3569, 8
      %v3620 = vpop.permute.xlu0 %3619
      %3621 = vrot.lane.b32.xlu0 %v3572, 8
      %v3622 = vpop.permute.xlu0 %3621
      %3623 = vrot.lane.b32.xlu0 %v3575, 8
      %v3624 = vpop.permute.xlu0 %3623
      %3625 = vrot.lane.b32.xlu0 %v3578, 8
      %v3626 = vpop.permute.xlu0 %3625
      %3635 = vrot.lane.b32.xlu0 %v3581, 16
      %v3636 = vpop.permute.xlu0 %3635
      %3637 = vrot.lane.b32.xlu0 %v3584, 16
      %v3638 = vpop.permute.xlu0 %3637
      %3639 = vrot.lane.b32.xlu0 %v3587, 16
      %v3640 = vpop.permute.xlu0 %3639
      %3641 = vrot.lane.b32.xlu0 %v3590, 16
      %v3642 = vpop.permute.xlu0 %3641
      %3643 = vrot.lane.b32.xlu0 %v3593, 16
      %v3644 = vpop.permute.xlu0 %3643
      %3645 = vrot.lane.b32.xlu0 %v3596, 16
      %v3646 = vpop.permute.xlu0 %3645
      %3647 = vrot.lane.b32.xlu0 %v3599, 16
      %v3648 = vpop.permute.xlu0 %3647
      %3649 = vrot.lane.b32.xlu0 %v3602, 16
      %v3650 = vpop.permute.xlu0 %3649
      %3659 = vrot.lane.b32.xlu0 %v3512, 24
      %v3660 = vpop.permute.xlu0 %3659
      %3661 = vrot.lane.b32.xlu0 %v3513, 24
      %v3662 = vpop.permute.xlu0 %3661
      %3663 = vrot.lane.b32.xlu0 %v3514, 24
      %v3664 = vpop.permute.xlu0 %3663
      %3665 = vrot.lane.b32.xlu0 %v3515, 24
      %v3666 = vpop.permute.xlu0 %3665
      %3667 = vrot.lane.b32.xlu0 %v3516, 24
      %v3668 = vpop.permute.xlu0 %3667
      %3669 = vrot.lane.b32.xlu0 %v3517, 24
      %v3670 = vpop.permute.xlu0 %3669
      %3671 = vrot.lane.b32.xlu0 %v3518, 24
      %v3672 = vpop.permute.xlu0 %3671
      %3673 = vrot.lane.b32.xlu0 %v3519, 24
      %v3674 = vpop.permute.xlu0 %3673
      %3683 = vrot.lane.b32.xlu0 %v3560, 32
      %v3684 = vpop.permute.xlu0 %3683
      %3685 = vrot.lane.b32.xlu0 %v3563, 32
      %v3686 = vpop.permute.xlu0 %3685
      %3687 = vrot.lane.b32.xlu0 %v3566, 32
      %v3688 = vpop.permute.xlu0 %3687
      %3689 = vrot.lane.b32.xlu0 %v3569, 32
      %v3690 = vpop.permute.xlu0 %3689
      %3691 = vrot.lane.b32.xlu0 %v3572, 32
      %v3692 = vpop.permute.xlu0 %3691
      %3693 = vrot.lane.b32.xlu0 %v3575, 32
      %v3694 = vpop.permute.xlu0 %3693
      %3695 = vrot.lane.b32.xlu0 %v3578, 32
      %v3696 = vpop.permute.xlu0 %3695
      %3697 = vrot.lane.b32.xlu0 %v3607, 32
      %v3698 = vpop.permute.xlu0 %3697
      %3707 = vrot.lane.b32.xlu0 %v3584, 40
      %v3708 = vpop.permute.xlu0 %3707
      %3709 = vrot.lane.b32.xlu0 %v3587, 40
      %v3710 = vpop.permute.xlu0 %3709
      %3711 = vrot.lane.b32.xlu0 %v3590, 40
      %v3712 = vpop.permute.xlu0 %3711
      %3713 = vrot.lane.b32.xlu0 %v3593, 40
      %v3714 = vpop.permute.xlu0 %3713
      %3715 = vrot.lane.b32.xlu0 %v3596, 40
      %v3716 = vpop.permute.xlu0 %3715
      %3717 = vrot.lane.b32.xlu0 %v3599, 40
      %v3718 = vpop.permute.xlu0 %3717
      %3719 = vrot.lane.b32.xlu0 %v3602, 40
      %v3720 = vpop.permute.xlu0 %3719
      %3721 = vrot.lane.b32.xlu0 %v3610, 40
      %v3722 = vpop.permute.xlu0 %3721
      %3731 = vrot.lane.b32.xlu0 %v3513, 48
      %v3732 = vpop.permute.xlu0 %3731
      %3733 = vrot.lane.b32.xlu0 %v3514, 48
      %v3734 = vpop.permute.xlu0 %3733
      %3735 = vrot.lane.b32.xlu0 %v3515, 48
      %v3736 = vpop.permute.xlu0 %3735
      %3737 = vrot.lane.b32.xlu0 %v3516, 48
      %v3738 = vpop.permute.xlu0 %3737
      %3739 = vrot.lane.b32.xlu0 %v3517, 48
      %v3740 = vpop.permute.xlu0 %3739
      %3741 = vrot.lane.b32.xlu0 %v3518, 48
      %v3742 = vpop.permute.xlu0 %3741
      %3743 = vrot.lane.b32.xlu0 %v3519, 48
      %v3744 = vpop.permute.xlu0 %3743
      %3745 = vrot.lane.b32.xlu0 %v3511, 48
      %v3746 = vpop.permute.xlu0 %3745
      %3755 = vrot.lane.b32.xlu0 %v3563, 56
      %v3756 = vpop.permute.xlu0 %3755
      %3757 = vrot.lane.b32.xlu0 %v3566, 56
      %v3758 = vpop.permute.xlu0 %3757
      %3759 = vrot.lane.b32.xlu0 %v3569, 56
      %v3760 = vpop.permute.xlu0 %3759
      %3761 = vrot.lane.b32.xlu0 %v3572, 56
      %v3762 = vpop.permute.xlu0 %3761
      %3763 = vrot.lane.b32.xlu0 %v3575, 56
      %v3764 = vpop.permute.xlu0 %3763
      %3765 = vrot.lane.b32.xlu0 %v3578, 56
      %v3766 = vpop.permute.xlu0 %3765
      %3767 = vrot.lane.b32.xlu0 %v3607, 56
      %v3768 = vpop.permute.xlu0 %3767
      %3769 = vrot.lane.b32.xlu0 %v3557, 56
      %v3770 = vpop.permute.xlu0 %3769
      %3779 = vrot.lane.b32.xlu0 %v3587, 64
      %v3780 = vpop.permute.xlu0 %3779
      %3781 = vrot.lane.b32.xlu0 %v3590, 64
      %v3782 = vpop.permute.xlu0 %3781
      %3783 = vrot.lane.b32.xlu0 %v3593, 64
      %v3784 = vpop.permute.xlu0 %3783
      %3785 = vrot.lane.b32.xlu0 %v3596, 64
      %v3786 = vpop.permute.xlu0 %3785
      %3787 = vrot.lane.b32.xlu0 %v3599, 64
      %v3788 = vpop.permute.xlu0 %3787
      %3789 = vrot.lane.b32.xlu0 %v3602, 64
      %v3790 = vpop.permute.xlu0 %3789
      %3791 = vrot.lane.b32.xlu0 %v3610, 64
      %v3792 = vpop.permute.xlu0 %3791
      %3793 = vrot.lane.b32.xlu0 %v3581, 64
      %v3794 = vpop.permute.xlu0 %3793
      %v3803 = vsel %vm1519, %v3511, %v3612
      %v3804 = vsel %vm1519, %v3512, %v3614
      %v3805 = vsel %vm1519, %v3513, %v3616
      %v3806 = vsel %vm1519, %v3514, %v3618
      %v3807 = vsel %vm1519, %v3515, %v3620
      %v3808 = vsel %vm1519, %v3516, %v3622
      %v3809 = vsel %vm1519, %v3517, %v3624
      %v3810 = vsel %vm1519, %v3518, %v3626
      %vm3811 = vcmask 130048
      %v3812 = vsel %vm3811, %v3803, %v3636
      %v3813 = vsel %vm3811, %v3804, %v3638
      %v3814 = vsel %vm3811, %v3805, %v3640
      %v3815 = vsel %vm3811, %v3806, %v3642
      %v3816 = vsel %vm3811, %v3807, %v3644
      %v3817 = vsel %vm3811, %v3808, %v3646
      %v3818 = vsel %vm3811, %v3809, %v3648
      %v3819 = vsel %vm3811, %v3810, %v3650
      %vm3820 = vcmask 195584
      %v3821 = vsel %vm3820, %v3812, %v3660
      %v3822 = vsel %vm3820, %v3813, %v3662
      %v3823 = vsel %vm3820, %v3814, %v3664
      %v3824 = vsel %vm3820, %v3815, %v3666
      %v3825 = vsel %vm3820, %v3816, %v3668
      %v3826 = vsel %vm3820, %v3817, %v3670
      %v3827 = vsel %vm3820, %v3818, %v3672
      %v3828 = vsel %vm3820, %v3819, %v3674
      %vm3829 = vcmask 261120
      %v3830 = vsel %vm3829, %v3821, %v3684
      %v3831 = vsel %vm3829, %v3822, %v3686
      %v3832 = vsel %vm3829, %v3823, %v3688
      %v3833 = vsel %vm3829, %v3824, %v3690
      %v3834 = vsel %vm3829, %v3825, %v3692
      %v3835 = vsel %vm3829, %v3826, %v3694
      %v3836 = vsel %vm3829, %v3827, %v3696
      %v3837 = vsel %vm3829, %v3828, %v3698
      %vm3838 = vcmask 326656
      %v3839 = vsel %vm3838, %v3830, %v3708
      %v3840 = vsel %vm3838, %v3831, %v3710
      %v3841 = vsel %vm3838, %v3832, %v3712
      %v3842 = vsel %vm3838, %v3833, %v3714
      %v3843 = vsel %vm3838, %v3834, %v3716
      %v3844 = vsel %vm3838, %v3835, %v3718
      %v3845 = vsel %vm3838, %v3836, %v3720
      %v3846 = vsel %vm3838, %v3837, %v3722
      %vm3847 = vcmask 392192
      %v3848 = vsel %vm3847, %v3839, %v3732
      %v3849 = vsel %vm3847, %v3840, %v3734
      %v3850 = vsel %vm3847, %v3841, %v3736
      %v3851 = vsel %vm3847, %v3842, %v3738
      %v3852 = vsel %vm3847, %v3843, %v3740
      %v3853 = vsel %vm3847, %v3844, %v3742
      %v3854 = vsel %vm3847, %v3845, %v3744
      %v3855 = vsel %vm3847, %v3846, %v3746
      %vm3856 = vcmask 457728
      %v3857 = vsel %vm3856, %v3848, %v3756
      %v3858 = vsel %vm3856, %v3849, %v3758
      %v3859 = vsel %vm3856, %v3850, %v3760
      %v3860 = vsel %vm3856, %v3851, %v3762
      %v3861 = vsel %vm3856, %v3852, %v3764
      %v3862 = vsel %vm3856, %v3853, %v3766
      %v3863 = vsel %vm3856, %v3854, %v3768
      %v3864 = vsel %vm3856, %v3855, %v3770
      %vm3865 = vcmask 523264
      %v3866 = vsel %vm3865, %v3857, %v3780
      %v3867 = vsel %vm3865, %v3858, %v3782
      %v3868 = vsel %vm3865, %v3859, %v3784
      %v3869 = vsel %vm3865, %v3860, %v3786
      %v3870 = vsel %vm3865, %v3861, %v3788
      %v3871 = vsel %vm3865, %v3862, %v3790
      %v3872 = vsel %vm3865, %v3863, %v3792
      %v3873 = vsel %vm3865, %v3864, %v3794
      %v3874 = vpack.c.bf16 %v3867, %v3866
      %v3875 = vpack.c.bf16 %v3869, %v3868
      %v3876 = vpack.c.bf16 %v3871, %v3870
      %v3877 = vpack.c.bf16 %v3873, %v3872
      %v3879 = vlaneseq
      %v3880 = vshrl.u32 %v3879, 7
      %v3881 = vsub.s32 0, %v3880
      %v3882 = vrot.slane %v3538, %v3881
      %v3893 = vunpack.c.l.b16 %v3529
      %v3894 = vunpack.c.l.b16 %v3530
      %v3895 = vunpack.c.l.b16 %v3531
      %v3896 = vunpack.c.l.b16 %v3532
      %v3897 = vunpack.c.l.b16 %v3533
      %v3898 = vunpack.c.l.b16 %v3534
      %v3899 = vunpack.c.l.b16 %v3535
      %v3900 = vunpack.c.l.b16 %v3536
      %v3901 = vunpack.c.l.b16 %v3537
      %v3902 = vpack.c.b16 %v3894, %v3893
      %v3903 = vpack.c.b16 %v3896, %v3895
      %v3904 = vpack.c.b16 %v3898, %v3897
      %v3905 = vpack.c.b16 %v3900, %v3899
      %v3906 = vpack.c.b16 %v3901, %v3901
      %vm3911 = vcmask 588800
      %v3913 = vsel %vm3911, %v3874, 0
      %v3916 = vsel %vm3911, %v3875, 0
      %v3919 = vsel %vm3911, %v3876, 0
      %v3922 = vsel %vm3911, %v3877, 0
      %v3925 = vsel %vm1628, %v3906, 0
      %3927 = vmatprep.subr.bf16.mxu0 0
      %3928 = vmatpush1.bf16.msra.mxu0 %v3902
      %3929 = vmatprep.subr.bf16.mxu0 0
      %3930 = vmatpush1.bf16.msra.mxu0 %v3903
      %3931 = vmatprep.subr.bf16.mxu0 0
      %3932 = vmatpush1.bf16.msra.mxu0 %v3904
      %3933 = vmatprep.subr.bf16.mxu0 0
      %3934 = vmatpush1.bf16.msra.mxu0 %v3905
      %3935 = vmatprep.subr.bf16.mxu0 0
      %3936 = vmatpush1.bf16.msra.mxu0 %v3925
      %3937 = vmatprep.subr.bf16.mxu0 0
      %3938 = vmatpush1.bf16.msra.mxu0 0
      %3939 = vmatprep.subr.bf16.mxu0 0
      %3940 = vmatpush1.bf16.msra.mxu0 0
      %3941 = vmatprep.subr.bf16.mxu0 0
      %3942 = vmatpush1.bf16.msra.mxu0 0
      %3943 = vmatprep.subr.bf16.mxu0 0
      %3944 = vmatpush1.bf16.msra.mxu0 0
      %3945 = vmatprep.subr.bf16.mxu0 0
      %3946 = vmatpush1.bf16.msra.mxu0 0
      %3947 = vmatprep.subr.bf16.mxu0 0
      %3948 = vmatpush1.bf16.msra.mxu0 0
      %3949 = vmatprep.subr.bf16.mxu0 0
      %3950 = vmatpush1.bf16.msra.mxu0 0
      %3951 = vmatprep.subr.bf16.mxu0 0
      %3952 = vmatpush1.bf16.msra.mxu0 0
      %3953 = vmatprep.subr.bf16.mxu0 0
      %3954 = vmatpush1.bf16.msra.mxu0 0
      %3955 = vmatprep.subr.bf16.mxu0 0
      %3956 = vmatpush1.bf16.msra.mxu0 0
      %3957 = vmatprep.subr.bf16.mxu0 0
      %3958 = vmatpush1.bf16.msra.mxu0 0
      %3959 = vmatprep.mubr.bf16.mxu0 0
      %3960 = vmatmul.mubr.bf16.gmra.mrb[0].mxu0 %v3913
      %v3961 = vpop.f32.mrb[0].mxu0
      %v3962 = vadd.f32 %v3882, %v3961
      %v3963 = vpop.f32.mrb[0].mxu0
      %v3964 = vpop.f32.mrb[0].mxu0
      %v3965 = vadd.f32 %v3882, %v3964
      %v3966 = vpop.f32.mrb[0].mxu0
      %3967 = vmatprep.mubr.bf16.mxu0 0
      %3968 = vmatmul.mubr.bf16.gmra.mrb[0].mxu0 %v3916
      %v3969 = vpop.f32.mrb[0].mxu0
      %v3970 = vadd.f32 %v3882, %v3969
      %v3971 = vpop.f32.mrb[0].mxu0
      %v3972 = vpop.f32.mrb[0].mxu0
      %v3973 = vadd.f32 %v3882, %v3972
      %v3974 = vpop.f32.mrb[0].mxu0
      %3975 = vmatprep.mubr.bf16.mxu0 0
      %3976 = vmatmul.mubr.bf16.gmra.mrb[0].mxu0 %v3919
      %v3977 = vpop.f32.mrb[0].mxu0
      %v3978 = vadd.f32 %v3882, %v3977
      %v3979 = vpop.f32.mrb[0].mxu0
      %v3980 = vpop.f32.mrb[0].mxu0
      %v3981 = vadd.f32 %v3882, %v3980
      %v3982 = vpop.f32.mrb[0].mxu0
      %3983 = vmatprep.mubr.bf16.mxu0 0
      %3984 = vmatmul.mubr.bf16.gmra.mrb[0].mxu0 %v3922
      %v3985 = vpop.f32.mrb[0].mxu0
      %v3986 = vadd.f32 %v3882, %v3985
      %v3987 = vpop.f32.mrb[0].mxu0
      %v3988 = vpop.f32.mrb[0].mxu0
      %v3989 = vadd.f32 %v3882, %v3988
      %v3990 = vpop.f32.mrb[0].mxu0
      %3991 = vdwg.mxu0
      %v3992 = vmax.f32 %v3962, 0.0
      %v3993 = vmax.f32 %v3965, 0.0
      %v3994 = vmax.f32 %v3970, 0.0
      %v3995 = vmax.f32 %v3973, 0.0
      %v3996 = vmax.f32 %v3978, 0.0
      %v3997 = vmax.f32 %v3981, 0.0
      %v3998 = vmax.f32 %v3986, 0.0
      %v3999 = vmax.f32 %v3989, 0.0
      %v4008 = vcombine.high %v3992, %v3992
      %v4010 = vunpack.c.l.s4 1983009808
      %v4011 = vunpack.c.0.s8 %v4010
      %v4012 = vlaneseq
      %v4013 = vshrl.u32 %v4012, 7
      %v4014 = vsub.s32 %v4011, %v4013
      %v4015 = vrot.slane %v3992, %v4014
      %v4017 = vunpack.c.l.s4 1983009808
      %v4018 = vunpack.c.0.s8 %v4017
      %v4019 = vlaneseq
      %v4020 = vshrl.u32 %v4019, 7
      %v4021 = vsub.s32 %v4018, %v4020
      %v4022 = vrot.slane %v4008, %v4021
      %v4023 = vcombine.high %v4015, %v4015
      %v4024 = vcombine.high %v4022, %v4022
      %v4025 = vcombine.high %v3993, %v3993
      %v4027 = vunpack.c.l.s4 1983009808
      %v4028 = vunpack.c.0.s8 %v4027
      %v4029 = vlaneseq
      %v4030 = vshrl.u32 %v4029, 7
      %v4031 = vsub.s32 %v4028, %v4030
      %v4032 = vrot.slane %v3993, %v4031
      %v4034 = vunpack.c.l.s4 1983009808
      %v4035 = vunpack.c.0.s8 %v4034
      %v4036 = vlaneseq
      %v4037 = vshrl.u32 %v4036, 7
      %v4038 = vsub.s32 %v4035, %v4037
      %v4039 = vrot.slane %v4025, %v4038
      %v4040 = vcombine.high %v4032, %v4032
      %v4041 = vcombine.high %v4039, %v4039
      %v4042 = vcombine.high %v3994, %v3994
      %v4044 = vunpack.c.l.s4 1983009808
      %v4045 = vunpack.c.0.s8 %v4044
      %v4046 = vlaneseq
      %v4047 = vshrl.u32 %v4046, 7
      %v4048 = vsub.s32 %v4045, %v4047
      %v4049 = vrot.slane %v3994, %v4048
      %v4051 = vunpack.c.l.s4 1983009808
      %v4052 = vunpack.c.0.s8 %v4051
      %v4053 = vlaneseq
      %v4054 = vshrl.u32 %v4053, 7
      %v4055 = vsub.s32 %v4052, %v4054
      %v4056 = vrot.slane %v4042, %v4055
      %v4057 = vcombine.high %v4049, %v4049
      %v4058 = vcombine.high %v4056, %v4056
      %v4059 = vcombine.high %v3995, %v3995
      %v4061 = vunpack.c.l.s4 1983009808
      %v4062 = vunpack.c.0.s8 %v4061
      %v4063 = vlaneseq
      %v4064 = vshrl.u32 %v4063, 7
      %v4065 = vsub.s32 %v4062, %v4064
      %v4066 = vrot.slane %v3995, %v4065
      %v4068 = vunpack.c.l.s4 1983009808
      %v4069 = vunpack.c.0.s8 %v4068
      %v4070 = vlaneseq
      %v4071 = vshrl.u32 %v4070, 7
      %v4072 = vsub.s32 %v4069, %v4071
      %v4073 = vrot.slane %v4059, %v4072
      %v4074 = vcombine.high %v4066, %v4066
      %v4075 = vcombine.high %v4073, %v4073
      %v4076 = vcombine.high %v3996, %v3996
      %v4078 = vunpack.c.l.s4 1983009808
      %v4079 = vunpack.c.0.s8 %v4078
      %v4080 = vlaneseq
      %v4081 = vshrl.u32 %v4080, 7
      %v4082 = vsub.s32 %v4079, %v4081
      %v4083 = vrot.slane %v3996, %v4082
      %v4085 = vunpack.c.l.s4 1983009808
      %v4086 = vunpack.c.0.s8 %v4085
      %v4087 = vlaneseq
      %v4088 = vshrl.u32 %v4087, 7
      %v4089 = vsub.s32 %v4086, %v4088
      %v4090 = vrot.slane %v4076, %v4089
      %v4091 = vcombine.high %v4083, %v4083
      %v4092 = vcombine.high %v4090, %v4090
      %v4093 = vcombine.high %v3997, %v3997
      %v4095 = vunpack.c.l.s4 1983009808
      %v4096 = vunpack.c.0.s8 %v4095
      %v4097 = vlaneseq
      %v4098 = vshrl.u32 %v4097, 7
      %v4099 = vsub.s32 %v4096, %v4098
      %v4100 = vrot.slane %v3997, %v4099
      %v4102 = vunpack.c.l.s4 1983009808
      %v4103 = vunpack.c.0.s8 %v4102
      %v4104 = vlaneseq
      %v4105 = vshrl.u32 %v4104, 7
      %v4106 = vsub.s32 %v4103, %v4105
      %v4107 = vrot.slane %v4093, %v4106
      %v4108 = vcombine.high %v4100, %v4100
      %v4109 = vcombine.high %v4107, %v4107
      %v4110 = vcombine.high %v3998, %v3998
      %v4112 = vunpack.c.l.s4 1983009808
      %v4113 = vunpack.c.0.s8 %v4112
      %v4114 = vlaneseq
      %v4115 = vshrl.u32 %v4114, 7
      %v4116 = vsub.s32 %v4113, %v4115
      %v4117 = vrot.slane %v3998, %v4116
      %v4119 = vunpack.c.l.s4 1983009808
      %v4120 = vunpack.c.0.s8 %v4119
      %v4121 = vlaneseq
      %v4122 = vshrl.u32 %v4121, 7
      %v4123 = vsub.s32 %v4120, %v4122
      %v4124 = vrot.slane %v4110, %v4123
      %v4125 = vcombine.high %v4117, %v4117
      %v4126 = vcombine.high %v4124, %v4124
      %v4127 = vcombine.high %v3999, %v3999
      %v4129 = vunpack.c.l.s4 1983009808
      %v4130 = vunpack.c.0.s8 %v4129
      %v4131 = vlaneseq
      %v4132 = vshrl.u32 %v4131, 7
      %v4133 = vsub.s32 %v4130, %v4132
      %v4134 = vrot.slane %v3999, %v4133
      %v4136 = vunpack.c.l.s4 1983009808
      %v4137 = vunpack.c.0.s8 %v4136
      %v4138 = vlaneseq
      %v4139 = vshrl.u32 %v4138, 7
      %v4140 = vsub.s32 %v4137, %v4139
      %v4141 = vrot.slane %v4127, %v4140
      %v4142 = vcombine.high %v4134, %v4134
      %v4143 = vcombine.high %v4141, %v4141
      %v4176 = vrot.slane %v4015, 7
      %v4177 = vrot.slane %v4176, 2
      %v4178 = vrot.slane %v4023, 7
      %v4179 = vrot.slane %v4178, 2
      %v4180 = vrot.slane %v4022, 7
      %v4181 = vrot.slane %v4180, 2
      %v4182 = vrot.slane %v4024, 7
      %v4183 = vrot.slane %v4182, 2
      %v4184 = vrot.slane %v4032, 7
      %v4185 = vrot.slane %v4184, 2
      %v4186 = vrot.slane %v4040, 7
      %v4187 = vrot.slane %v4186, 2
      %v4188 = vrot.slane %v4039, 7
      %v4189 = vrot.slane %v4188, 2
      %v4190 = vrot.slane %v4041, 7
      %v4191 = vrot.slane %v4190, 2
      %v4192 = vrot.slane %v4049, 7
      %v4193 = vrot.slane %v4192, 2
      %v4194 = vrot.slane %v4057, 7
      %v4195 = vrot.slane %v4194, 2
      %v4196 = vrot.slane %v4056, 7
      %v4197 = vrot.slane %v4196, 2
      %v4198 = vrot.slane %v4058, 7
      %v4199 = vrot.slane %v4198, 2
      %v4200 = vrot.slane %v4066, 7
      %v4201 = vrot.slane %v4200, 2
      %v4202 = vrot.slane %v4074, 7
      %v4203 = vrot.slane %v4202, 2
      %v4204 = vrot.slane %v4073, 7
      %v4205 = vrot.slane %v4204, 2
      %v4206 = vrot.slane %v4075, 7
      %v4207 = vrot.slane %v4206, 2
      %v4208 = vrot.slane %v4083, 7
      %v4209 = vrot.slane %v4208, 2
      %v4210 = vrot.slane %v4091, 7
      %v4211 = vrot.slane %v4210, 2
      %v4212 = vrot.slane %v4090, 7
      %v4213 = vrot.slane %v4212, 2
      %v4214 = vrot.slane %v4092, 7
      %v4215 = vrot.slane %v4214, 2
      %v4216 = vrot.slane %v4100, 7
      %v4217 = vrot.slane %v4216, 2
      %v4218 = vrot.slane %v4108, 7
      %v4219 = vrot.slane %v4218, 2
      %v4220 = vrot.slane %v4107, 7
      %v4221 = vrot.slane %v4220, 2
      %v4222 = vrot.slane %v4109, 7
      %v4223 = vrot.slane %v4222, 2
      %v4224 = vrot.slane %v4117, 7
      %v4225 = vrot.slane %v4224, 2
      %v4226 = vrot.slane %v4125, 7
      %v4227 = vrot.slane %v4226, 2
      %v4228 = vrot.slane %v4124, 7
      %v4229 = vrot.slane %v4228, 2
      %v4230 = vrot.slane %v4126, 7
      %v4231 = vrot.slane %v4230, 2
      %v4232 = vrot.slane %v4134, 7
      %v4233 = vrot.slane %v4232, 2
      %v4234 = vrot.slane %v4142, 7
      %v4235 = vrot.slane %v4234, 2
      %v4236 = vrot.slane %v4141, 7
      %v4237 = vrot.slane %v4236, 2
      %v4238 = vrot.slane %v4143, 7
      %v4239 = vrot.slane %v4238, 2
      %v4272 = vmax.f32 %v4015, %v4177
      %v4273 = vmax.f32 %v4023, %v4179
      %v4274 = vmax.f32 %v4022, %v4181
      %v4275 = vmax.f32 %v4024, %v4183
      %v4276 = vmax.f32 %v4032, %v4185
      %v4277 = vmax.f32 %v4040, %v4187
      %v4278 = vmax.f32 %v4039, %v4189
      %v4279 = vmax.f32 %v4041, %v4191
      %v4280 = vmax.f32 %v4049, %v4193
      %v4281 = vmax.f32 %v4057, %v4195
      %v4282 = vmax.f32 %v4056, %v4197
      %v4283 = vmax.f32 %v4058, %v4199
      %v4284 = vmax.f32 %v4066, %v4201
      %v4285 = vmax.f32 %v4074, %v4203
      %v4286 = vmax.f32 %v4073, %v4205
      %v4287 = vmax.f32 %v4075, %v4207
      %v4288 = vmax.f32 %v4083, %v4209
      %v4289 = vmax.f32 %v4091, %v4211
      %v4290 = vmax.f32 %v4090, %v4213
      %v4291 = vmax.f32 %v4092, %v4215
      %v4292 = vmax.f32 %v4100, %v4217
      %v4293 = vmax.f32 %v4108, %v4219
      %v4294 = vmax.f32 %v4107, %v4221
      %v4295 = vmax.f32 %v4109, %v4223
      %v4296 = vmax.f32 %v4117, %v4225
      %v4297 = vmax.f32 %v4125, %v4227
      %v4298 = vmax.f32 %v4124, %v4229
      %v4299 = vmax.f32 %v4126, %v4231
      %v4300 = vmax.f32 %v4134, %v4233
      %v4301 = vmax.f32 %v4142, %v4235
      %v4302 = vmax.f32 %v4141, %v4237
      %v4303 = vmax.f32 %v4143, %v4239
      %v4304 = vmax.f32 %v4272, %v4276
      %v4305 = vmax.f32 %v4273, %v4277
      %v4306 = vmax.f32 %v4274, %v4278
      %v4307 = vmax.f32 %v4275, %v4279
      %v4308 = vmax.f32 %v4280, %v4284
      %v4309 = vmax.f32 %v4281, %v4285
      %v4310 = vmax.f32 %v4282, %v4286
      %v4311 = vmax.f32 %v4283, %v4287
      %v4312 = vmax.f32 %v4288, %v4292
      %v4313 = vmax.f32 %v4289, %v4293
      %v4314 = vmax.f32 %v4290, %v4294
      %v4315 = vmax.f32 %v4291, %v4295
      %v4316 = vmax.f32 %v4296, %v4300
      %v4317 = vmax.f32 %v4297, %v4301
      %v4318 = vmax.f32 %v4298, %v4302
      %v4319 = vmax.f32 %v4299, %v4303
      %v4336 = vlaneseq
      %v4337 = vshrl.u32 %v4336, 7
      %v4338 = vsub.s32 0, %v4337
      %v4339 = vrot.slane %v4304, %v4338
      %v4340 = vlaneseq
      %v4341 = vshrl.u32 %v4340, 7
      %v4342 = vsub.s32 0, %v4341
      %v4343 = vrot.slane %v4305, %v4342
      %v4344 = vlaneseq
      %v4345 = vshrl.u32 %v4344, 7
      %v4346 = vsub.s32 0, %v4345
      %v4347 = vrot.slane %v4306, %v4346
      %v4348 = vlaneseq
      %v4349 = vshrl.u32 %v4348, 7
      %v4350 = vsub.s32 0, %v4349
      %v4351 = vrot.slane %v4307, %v4350
      %v4352 = vlaneseq
      %v4353 = vshrl.u32 %v4352, 7
      %v4354 = vsub.s32 0, %v4353
      %v4355 = vrot.slane %v4308, %v4354
      %v4356 = vlaneseq
      %v4357 = vshrl.u32 %v4356, 7
      %v4358 = vsub.s32 0, %v4357
      %v4359 = vrot.slane %v4309, %v4358
      %v4360 = vlaneseq
      %v4361 = vshrl.u32 %v4360, 7
      %v4362 = vsub.s32 0, %v4361
      %v4363 = vrot.slane %v4310, %v4362
      %v4364 = vlaneseq
      %v4365 = vshrl.u32 %v4364, 7
      %v4366 = vsub.s32 0, %v4365
      %v4367 = vrot.slane %v4311, %v4366
      %v4368 = vlaneseq
      %v4369 = vshrl.u32 %v4368, 7
      %v4370 = vsub.s32 0, %v4369
      %v4371 = vrot.slane %v4312, %v4370
      %v4372 = vlaneseq
      %v4373 = vshrl.u32 %v4372, 7
      %v4374 = vsub.s32 0, %v4373
      %v4375 = vrot.slane %v4313, %v4374
      %v4376 = vlaneseq
      %v4377 = vshrl.u32 %v4376, 7
      %v4378 = vsub.s32 0, %v4377
      %v4379 = vrot.slane %v4314, %v4378
      %v4380 = vlaneseq
      %v4381 = vshrl.u32 %v4380, 7
      %v4382 = vsub.s32 0, %v4381
      %v4383 = vrot.slane %v4315, %v4382
      %v4384 = vlaneseq
      %v4385 = vshrl.u32 %v4384, 7
      %v4386 = vsub.s32 0, %v4385
      %v4387 = vrot.slane %v4316, %v4386
      %v4388 = vlaneseq
      %v4389 = vshrl.u32 %v4388, 7
      %v4390 = vsub.s32 0, %v4389
      %v4391 = vrot.slane %v4317, %v4390
      %v4392 = vlaneseq
      %v4393 = vshrl.u32 %v4392, 7
      %v4394 = vsub.s32 0, %v4393
      %v4395 = vrot.slane %v4318, %v4394
      %v4396 = vlaneseq
      %v4397 = vshrl.u32 %v4396, 7
      %v4398 = vsub.s32 0, %v4397
      %v4399 = vrot.slane %v4319, %v4398
      %v4400 = vsel %vm3428, %v4343, %v4339
      %v4401 = vsel %vm3430, %v4347, %v4400
      %v4402 = vsel %vm3432, %v4351, %v4401
      %v4403 = vsel %vm3434, %v4355, %v4402
      %v4404 = vsel %vm3436, %v4359, %v4403
      %v4405 = vsel %vm3438, %v4363, %v4404
      %v4406 = vsel %vm3440, %v4367, %v4405
      %v4407 = vsel %vm3428, %v4375, %v4371
      %v4408 = vsel %vm3430, %v4379, %v4407
      %v4409 = vsel %vm3432, %v4383, %v4408
      %v4410 = vsel %vm3434, %v4387, %v4409
      %v4411 = vsel %vm3436, %v4391, %v4410
      %v4412 = vsel %vm3438, %v4395, %v4411
      %v4413 = vsel %vm3440, %v4399, %v4412
      %4416 = vst.msk [vmem:[%s224] sm:$0xff] %vm3811, %v4406
      %4417 = vst.msk [vmem:[%s224 + $0x8] sm:$0xff] %vm3811, %v4413
      %s4418 = smul.u32 2, %s16
      %p4419 = scmp.lt.s32.totalorder %s4418, 3
      %s4420 = scalar_select %p4419, %s4418, 3
      %s4421 = smul.addr %s4420, 8
      %s4422 = scalar_lea.vmem %s5, %s4421
      // Predicated region
      $region41: #{tpu_custom_call.1} parent=39 // pred_check
        %p4423 = pneg %p144
      $region42: #{tpu_custom_call.1} parent=39 // pred_check_branch
        %4425 = sbr.rel (%p4423) target = $region44
      $region43: #{tpu_custom_call.1} parent=39 // pred_region
        %s4426 = smul.u32 2, %s16
      $region44: #{tpu_custom_call.1} parent=39 // pred_fallthru
        _
    $region40: #{tpu_custom_call.1} parent=5 // pred_fallthru
      _
    %p4427 = scmp.le.s32.totalorder 2, %s11
    // Predicated region
    $region45: #{tpu_custom_call.1} parent=5 // pred_check
      %p4428 = pneg %p4427
    $region46: #{tpu_custom_call.1} parent=5 // pred_check_branch
      %4430 = sbr.rel (%p4428) target = $region48
    $region47: #{tpu_custom_call.1} parent=5 // pred_region
      %s4431 = ssub.s32 %s11, 2
      // Predicated region
      $region49: #{tpu_custom_call.1} parent=47 // pred_check
        %p4432 = pneg %p150
      $region50: #{tpu_custom_call.1} parent=47 // pred_check_branch
        %4434 = sbr.rel (%p4432) target = $region52
      $region51: #{tpu_custom_call.1} parent=47 // pred_region
        %s4435 = smul.u32 2, %s17
        %p4436 = scmp.lt.s32.totalorder %s4435, 3
        %s4437 = scalar_select %p4436, %s4435, 3
        %s4438 = smul.addr %s4437, 8
        %s4439 = scalar_lea.vmem %s5, %s4438
      $region52: #{tpu_custom_call.1} parent=47 // pred_fallthru
        _
    $region48: #{tpu_custom_call.1} parent=5 // pred_fallthru
      _
  $region6: #{tpu_custom_call.1} parent=0 // loop_footer
    %s15 = sadd.s32 1, %s11
  $region7: #{tpu_custom_call.1} parent=0 // loop_footer_branch
    %10 = sbr.rel target = $region3
  $region8: #{tpu_custom_call.1} parent=0 // loop_exit
    _

</llo_original>
